<compile_context>
chip_gen: v7x
topology: tpu7x:2x2x1
jax: 0.10.0
libtpu: 0.0.40
codegen_flags: <defaults>
</compile_context>

<pallas_src>
import math

import jax
import jax.numpy as jnp
from jax.experimental import pallas as pl
from jax.experimental.pallas import tpu as pltpu


def residual_block_forward(x, w1, b1, w2, b2, *, act="relu"):
    """ResidualBlock.forward.

    x : (B, C, H, W)   NCHW, like PyTorch
    w1, w2 : (C, C, 3, 3)   OIHW conv weights
    b1, b2 : (C,)           conv biases
    """
    B, C, H, W = x.shape
    L = H * W
    # Lane-aligned offset of the "interior" image inside the padded scratch.
    F = ((W + 1 + 127) // 128) * 128          # >= W + 1, multiple of 128
    Lp = F + L + W + 1                        # padded (flattened) length
    negative_slope = 0.0 if act == "relu" else 0.1

    # --- cheap wrapper-side prep (tiny arrays; x itself is only reshaped) ---
    x_flat = x.reshape(B, C, L)
    # (Cout, Cin, 3, 3) -> (9, Cout, Cin), tap k = 3*kh + kw
    w1_taps = jnp.transpose(w1, (2, 3, 0, 1)).reshape(9, C, C)
    w2_taps = jnp.transpose(w2, (2, 3, 0, 1)).reshape(9, C, C)
    b1_col = b1.reshape(C, 1).astype(jnp.float32)
    b2_col = b2.reshape(C, 1).astype(jnp.float32)

    # Column-wrap masks for the width-direction zero padding.
    col = jnp.arange(L, dtype=jnp.int32) % W
    mask_l = (col != 0).astype(jnp.float32).reshape(1, L)        # kw == 0 taps
    mask_r = (col != W - 1).astype(jnp.float32).reshape(1, L)    # kw == 2 taps

    def kernel(x_ref, w1_ref, b1_ref, w2_ref, b2_ref, ml_ref, mr_ref,
               o_ref, xpad_ref, hpad_ref):
        x_img = x_ref[0].astype(jnp.float32)          # (C, L)
        ml = ml_ref[...]                               # (1, L)
        mr = mr_ref[...]                               # (1, L)
        bias1 = b1_ref[...]                            # (C, 1)
        bias2 = b2_ref[...]                            # (C, 1)

        # Zero the padded scratch images, then write the interiors.
        xpad_ref[...] = jnp.zeros_like(xpad_ref)
        hpad_ref[...] = jnp.zeros_like(hpad_ref)
        xpad_ref[:, F:F + L] = x_img

        def conv3x3(src_ref, w_ref, bias):
            acc = jnp.zeros((C, L), jnp.float32)
            for kh in range(3):
                for kw in range(3):
                    start = F - (W + 1) + kh * W + kw
                    xs = src_ref[:, start:start + L]           # (C, L)
                    if kw == 0:
                        xs = xs * ml
                    elif kw == 2:
                        xs = xs * mr
                    wk = w_ref[3 * kh + kw].astype(jnp.float32)  # (Cout, Cin)
                    acc = acc + jnp.dot(wk, xs,
                                        preferred_element_type=jnp.float32)
            return acc + bias

        h1 = conv3x3(xpad_ref, w1_ref, bias1)
        if negative_slope == 0.0:
            h1 = jnp.maximum(h1, 0.0)
        else:
            h1 = jnp.where(h1 >= 0, h1, negative_slope * h1)
        hpad_ref[:, F:F + L] = h1

        y = conv3x3(hpad_ref, w2_ref, bias2) + x_img
        o_ref[0] = y.astype(o_ref.dtype)

    out_flat = pl.pallas_call(
        kernel,
        out_shape=jax.ShapeDtypeStruct((B, C, L), x.dtype),
        grid_spec=pltpu.PrefetchScalarGridSpec(
            num_scalar_prefetch=0,
            grid=(B,),
            in_specs=[
                pl.BlockSpec((1, C, L), lambda b: (b, 0, 0)),   # x image
                pl.BlockSpec((9, C, C), lambda b: (0, 0, 0)),   # w1 taps
                pl.BlockSpec((C, 1), lambda b: (0, 0)),         # b1
                pl.BlockSpec((9, C, C), lambda b: (0, 0, 0)),   # w2 taps
                pl.BlockSpec((C, 1), lambda b: (0, 0)),         # b2
                pl.BlockSpec((1, L), lambda b: (0, 0)),         # mask left
                pl.BlockSpec((1, L), lambda b: (0, 0)),         # mask right
            ],
            out_specs=pl.BlockSpec((1, C, L), lambda b: (b, 0, 0)),
            scratch_shapes=[
                pltpu.VMEM((C, Lp), jnp.float32),   # padded input image
                pltpu.VMEM((C, Lp), jnp.float32),   # padded conv1 activation
            ],
        ),
        compiler_params=pltpu.CompilerParams(
            dimension_semantics=("parallel",)),
    )(x_flat, w1_taps, b1_col, w2_taps, b2_col, mask_l, mask_r)

    return out_flat.reshape(B, C, H, W)


def _reference(x, w1, b1, w2, b2, negative_slope=0.0):
    dn = ("NCHW", "OIHW", "NCHW")

    def conv(inp, w):
        return jax.lax.conv_general_dilated(
            inp, w, window_strides=(1, 1), padding=((1, 1), (1, 1)),
            dimension_numbers=dn, precision=jax.lax.Precision.HIGHEST)

    y = conv(x, w1) + b1[None, :, None, None]
    y = jnp.maximum(y, negative_slope * y)
    y = conv(y, w2) + b2[None, :, None, None]
    return y + x


if __name__ == "__main__":
    # Small shapes consistent with the module: nf channels, square feature map.
    B, C, H, W = 2, 32, 16, 16

    key = jax.random.PRNGKey(0)
    k1, k2, k3, k4, k5 = jax.random.split(key, 5)
    x = jax.random.normal(k1, (B, C, H, W), dtype=jnp.float32)

    bound = 1.0 / math.sqrt(C * 9)   # PyTorch-style conv init scale
    w1 = jax.random.uniform(k2, (C, C, 3, 3), jnp.float32, -bound, bound)
    b1 = jax.random.uniform(k3, (C,), jnp.float32, -bound, bound)
    w2 = jax.random.uniform(k4, (C, C, 3, 3), jnp.float32, -bound, bound)
    b2 = jax.random.uniform(k5, (C,), jnp.float32, -bound, bound)

    out = residual_block_forward(x, w1, b1, w2, b2, act="relu")
    out = jax.block_until_ready(out)

    ref = _reference(x, w1, b1, w2, b2, negative_slope=0.0)
    assert out.shape == (B, C, H, W)
    max_err = float(jnp.max(jnp.abs(out - ref)))
    assert jnp.allclose(out, ref, atol=5e-3, rtol=5e-3), max_err

    print("KERNEL_OK")
</pallas_src>

<mosaic_0001>
module attributes {stable_mosaic.version = 11 : i64} {
  func.func @kernel(%arg0: i32, %arg1: memref<1x32x256xf32, #tpu.memory_space<vmem>>, %arg2: memref<9x32x32xf32, #tpu.memory_space<vmem>>, %arg3: memref<32x1xf32, #tpu.memory_space<vmem>>, %arg4: memref<9x32x32xf32, #tpu.memory_space<vmem>>, %arg5: memref<32x1xf32, #tpu.memory_space<vmem>>, %arg6: memref<1x256xf32, #tpu.memory_space<vmem>>, %arg7: memref<1x256xf32, #tpu.memory_space<vmem>>, %arg8: memref<1x32x256xf32, #tpu.memory_space<vmem>>, %arg9: memref<32x401xf32, #tpu.memory_space<vmem>>, %arg10: memref<32x401xf32, #tpu.memory_space<vmem>>) attributes {dimension_semantics = [#tpu.dimension_semantics<parallel>], iteration_bounds = array<i64: 2>, scalar_prefetch = 0 : i64, scratch_operands = 2 : i64, tpu.core_type = #tpu.core_type<tc>, window_params = [{transform_indices = @transform_0, window_bounds = array<i64: 1, 32, 256>}, {pipeline_mode = #tpu.pipeline_mode<synchronous>, transform_indices = @transform_1, window_bounds = array<i64: 9, 32, 32>}, {pipeline_mode = #tpu.pipeline_mode<synchronous>, transform_indices = @transform_2, window_bounds = array<i64: 32, 1>}, {pipeline_mode = #tpu.pipeline_mode<synchronous>, transform_indices = @transform_3, window_bounds = array<i64: 9, 32, 32>}, {pipeline_mode = #tpu.pipeline_mode<synchronous>, transform_indices = @transform_4, window_bounds = array<i64: 32, 1>}, {pipeline_mode = #tpu.pipeline_mode<synchronous>, transform_indices = @transform_5, window_bounds = array<i64: 1, 256>}, {pipeline_mode = #tpu.pipeline_mode<synchronous>, transform_indices = @transform_6, window_bounds = array<i64: 1, 256>}, {transform_indices = @transform_7, window_bounds = array<i64: 1, 32, 256>}]} {
    %c0 = arith.constant 0 : index
    %c0_0 = arith.constant 0 : index
    %c0_1 = arith.constant 0 : index
    %0 = vector.load %arg1[%c0, %c0_0, %c0_1] : memref<1x32x256xf32, #tpu.memory_space<vmem>>, vector<1x32x256xf32>
    %1 = vector.shape_cast %0 : vector<1x32x256xf32> to vector<32x256xf32>
    %c0_2 = arith.constant 0 : index
    %c0_3 = arith.constant 0 : index
    %2 = vector.load %arg6[%c0_2, %c0_3] : memref<1x256xf32, #tpu.memory_space<vmem>>, vector<1x256xf32>
    %c0_4 = arith.constant 0 : index
    %c0_5 = arith.constant 0 : index
    %3 = vector.load %arg7[%c0_4, %c0_5] : memref<1x256xf32, #tpu.memory_space<vmem>>, vector<1x256xf32>
    %c0_6 = arith.constant 0 : index
    %c0_7 = arith.constant 0 : index
    %4 = vector.load %arg3[%c0_6, %c0_7] : memref<32x1xf32, #tpu.memory_space<vmem>>, vector<32x1xf32>
    %c0_8 = arith.constant 0 : index
    %c0_9 = arith.constant 0 : index
    %5 = vector.load %arg5[%c0_8, %c0_9] : memref<32x1xf32, #tpu.memory_space<vmem>>, vector<32x1xf32>
    %cst = arith.constant 0.000000e+00 : f32
    %6 = vector.broadcast %cst : f32 to vector<32x401xf32>
    %c0_10 = arith.constant 0 : index
    %c0_11 = arith.constant 0 : index
    %7 = vector.load %arg9[%c0_10, %c0_11] : memref<32x401xf32, #tpu.memory_space<vmem>>, vector<32x401xf32>
    tpu.vector_store %arg9[%c0_10, %c0_11], %6 {strides = array<i32>} : memref<32x401xf32, #tpu.memory_space<vmem>>, vector<32x401xf32>,
    %cst_12 = arith.constant 0.000000e+00 : f32
    %8 = vector.broadcast %cst_12 : f32 to vector<32x401xf32>
    %c0_13 = arith.constant 0 : index
    %c0_14 = arith.constant 0 : index
    %9 = vector.load %arg10[%c0_13, %c0_14] : memref<32x401xf32, #tpu.memory_space<vmem>>, vector<32x401xf32>
    tpu.vector_store %arg10[%c0_13, %c0_14], %8 {strides = array<i32>} : memref<32x401xf32, #tpu.memory_space<vmem>>, vector<32x401xf32>,
    %c0_15 = arith.constant 0 : index
    %c128 = arith.constant 128 : index
    %10 = vector.load %arg9[%c0_15, %c128] : memref<32x401xf32, #tpu.memory_space<vmem>>, vector<32x256xf32>
    tpu.vector_store %arg9[%c0_15, %c128], %1 {strides = array<i32>} : memref<32x401xf32, #tpu.memory_space<vmem>>, vector<32x256xf32>,
    %cst_16 = arith.constant 0.000000e+00 : f32
    %11 = vector.broadcast %cst_16 : f32 to vector<32x256xf32>
    %c0_17 = arith.constant 0 : index
    %c111 = arith.constant 111 : index
    %12 = vector.load %arg9[%c0_17, %c111] : memref<32x401xf32, #tpu.memory_space<vmem>>, vector<32x256xf32>
    %13 = vector.broadcast %2 : vector<1x256xf32> to vector<32x256xf32>
    %14 = arith.mulf %12, %13 : vector<32x256xf32>
    %c0_18 = arith.constant 0 : index
    %c0_19 = arith.constant 0 : index
    %c0_20 = arith.constant 0 : index
    %15 = vector.load %arg2[%c0_18, %c0_19, %c0_20] : memref<9x32x32xf32, #tpu.memory_space<vmem>>, vector<1x32x32xf32>
    %16 = vector.shape_cast %15 : vector<1x32x32xf32> to vector<32x32xf32>
    %cst_21 = arith.constant dense<0.000000e+00> : vector<32x256xf32>
    %17 = tpu.matmul %16, %14, %cst_21 {dimension_numbers = #tpu.dot_dimension_numbers<[1], [0], [0], [1], [0, 0, 1, 1], [], []>} : vector<32x32xf32>, vector<32x256xf32>, vector<32x256xf32> -> vector<32x256xf32>
    %18 = arith.addf %11, %17 : vector<32x256xf32>
    %c0_22 = arith.constant 0 : index
    %c112 = arith.constant 112 : index
    %19 = vector.load %arg9[%c0_22, %c112] : memref<32x401xf32, #tpu.memory_space<vmem>>, vector<32x256xf32>
    %c1 = arith.constant 1 : index
    %c0_23 = arith.constant 0 : index
    %c0_24 = arith.constant 0 : index
    %20 = vector.load %arg2[%c1, %c0_23, %c0_24] : memref<9x32x32xf32, #tpu.memory_space<vmem>>, vector<1x32x32xf32>
    %21 = vector.shape_cast %20 : vector<1x32x32xf32> to vector<32x32xf32>
    %cst_25 = arith.constant dense<0.000000e+00> : vector<32x256xf32>
    %22 = tpu.matmul %21, %19, %cst_25 {dimension_numbers = #tpu.dot_dimension_numbers<[1], [0], [0], [1], [0, 0, 1, 1], [], []>} : vector<32x32xf32>, vector<32x256xf32>, vector<32x256xf32> -> vector<32x256xf32>
    %23 = arith.addf %18, %22 : vector<32x256xf32>
    %c0_26 = arith.constant 0 : index
    %c113 = arith.constant 113 : index
    %24 = vector.load %arg9[%c0_26, %c113] : memref<32x401xf32, #tpu.memory_space<vmem>>, vector<32x256xf32>
    %25 = vector.broadcast %3 : vector<1x256xf32> to vector<32x256xf32>
    %26 = arith.mulf %24, %25 : vector<32x256xf32>
    %c2 = arith.constant 2 : index
    %c0_27 = arith.constant 0 : index
    %c0_28 = arith.constant 0 : index
    %27 = vector.load %arg2[%c2, %c0_27, %c0_28] : memref<9x32x32xf32, #tpu.memory_space<vmem>>, vector<1x32x32xf32>
    %28 = vector.shape_cast %27 : vector<1x32x32xf32> to vector<32x32xf32>
    %cst_29 = arith.constant dense<0.000000e+00> : vector<32x256xf32>
    %29 = tpu.matmul %28, %26, %cst_29 {dimension_numbers = #tpu.dot_dimension_numbers<[1], [0], [0], [1], [0, 0, 1, 1], [], []>} : vector<32x32xf32>, vector<32x256xf32>, vector<32x256xf32> -> vector<32x256xf32>
    %30 = arith.addf %23, %29 : vector<32x256xf32>
    %c0_30 = arith.constant 0 : index
    %c127 = arith.constant 127 : index
    %31 = vector.load %arg9[%c0_30, %c127] : memref<32x401xf32, #tpu.memory_space<vmem>>, vector<32x256xf32>
    %32 = vector.broadcast %2 : vector<1x256xf32> to vector<32x256xf32>
    %33 = arith.mulf %31, %32 : vector<32x256xf32>
    %c3 = arith.constant 3 : index
    %c0_31 = arith.constant 0 : index
    %c0_32 = arith.constant 0 : index
    %34 = vector.load %arg2[%c3, %c0_31, %c0_32] : memref<9x32x32xf32, #tpu.memory_space<vmem>>, vector<1x32x32xf32>
    %35 = vector.shape_cast %34 : vector<1x32x32xf32> to vector<32x32xf32>
    %cst_33 = arith.constant dense<0.000000e+00> : vector<32x256xf32>
    %36 = tpu.matmul %35, %33, %cst_33 {dimension_numbers = #tpu.dot_dimension_numbers<[1], [0], [0], [1], [0, 0, 1, 1], [], []>} : vector<32x32xf32>, vector<32x256xf32>, vector<32x256xf32> -> vector<32x256xf32>
    %37 = arith.addf %30, %36 : vector<32x256xf32>
    %c0_34 = arith.constant 0 : index
    %c128_35 = arith.constant 128 : index
    %38 = vector.load %arg9[%c0_34, %c128_35] : memref<32x401xf32, #tpu.memory_space<vmem>>, vector<32x256xf32>
    %c4 = arith.constant 4 : index
    %c0_36 = arith.constant 0 : index
    %c0_37 = arith.constant 0 : index
    %39 = vector.load %arg2[%c4, %c0_36, %c0_37] : memref<9x32x32xf32, #tpu.memory_space<vmem>>, vector<1x32x32xf32>
    %40 = vector.shape_cast %39 : vector<1x32x32xf32> to vector<32x32xf32>
    %cst_38 = arith.constant dense<0.000000e+00> : vector<32x256xf32>
    %41 = tpu.matmul %40, %38, %cst_38 {dimension_numbers = #tpu.dot_dimension_numbers<[1], [0], [0], [1], [0, 0, 1, 1], [], []>} : vector<32x32xf32>, vector<32x256xf32>, vector<32x256xf32> -> vector<32x256xf32>
    %42 = arith.addf %37, %41 : vector<32x256xf32>
    %c0_39 = arith.constant 0 : index
    %c129 = arith.constant 129 : index
    %43 = vector.load %arg9[%c0_39, %c129] : memref<32x401xf32, #tpu.memory_space<vmem>>, vector<32x256xf32>
    %44 = vector.broadcast %3 : vector<1x256xf32> to vector<32x256xf32>
    %45 = arith.mulf %43, %44 : vector<32x256xf32>
    %c5 = arith.constant 5 : index
    %c0_40 = arith.constant 0 : index
    %c0_41 = arith.constant 0 : index
    %46 = vector.load %arg2[%c5, %c0_40, %c0_41] : memref<9x32x32xf32, #tpu.memory_space<vmem>>, vector<1x32x32xf32>
    %47 = vector.shape_cast %46 : vector<1x32x32xf32> to vector<32x32xf32>
    %cst_42 = arith.constant dense<0.000000e+00> : vector<32x256xf32>
    %48 = tpu.matmul %47, %45, %cst_42 {dimension_numbers = #tpu.dot_dimension_numbers<[1], [0], [0], [1], [0, 0, 1, 1], [], []>} : vector<32x32xf32>, vector<32x256xf32>, vector<32x256xf32> -> vector<32x256xf32>
    %49 = arith.addf %42, %48 : vector<32x256xf32>
    %c0_43 = arith.constant 0 : index
    %c143 = arith.constant 143 : index
    %50 = vector.load %arg9[%c0_43, %c143] : memref<32x401xf32, #tpu.memory_space<vmem>>, vector<32x256xf32>
    %51 = vector.broadcast %2 : vector<1x256xf32> to vector<32x256xf32>
    %52 = arith.mulf %50, %51 : vector<32x256xf32>
    %c6 = arith.constant 6 : index
    %c0_44 = arith.constant 0 : index
    %c0_45 = arith.constant 0 : index
    %53 = vector.load %arg2[%c6, %c0_44, %c0_45] : memref<9x32x32xf32, #tpu.memory_space<vmem>>, vector<1x32x32xf32>
    %54 = vector.shape_cast %53 : vector<1x32x32xf32> to vector<32x32xf32>
    %cst_46 = arith.constant dense<0.000000e+00> : vector<32x256xf32>
    %55 = tpu.matmul %54, %52, %cst_46 {dimension_numbers = #tpu.dot_dimension_numbers<[1], [0], [0], [1], [0, 0, 1, 1], [], []>} : vector<32x32xf32>, vector<32x256xf32>, vector<32x256xf32> -> vector<32x256xf32>
    %56 = arith.addf %49, %55 : vector<32x256xf32>
    %c0_47 = arith.constant 0 : index
    %c144 = arith.constant 144 : index
    %57 = vector.load %arg9[%c0_47, %c144] : memref<32x401xf32, #tpu.memory_space<vmem>>, vector<32x256xf32>
    %c7 = arith.constant 7 : index
    %c0_48 = arith.constant 0 : index
    %c0_49 = arith.constant 0 : index
    %58 = vector.load %arg2[%c7, %c0_48, %c0_49] : memref<9x32x32xf32, #tpu.memory_space<vmem>>, vector<1x32x32xf32>
    %59 = vector.shape_cast %58 : vector<1x32x32xf32> to vector<32x32xf32>
    %cst_50 = arith.constant dense<0.000000e+00> : vector<32x256xf32>
    %60 = tpu.matmul %59, %57, %cst_50 {dimension_numbers = #tpu.dot_dimension_numbers<[1], [0], [0], [1], [0, 0, 1, 1], [], []>} : vector<32x32xf32>, vector<32x256xf32>, vector<32x256xf32> -> vector<32x256xf32>
    %61 = arith.addf %56, %60 : vector<32x256xf32>
    %c0_51 = arith.constant 0 : index
    %c145 = arith.constant 145 : index
    %62 = vector.load %arg9[%c0_51, %c145] : memref<32x401xf32, #tpu.memory_space<vmem>>, vector<32x256xf32>
    %63 = vector.broadcast %3 : vector<1x256xf32> to vector<32x256xf32>
    %64 = arith.mulf %62, %63 : vector<32x256xf32>
    %c8 = arith.constant 8 : index
    %c0_52 = arith.constant 0 : index
    %c0_53 = arith.constant 0 : index
    %65 = vector.load %arg2[%c8, %c0_52, %c0_53] : memref<9x32x32xf32, #tpu.memory_space<vmem>>, vector<1x32x32xf32>
    %66 = vector.shape_cast %65 : vector<1x32x32xf32> to vector<32x32xf32>
    %cst_54 = arith.constant dense<0.000000e+00> : vector<32x256xf32>
    %67 = tpu.matmul %66, %64, %cst_54 {dimension_numbers = #tpu.dot_dimension_numbers<[1], [0], [0], [1], [0, 0, 1, 1], [], []>} : vector<32x32xf32>, vector<32x256xf32>, vector<32x256xf32> -> vector<32x256xf32>
    %68 = arith.addf %61, %67 : vector<32x256xf32>
    %69 = vector.broadcast %4 : vector<32x1xf32> to vector<32x256xf32>
    %70 = arith.addf %68, %69 : vector<32x256xf32>
    %cst_55 = arith.constant 0.000000e+00 : f32
    %71 = vector.broadcast %cst_55 : f32 to vector<32x256xf32>
    %72 = arith.maximumf %70, %71 : vector<32x256xf32>
    %c0_56 = arith.constant 0 : index
    %c128_57 = arith.constant 128 : index
    %73 = vector.load %arg10[%c0_56, %c128_57] : memref<32x401xf32, #tpu.memory_space<vmem>>, vector<32x256xf32>
    tpu.vector_store %arg10[%c0_56, %c128_57], %72 {strides = array<i32>} : memref<32x401xf32, #tpu.memory_space<vmem>>, vector<32x256xf32>,
    %cst_58 = arith.constant 0.000000e+00 : f32
    %74 = vector.broadcast %cst_58 : f32 to vector<32x256xf32>
    %c0_59 = arith.constant 0 : index
    %c111_60 = arith.constant 111 : index
    %75 = vector.load %arg10[%c0_59, %c111_60] : memref<32x401xf32, #tpu.memory_space<vmem>>, vector<32x256xf32>
    %76 = vector.broadcast %2 : vector<1x256xf32> to vector<32x256xf32>
    %77 = arith.mulf %75, %76 : vector<32x256xf32>
    %c0_61 = arith.constant 0 : index
    %c0_62 = arith.constant 0 : index
    %c0_63 = arith.constant 0 : index
    %78 = vector.load %arg4[%c0_61, %c0_62, %c0_63] : memref<9x32x32xf32, #tpu.memory_space<vmem>>, vector<1x32x32xf32>
    %79 = vector.shape_cast %78 : vector<1x32x32xf32> to vector<32x32xf32>
    %cst_64 = arith.constant dense<0.000000e+00> : vector<32x256xf32>
    %80 = tpu.matmul %79, %77, %cst_64 {dimension_numbers = #tpu.dot_dimension_numbers<[1], [0], [0], [1], [0, 0, 1, 1], [], []>} : vector<32x32xf32>, vector<32x256xf32>, vector<32x256xf32> -> vector<32x256xf32>
    %81 = arith.addf %74, %80 : vector<32x256xf32>
    %c0_65 = arith.constant 0 : index
    %c112_66 = arith.constant 112 : index
    %82 = vector.load %arg10[%c0_65, %c112_66] : memref<32x401xf32, #tpu.memory_space<vmem>>, vector<32x256xf32>
    %c1_67 = arith.constant 1 : index
    %c0_68 = arith.constant 0 : index
    %c0_69 = arith.constant 0 : index
    %83 = vector.load %arg4[%c1_67, %c0_68, %c0_69] : memref<9x32x32xf32, #tpu.memory_space<vmem>>, vector<1x32x32xf32>
    %84 = vector.shape_cast %83 : vector<1x32x32xf32> to vector<32x32xf32>
    %cst_70 = arith.constant dense<0.000000e+00> : vector<32x256xf32>
    %85 = tpu.matmul %84, %82, %cst_70 {dimension_numbers = #tpu.dot_dimension_numbers<[1], [0], [0], [1], [0, 0, 1, 1], [], []>} : vector<32x32xf32>, vector<32x256xf32>, vector<32x256xf32> -> vector<32x256xf32>
    %86 = arith.addf %81, %85 : vector<32x256xf32>
    %c0_71 = arith.constant 0 : index
    %c113_72 = arith.constant 113 : index
    %87 = vector.load %arg10[%c0_71, %c113_72] : memref<32x401xf32, #tpu.memory_space<vmem>>, vector<32x256xf32>
    %88 = vector.broadcast %3 : vector<1x256xf32> to vector<32x256xf32>
    %89 = arith.mulf %87, %88 : vector<32x256xf32>
    %c2_73 = arith.constant 2 : index
    %c0_74 = arith.constant 0 : index
    %c0_75 = arith.constant 0 : index
    %90 = vector.load %arg4[%c2_73, %c0_74, %c0_75] : memref<9x32x32xf32, #tpu.memory_space<vmem>>, vector<1x32x32xf32>
    %91 = vector.shape_cast %90 : vector<1x32x32xf32> to vector<32x32xf32>
    %cst_76 = arith.constant dense<0.000000e+00> : vector<32x256xf32>
    %92 = tpu.matmul %91, %89, %cst_76 {dimension_numbers = #tpu.dot_dimension_numbers<[1], [0], [0], [1], [0, 0, 1, 1], [], []>} : vector<32x32xf32>, vector<32x256xf32>, vector<32x256xf32> -> vector<32x256xf32>
    %93 = arith.addf %86, %92 : vector<32x256xf32>
    %c0_77 = arith.constant 0 : index
    %c127_78 = arith.constant 127 : index
    %94 = vector.load %arg10[%c0_77, %c127_78] : memref<32x401xf32, #tpu.memory_space<vmem>>, vector<32x256xf32>
    %95 = vector.broadcast %2 : vector<1x256xf32> to vector<32x256xf32>
    %96 = arith.mulf %94, %95 : vector<32x256xf32>
    %c3_79 = arith.constant 3 : index
    %c0_80 = arith.constant 0 : index
    %c0_81 = arith.constant 0 : index
    %97 = vector.load %arg4[%c3_79, %c0_80, %c0_81] : memref<9x32x32xf32, #tpu.memory_space<vmem>>, vector<1x32x32xf32>
    %98 = vector.shape_cast %97 : vector<1x32x32xf32> to vector<32x32xf32>
    %cst_82 = arith.constant dense<0.000000e+00> : vector<32x256xf32>
    %99 = tpu.matmul %98, %96, %cst_82 {dimension_numbers = #tpu.dot_dimension_numbers<[1], [0], [0], [1], [0, 0, 1, 1], [], []>} : vector<32x32xf32>, vector<32x256xf32>, vector<32x256xf32> -> vector<32x256xf32>
    %100 = arith.addf %93, %99 : vector<32x256xf32>
    %c0_83 = arith.constant 0 : index
    %c128_84 = arith.constant 128 : index
    %101 = vector.load %arg10[%c0_83, %c128_84] : memref<32x401xf32, #tpu.memory_space<vmem>>, vector<32x256xf32>
    %c4_85 = arith.constant 4 : index
    %c0_86 = arith.constant 0 : index
    %c0_87 = arith.constant 0 : index
    %102 = vector.load %arg4[%c4_85, %c0_86, %c0_87] : memref<9x32x32xf32, #tpu.memory_space<vmem>>, vector<1x32x32xf32>
    %103 = vector.shape_cast %102 : vector<1x32x32xf32> to vector<32x32xf32>
    %cst_88 = arith.constant dense<0.000000e+00> : vector<32x256xf32>
    %104 = tpu.matmul %103, %101, %cst_88 {dimension_numbers = #tpu.dot_dimension_numbers<[1], [0], [0], [1], [0, 0, 1, 1], [], []>} : vector<32x32xf32>, vector<32x256xf32>, vector<32x256xf32> -> vector<32x256xf32>
    %105 = arith.addf %100, %104 : vector<32x256xf32>
    %c0_89 = arith.constant 0 : index
    %c129_90 = arith.constant 129 : index
    %106 = vector.load %arg10[%c0_89, %c129_90] : memref<32x401xf32, #tpu.memory_space<vmem>>, vector<32x256xf32>
    %107 = vector.broadcast %3 : vector<1x256xf32> to vector<32x256xf32>
    %108 = arith.mulf %106, %107 : vector<32x256xf32>
    %c5_91 = arith.constant 5 : index
    %c0_92 = arith.constant 0 : index
    %c0_93 = arith.constant 0 : index
    %109 = vector.load %arg4[%c5_91, %c0_92, %c0_93] : memref<9x32x32xf32, #tpu.memory_space<vmem>>, vector<1x32x32xf32>
    %110 = vector.shape_cast %109 : vector<1x32x32xf32> to vector<32x32xf32>
    %cst_94 = arith.constant dense<0.000000e+00> : vector<32x256xf32>
    %111 = tpu.matmul %110, %108, %cst_94 {dimension_numbers = #tpu.dot_dimension_numbers<[1], [0], [0], [1], [0, 0, 1, 1], [], []>} : vector<32x32xf32>, vector<32x256xf32>, vector<32x256xf32> -> vector<32x256xf32>
    %112 = arith.addf %105, %111 : vector<32x256xf32>
    %c0_95 = arith.constant 0 : index
    %c143_96 = arith.constant 143 : index
    %113 = vector.load %arg10[%c0_95, %c143_96] : memref<32x401xf32, #tpu.memory_space<vmem>>, vector<32x256xf32>
    %114 = vector.broadcast %2 : vector<1x256xf32> to vector<32x256xf32>
    %115 = arith.mulf %113, %114 : vector<32x256xf32>
    %c6_97 = arith.constant 6 : index
    %c0_98 = arith.constant 0 : index
    %c0_99 = arith.constant 0 : index
    %116 = vector.load %arg4[%c6_97, %c0_98, %c0_99] : memref<9x32x32xf32, #tpu.memory_space<vmem>>, vector<1x32x32xf32>
    %117 = vector.shape_cast %116 : vector<1x32x32xf32> to vector<32x32xf32>
    %cst_100 = arith.constant dense<0.000000e+00> : vector<32x256xf32>
    %118 = tpu.matmul %117, %115, %cst_100 {dimension_numbers = #tpu.dot_dimension_numbers<[1], [0], [0], [1], [0, 0, 1, 1], [], []>} : vector<32x32xf32>, vector<32x256xf32>, vector<32x256xf32> -> vector<32x256xf32>
    %119 = arith.addf %112, %118 : vector<32x256xf32>
    %c0_101 = arith.constant 0 : index
    %c144_102 = arith.constant 144 : index
    %120 = vector.load %arg10[%c0_101, %c144_102] : memref<32x401xf32, #tpu.memory_space<vmem>>, vector<32x256xf32>
    %c7_103 = arith.constant 7 : index
    %c0_104 = arith.constant 0 : index
    %c0_105 = arith.constant 0 : index
    %121 = vector.load %arg4[%c7_103, %c0_104, %c0_105] : memref<9x32x32xf32, #tpu.memory_space<vmem>>, vector<1x32x32xf32>
    %122 = vector.shape_cast %121 : vector<1x32x32xf32> to vector<32x32xf32>
    %cst_106 = arith.constant dense<0.000000e+00> : vector<32x256xf32>
    %123 = tpu.matmul %122, %120, %cst_106 {dimension_numbers = #tpu.dot_dimension_numbers<[1], [0], [0], [1], [0, 0, 1, 1], [], []>} : vector<32x32xf32>, vector<32x256xf32>, vector<32x256xf32> -> vector<32x256xf32>
    %124 = arith.addf %119, %123 : vector<32x256xf32>
    %c0_107 = arith.constant 0 : index
    %c145_108 = arith.constant 145 : index
    %125 = vector.load %arg10[%c0_107, %c145_108] : memref<32x401xf32, #tpu.memory_space<vmem>>, vector<32x256xf32>
    %126 = vector.broadcast %3 : vector<1x256xf32> to vector<32x256xf32>
    %127 = arith.mulf %125, %126 : vector<32x256xf32>
    %c8_109 = arith.constant 8 : index
    %c0_110 = arith.constant 0 : index
    %c0_111 = arith.constant 0 : index
    %128 = vector.load %arg4[%c8_109, %c0_110, %c0_111] : memref<9x32x32xf32, #tpu.memory_space<vmem>>, vector<1x32x32xf32>
    %129 = vector.shape_cast %128 : vector<1x32x32xf32> to vector<32x32xf32>
    %cst_112 = arith.constant dense<0.000000e+00> : vector<32x256xf32>
    %130 = tpu.matmul %129, %127, %cst_112 {dimension_numbers = #tpu.dot_dimension_numbers<[1], [0], [0], [1], [0, 0, 1, 1], [], []>} : vector<32x32xf32>, vector<32x256xf32>, vector<32x256xf32> -> vector<32x256xf32>
    %131 = arith.addf %124, %130 : vector<32x256xf32>
    %132 = vector.broadcast %5 : vector<32x1xf32> to vector<32x256xf32>
    %133 = arith.addf %131, %132 : vector<32x256xf32>
    %134 = arith.addf %133, %1 : vector<32x256xf32>
    %c0_113 = arith.constant 0 : index
    %c0_114 = arith.constant 0 : index
    %c0_115 = arith.constant 0 : index
    %135 = vector.load %arg8[%c0_113, %c0_114, %c0_115] : memref<1x32x256xf32, #tpu.memory_space<vmem>>, vector<1x32x256xf32>
    %136 = vector.shape_cast %135 : vector<1x32x256xf32> to vector<32x256xf32>
    %137 = vector.shape_cast %134 : vector<32x256xf32> to vector<1x32x256xf32>
    tpu.vector_store %arg8[%c0_113, %c0_114, %c0_115], %137 {strides = array<i32>} : memref<1x32x256xf32, #tpu.memory_space<vmem>>, vector<1x32x256xf32>,
    return
  }
  func.func @transform_0(%arg0: i32) -> (i32, i32, i32) {
    %c0_i32 = arith.constant 0 : i32
    %c0_i32_0 = arith.constant 0 : i32
    %c0_i32_1 = arith.constant 0 : i32
    return %arg0, %c0_i32, %c0_i32_0 : i32, i32, i32
  }
  func.func @transform_1(%arg0: i32) -> (i32, i32, i32) {
    %c0_i32 = arith.constant 0 : i32
    %c0_i32_0 = arith.constant 0 : i32
    %c0_i32_1 = arith.constant 0 : i32
    %c0_i32_2 = arith.constant 0 : i32
    return %c0_i32, %c0_i32_0, %c0_i32_1 : i32, i32, i32
  }
  func.func @transform_2(%arg0: i32) -> (i32, i32) {
    %c0_i32 = arith.constant 0 : i32
    %c0_i32_0 = arith.constant 0 : i32
    %c0_i32_1 = arith.constant 0 : i32
    return %c0_i32, %c0_i32_0 : i32, i32
  }
  func.func @transform_3(%arg0: i32) -> (i32, i32, i32) {
    %c0_i32 = arith.constant 0 : i32
    %c0_i32_0 = arith.constant 0 : i32
    %c0_i32_1 = arith.constant 0 : i32
    %c0_i32_2 = arith.constant 0 : i32
    return %c0_i32, %c0_i32_0, %c0_i32_1 : i32, i32, i32
  }
  func.func @transform_4(%arg0: i32) -> (i32, i32) {
    %c0_i32 = arith.constant 0 : i32
    %c0_i32_0 = arith.constant 0 : i32
    %c0_i32_1 = arith.constant 0 : i32
    return %c0_i32, %c0_i32_0 : i32, i32
  }
  func.func @transform_5(%arg0: i32) -> (i32, i32) {
    %c0_i32 = arith.constant 0 : i32
    %c0_i32_0 = arith.constant 0 : i32
    %c0_i32_1 = arith.constant 0 : i32
    return %c0_i32, %c0_i32_0 : i32, i32
  }
  func.func @transform_6(%arg0: i32) -> (i32, i32) {
    %c0_i32 = arith.constant 0 : i32
    %c0_i32_0 = arith.constant 0 : i32
    %c0_i32_1 = arith.constant 0 : i32
    return %c0_i32, %c0_i32_0 : i32, i32
  }
  func.func @transform_7(%arg0: i32) -> (i32, i32, i32) {
    %c0_i32 = arith.constant 0 : i32
    %c0_i32_0 = arith.constant 0 : i32
    %c0_i32_1 = arith.constant 0 : i32
    return %arg0, %c0_i32, %c0_i32_0 : i32, i32, i32
  }
}

</mosaic_0001>

<llo_original>
// kernel: tpu_custom_call.1
$region0: #{tpu_custom_call.1}
  #allocation0 [shape = 'u32[]', space=smem, size = 0x4, offset = 0x4, fixed_abs, tag = 'smem constant byte address 0x4 - core index']
  #allocation1 [shape = 'u32[144,128]{1,0:T(1,128)}', space=vmem, size = 0x12000, scoped, tag = 'internal scratch']
  #allocation2 [shape = 'f32[32,401]{1,0:T(8,128)}', space=vmem, size = 0x10000, scoped, tag = 'scratch operand']
  #allocation3 [shape = 'f32[32,401]{1,0:T(8,128)}', space=vmem, size = 0x10000, scoped, tag = 'scratch operand']
  %s0 = inlined_call_operand.hbm [shape: f32[2,32,256], index: 0, kind: input, shape index: {}]
  %s1 = inlined_call_operand.hbm [shape: f32[9,32,32], index: 1, kind: input, shape index: {}]
  %s2 = inlined_call_operand.vmem [shape: f32[32,1], index: 2, kind: input, shape index: {}]
  %s3 = inlined_call_operand.hbm [shape: f32[9,32,32], index: 3, kind: input, shape index: {}]
  %s4 = inlined_call_operand.vmem [shape: f32[32,1], index: 4, kind: input, shape index: {}]
  %s5 = inlined_call_operand.vmem [shape: f32[1,256], index: 5, kind: input, shape index: {}]
  %s6 = inlined_call_operand.vmem [shape: f32[1,256], index: 6, kind: input, shape index: {}]
  %s7 = inlined_call_operand.hbm [shape: f32[2,32,256], index: 7, kind: output, shape index: {}]
  %s8 = sld [smem:[#allocation0]]
  $region73: #{tpu_custom_call.1} parent=0
    _
  %s10 = ssub.s32 1, %s8
  %s11 = scalar_select 0, %s10, %s8
  $region1: #{tpu_custom_call.1} parent=0
    #allocation4 [shape = 'u8[65536]{0}', space=vmem, size = 0x10000, scoped, tag = 'input window, operand 0']
    #allocation5 [shape = 's32[2]{0}', space=sflag, size = 0x8, scoped, tag = 'scoped memory for tpu_custom_call.1']
    #allocation6 [shape = 's32[2]{0}', space=sflag, size = 0x8, scoped, tag = 'scoped memory for tpu_custom_call.1']
    #allocation7 [shape = 'u8[147456]{0}', space=vmem, size = 0x24000, scoped, tag = 'input window, operand 1, single buffered']
    #allocation8 [shape = 's32[1]{0}', space=sflag, size = 0x4, scoped, tag = 'scoped memory for tpu_custom_call.1']
    #allocation9 [shape = 'u8[147456]{0}', space=vmem, size = 0x24000, scoped, tag = 'input window, operand 3, single buffered']
    #allocation10 [shape = 'u8[65536]{0}', space=vmem, size = 0x10000, scoped, tag = 'output window, operand 0']
    %12 = vsyncpa [#allocation5], 0
    %s13 = scalar_lea.sflag [#allocation5], 1
    %14 = vsyncpa %s13, 0
    %15 = vsyncpa [#allocation8], 0
    %16 = vsyncpa [#allocation6], 0
    %s17 = scalar_lea.sflag [#allocation6], 1
    %18 = vsyncpa %s17, 0
    loop: start=0, step=1, limit=4
    $region2: #{tpu_custom_call.1} parent=1 // loop_pre_header
      _
    $region3: #{tpu_custom_call.1} parent=1 // loop_header
      %s20 = sphi 0, %s24
      %p21 = scmp.ge.s32.totalorder %s20, 4
      %s30 = sphi 0, %s32
      %s33 = sphi 0, %s30
      %s34 = sphi 0, %s33
      %s50 = sphi 0, %s34
      %s54 = sphi 0, %s54
      %s56 = sphi 0, %s54
      %s57 = sphi 0, %s56
      %s71 = sphi 0, %s57
      %s75 = sphi 0, %s75
      %s77 = sphi 0, %s75
      %s78 = sphi 0, %s77
      %s92 = sphi 0, %s78
      %s96 = sphi 0, %s96
      %s98 = sphi 0, %s96
      %s99 = sphi 0, %s98
      %s113 = sphi 0, %s99
      %s117 = sphi 0, %s117
      %s119 = sphi 0, %s117
      %s120 = sphi 0, %s119
      %s134 = sphi 0, %s120
      %s138 = sphi 0, %s138
      %s140 = sphi 0, %s138
      %s141 = sphi 0, %s140
      %s155 = sphi 0, %s141
      %s159 = sphi 0, %s159
      %s161 = sphi 0, %s159
      %s162 = sphi 0, %s161
      %s176 = sphi 0, %s162
      %s182 = sphi 0, %s184
      %s185 = sphi 0, %s182
      %s186 = sphi 0, %s185
      %s202 = sphi 0, %s186
    $region4: #{tpu_custom_call.1} parent=1 // loop_header_branch
      %23 = sbr.rel (%p21) target = $region8
    $region5: #{tpu_custom_call.1} parent=1 // loop_body
      %s25 = ssub.s32 %s20, 1
      %s26 = ssub.s32 %s20, 2
      %s27 = sadd.s32 %s20, 1
      %s28 = ssub.s32 %s20, %s27
      %p29 = scmp.eq.s32.totalorder %s28, 0
      %s31 = sadd.s32 %s30, 1
      %s32 = scalar_select %p29, %s30, %s31
      %p35 = pneg %p29
      %p36 = scmp.eq.s32.totalorder %s20, 1
      %p37 = por %p35, %p36
      %p38 = scmp.ne.s32.totalorder %s30, %s33
      %p39 = scmp.eq.s32.totalorder %s20, 0
      %p40 = por %p38, %p39
      %p41 = scmp.ne.s32.totalorder %s30, %s33
      %p42 = scmp.eq.s32.totalorder %s25, 1
      %p43 = por %p41, %p42
      %p44 = scmp.ne.s32.totalorder %s33, %s34
      %p45 = scmp.eq.s32.totalorder %s25, 0
      %p46 = por %p44, %p45
      %p47 = scmp.ne.s32.totalorder %s33, %s34
      %p48 = scmp.eq.s32.totalorder %s26, 1
      %p49 = por %p47, %p48
      %p51 = scmp.ne.s32.totalorder %s34, %s50
      %p52 = scmp.eq.s32.totalorder %s26, 0
      %p53 = por %p51, %p52
      %s55 = sadd.s32 %s54, 1
      %p58 = scmp.eq.s32.totalorder %s20, 1
      %p59 = scmp.ne.s32.totalorder %s54, %s56
      %p60 = scmp.eq.s32.totalorder %s20, 0
      %p61 = por %p59, %p60
      %p62 = scmp.ne.s32.totalorder %s54, %s56
      %p63 = scmp.eq.s32.totalorder %s25, 1
      %p64 = por %p62, %p63
      %p65 = scmp.ne.s32.totalorder %s56, %s57
      %p66 = scmp.eq.s32.totalorder %s25, 0
      %p67 = por %p65, %p66
      %p68 = scmp.ne.s32.totalorder %s56, %s57
      %p69 = scmp.eq.s32.totalorder %s26, 1
      %p70 = por %p68, %p69
      %p72 = scmp.ne.s32.totalorder %s57, %s71
      %p73 = scmp.eq.s32.totalorder %s26, 0
      %p74 = por %p72, %p73
      %s76 = sadd.s32 %s75, 1
      %p79 = scmp.eq.s32.totalorder %s20, 1
      %p80 = scmp.ne.s32.totalorder %s75, %s77
      %p81 = scmp.eq.s32.totalorder %s20, 0
      %p82 = por %p80, %p81
      %p83 = scmp.ne.s32.totalorder %s75, %s77
      %p84 = scmp.eq.s32.totalorder %s25, 1
      %p85 = por %p83, %p84
      %p86 = scmp.ne.s32.totalorder %s77, %s78
      %p87 = scmp.eq.s32.totalorder %s25, 0
      %p88 = por %p86, %p87
      %p89 = scmp.ne.s32.totalorder %s77, %s78
      %p90 = scmp.eq.s32.totalorder %s26, 1
      %p91 = por %p89, %p90
      %p93 = scmp.ne.s32.totalorder %s78, %s92
      %p94 = scmp.eq.s32.totalorder %s26, 0
      %p95 = por %p93, %p94
      %s97 = sadd.s32 %s96, 1
      %p100 = scmp.eq.s32.totalorder %s20, 1
      %p101 = scmp.ne.s32.totalorder %s96, %s98
      %p102 = scmp.eq.s32.totalorder %s20, 0
      %p103 = por %p101, %p102
      %p104 = scmp.ne.s32.totalorder %s96, %s98
      %p105 = scmp.eq.s32.totalorder %s25, 1
      %p106 = por %p104, %p105
      %p107 = scmp.ne.s32.totalorder %s98, %s99
      %p108 = scmp.eq.s32.totalorder %s25, 0
      %p109 = por %p107, %p108
      %p110 = scmp.ne.s32.totalorder %s98, %s99
      %p111 = scmp.eq.s32.totalorder %s26, 1
      %p112 = por %p110, %p111
      %p114 = scmp.ne.s32.totalorder %s99, %s113
      %p115 = scmp.eq.s32.totalorder %s26, 0
      %p116 = por %p114, %p115
      %s118 = sadd.s32 %s117, 1
      %p121 = scmp.eq.s32.totalorder %s20, 1
      %p122 = scmp.ne.s32.totalorder %s117, %s119
      %p123 = scmp.eq.s32.totalorder %s20, 0
      %p124 = por %p122, %p123
      %p125 = scmp.ne.s32.totalorder %s117, %s119
      %p126 = scmp.eq.s32.totalorder %s25, 1
      %p127 = por %p125, %p126
      %p128 = scmp.ne.s32.totalorder %s119, %s120
      %p129 = scmp.eq.s32.totalorder %s25, 0
      %p130 = por %p128, %p129
      %p131 = scmp.ne.s32.totalorder %s119, %s120
      %p132 = scmp.eq.s32.totalorder %s26, 1
      %p133 = por %p131, %p132
      %p135 = scmp.ne.s32.totalorder %s120, %s134
      %p136 = scmp.eq.s32.totalorder %s26, 0
      %p137 = por %p135, %p136
      %s139 = sadd.s32 %s138, 1
      %p142 = scmp.eq.s32.totalorder %s20, 1
      %p143 = scmp.ne.s32.totalorder %s138, %s140
      %p144 = scmp.eq.s32.totalorder %s20, 0
      %p145 = por %p143, %p144
      %p146 = scmp.ne.s32.totalorder %s138, %s140
      %p147 = scmp.eq.s32.totalorder %s25, 1
      %p148 = por %p146, %p147
      %p149 = scmp.ne.s32.totalorder %s140, %s141
      %p150 = scmp.eq.s32.totalorder %s25, 0
      %p151 = por %p149, %p150
      %p152 = scmp.ne.s32.totalorder %s140, %s141
      %p153 = scmp.eq.s32.totalorder %s26, 1
      %p154 = por %p152, %p153
      %p156 = scmp.ne.s32.totalorder %s141, %s155
      %p157 = scmp.eq.s32.totalorder %s26, 0
      %p158 = por %p156, %p157
      %s160 = sadd.s32 %s159, 1
      %p163 = scmp.eq.s32.totalorder %s20, 1
      %p164 = scmp.ne.s32.totalorder %s159, %s161
      %p165 = scmp.eq.s32.totalorder %s20, 0
      %p166 = por %p164, %p165
      %p167 = scmp.ne.s32.totalorder %s159, %s161
      %p168 = scmp.eq.s32.totalorder %s25, 1
      %p169 = por %p167, %p168
      %p170 = scmp.ne.s32.totalorder %s161, %s162
      %p171 = scmp.eq.s32.totalorder %s25, 0
      %p172 = por %p170, %p171
      %p173 = scmp.ne.s32.totalorder %s161, %s162
      %p174 = scmp.eq.s32.totalorder %s26, 1
      %p175 = por %p173, %p174
      %p177 = scmp.ne.s32.totalorder %s162, %s176
      %p178 = scmp.eq.s32.totalorder %s26, 0
      %p179 = por %p177, %p178
      %s180 = ssub.s32 %s20, %s27
      %p181 = scmp.eq.s32.totalorder %s180, 0
      %s183 = sadd.s32 %s182, 1
      %s184 = scalar_select %p181, %s182, %s183
      %p187 = pneg %p181
      %p188 = scmp.eq.s32.totalorder %s20, 1
      %p189 = por %p187, %p188
      %p190 = scmp.ne.s32.totalorder %s182, %s185
      %p191 = scmp.eq.s32.totalorder %s20, 0
      %p192 = por %p190, %p191
      %p193 = scmp.ne.s32.totalorder %s182, %s185
      %p194 = scmp.eq.s32.totalorder %s25, 1
      %p195 = por %p193, %p194
      %p196 = scmp.ne.s32.totalorder %s185, %s186
      %p197 = scmp.eq.s32.totalorder %s25, 0
      %p198 = por %p196, %p197
      %p199 = scmp.ne.s32.totalorder %s185, %s186
      %p200 = scmp.eq.s32.totalorder %s26, 1
      %p201 = por %p199, %p200
      %p203 = scmp.ne.s32.totalorder %s186, %s202
      %p204 = scmp.eq.s32.totalorder %s26, 0
      %p205 = por %p203, %p204
      %p206 = scmp.le.s32.totalorder 1, %s20
      %p207 = scmp.lt.s32.totalorder %s20, 3
      %p208 = pnand %p206, %p207
      %p209 = pneg %p208
      // Predicated region
      $region9: #{tpu_custom_call.1} parent=5 // pred_check
        _
      $region10: #{tpu_custom_call.1} parent=5 // pred_check_branch
        %211 = sbr.rel (%p208) target = $region12
      $region11: #{tpu_custom_call.1} parent=5 // pred_region
        %s212 = ssub.s32 %s20, 1
        // Predicated region
        $region13: #{tpu_custom_call.1} parent=11 // pred_check
          %p213 = pneg %p67
        $region14: #{tpu_custom_call.1} parent=11 // pred_check_branch
          %215 = sbr.rel (%p213) target = $region16
        $region15: #{tpu_custom_call.1} parent=11 // pred_region
          %s217 = ssub.s32 4608, 4608
          %218 = vsyncadd [#allocation8], %s217
          %s219 = sshll.u32 [#allocation7], 4
          %s220 = int_to_ptr.vmem [resolvable:$true] %s219
          %225 = dma.hbm_to_vmem [thread:$0]  %s1, 4608, %s220, [#allocation8], 128, 128, 8
        $region16: #{tpu_custom_call.1} parent=11 // pred_fallthru
          _
        // Predicated region
        $region17: #{tpu_custom_call.1} parent=11 // pred_check
          %p226 = pneg %p88
        $region18: #{tpu_custom_call.1} parent=11 // pred_check_branch
          %228 = sbr.rel (%p226) target = $region20
        $region19: #{tpu_custom_call.1} parent=11 // pred_region
          _
        $region20: #{tpu_custom_call.1} parent=11 // pred_fallthru
          _
        // Predicated region
        $region21: #{tpu_custom_call.1} parent=11 // pred_check
          %p229 = pneg %p109
        $region22: #{tpu_custom_call.1} parent=11 // pred_check_branch
          %231 = sbr.rel (%p229) target = $region24
        $region23: #{tpu_custom_call.1} parent=11 // pred_region
          %s233 = ssub.s32 4608, 4608
          %234 = vsyncadd [#allocation8], %s233
          %s235 = sshll.u32 [#allocation9], 4
          %s236 = int_to_ptr.vmem [resolvable:$true] %s235
          %241 = dma.hbm_to_vmem [thread:$0]  %s3, 4608, %s236, [#allocation8], 128, 128, 8
        $region24: #{tpu_custom_call.1} parent=11 // pred_fallthru
          _
        // Predicated region
        $region25: #{tpu_custom_call.1} parent=11 // pred_check
          %p242 = pneg %p130
        $region26: #{tpu_custom_call.1} parent=11 // pred_check_branch
          %244 = sbr.rel (%p242) target = $region28
        $region27: #{tpu_custom_call.1} parent=11 // pred_region
          _
        $region28: #{tpu_custom_call.1} parent=11 // pred_fallthru
          _
        // Predicated region
        $region29: #{tpu_custom_call.1} parent=11 // pred_check
          %p245 = pneg %p151
        $region30: #{tpu_custom_call.1} parent=11 // pred_check_branch
          %247 = sbr.rel (%p245) target = $region32
        $region31: #{tpu_custom_call.1} parent=11 // pred_region
          _
        $region32: #{tpu_custom_call.1} parent=11 // pred_fallthru
          _
        // Predicated region
        $region33: #{tpu_custom_call.1} parent=11 // pred_check
          %p248 = pneg %p172
        $region34: #{tpu_custom_call.1} parent=11 // pred_check_branch
          %250 = sbr.rel (%p248) target = $region36
        $region35: #{tpu_custom_call.1} parent=11 // pred_region
          _
        $region36: #{tpu_custom_call.1} parent=11 // pred_fallthru
          _
      $region12: #{tpu_custom_call.1} parent=5 // pred_fallthru
        _
      %p251 = scmp.lt.s32.totalorder %s20, 2
      // Predicated region
      $region37: #{tpu_custom_call.1} parent=5 // pred_check
        %p252 = pneg %p251
      $region38: #{tpu_custom_call.1} parent=5 // pred_check_branch
        %254 = sbr.rel (%p252) target = $region40
      $region39: #{tpu_custom_call.1} parent=5 // pred_region
        // Predicated region
        $region41: #{tpu_custom_call.1} parent=39 // pred_check
          %p255 = pneg %p40
        $region42: #{tpu_custom_call.1} parent=39 // pred_check_branch
          %257 = sbr.rel (%p255) target = $region44
        $region43: #{tpu_custom_call.1} parent=39 // pred_region
          %s258 = sand.u32 %s30, 1
          %s259 = scalar_lea.sflag [#allocation5], %s258
          %s260 = sand.u32 %s30, 1
          %s261 = smul.addr %s260, 64
          %s262 = scalar_lea.vmem [#allocation4], %s261
          %s264 = ssub.s32 1024, 1024
          %265 = vsyncadd %s259, %s264
          %s266 = smul.addr %s20, 8
          %s267 = smul.addr %s266, 128
          %s268 = scalar_lea.hbm %s0, %s267
          %s269 = sshll.u32 %s262, 4
          %s270 = int_to_ptr.vmem [resolvable:$true] %s269
          %275 = dma.hbm_to_vmem [thread:$0]  %s268, 1024, %s270, %s259, 256, 256, 16
        $region44: #{tpu_custom_call.1} parent=39 // pred_fallthru
          _
      $region40: #{tpu_custom_call.1} parent=5 // pred_fallthru
        _
      %p276 = scmp.le.s32.totalorder 1, %s20
      %p277 = scmp.lt.s32.totalorder %s20, 3
      %p278 = pnand %p276, %p277
      %p279 = pneg %p278
      // Predicated region
      $region45: #{tpu_custom_call.1} parent=5 // pred_check
        _
      $region46: #{tpu_custom_call.1} parent=5 // pred_check_branch
        %281 = sbr.rel (%p278) target = $region48
      $region47: #{tpu_custom_call.1} parent=5 // pred_region
        %s282 = ssub.s32 %s20, 1
        %s283 = sand.u32 %s33, 1
        %s284 = scalar_lea.sflag [#allocation5], %s283
        %s285 = sand.u32 %s33, 1
        %s286 = smul.addr %s285, 64
        %s287 = scalar_lea.vmem [#allocation4], %s286
        // Predicated region
        $region49: #{tpu_custom_call.1} parent=47 // pred_check
          %p288 = pneg %p46
        $region50: #{tpu_custom_call.1} parent=47 // pred_check_branch
          %290 = sbr.rel (%p288) target = $region52
        $region51: #{tpu_custom_call.1} parent=47 // pred_region
          %291 = dma.done %s284, 1024
        $region52: #{tpu_custom_call.1} parent=47 // pred_fallthru
          _
        // Predicated region
        $region53: #{tpu_custom_call.1} parent=47 // pred_check
          %p292 = pneg %p67
        $region54: #{tpu_custom_call.1} parent=47 // pred_check_branch
          %294 = sbr.rel (%p292) target = $region56
        $region55: #{tpu_custom_call.1} parent=47 // pred_region
          %295 = dma.done [#allocation8], 4608
        $region56: #{tpu_custom_call.1} parent=47 // pred_fallthru
          _
        // Predicated region
        $region57: #{tpu_custom_call.1} parent=47 // pred_check
          %p296 = pneg %p109
        $region58: #{tpu_custom_call.1} parent=47 // pred_check_branch
          %298 = sbr.rel (%p296) target = $region60
        $region59: #{tpu_custom_call.1} parent=47 // pred_region
          %299 = dma.done [#allocation8], 4608
        $region60: #{tpu_custom_call.1} parent=47 // pred_fallthru
          _
        %s300 = sand.u32 %s33, 1
        %s301 = scalar_lea.sflag [#allocation5], %s300
        %s302 = sand.u32 %s33, 1
        %s303 = smul.addr %s302, 64
        %s304 = scalar_lea.vmem [#allocation4], %s303
        %p305 = pneg %p46
        %p306 = pneg %p43
        %p307 = pneg %p67
        %p308 = pneg %p64
        %p309 = pneg %p88
        %p310 = pneg %p85
        %p311 = pneg %p109
        %p312 = pneg %p106
        %p313 = pneg %p130
        %p314 = pneg %p127
        %p315 = pneg %p151
        %p316 = pneg %p148
        %p317 = pneg %p172
        %p318 = pneg %p169
        %p319 = pneg %p198
        %p320 = pneg %p195
        %s321 = sand.u32 %s185, 1
        %s322 = scalar_lea.sflag [#allocation6], %s321
        %s323 = sand.u32 %s185, 1
        %s324 = smul.addr %s323, 64
        %s325 = scalar_lea.vmem [#allocation10], %s324
        %v326 = vld [vmem:[%s287] sm:$0xff]
        %v327 = vld [vmem:[%s287 + $0x8] sm:$0xff]
        %v328 = vld [vmem:[%s287 + $0x10] sm:$0xff]
        %v329 = vld [vmem:[%s287 + $0x18] sm:$0xff]
        %v330 = vld [vmem:[%s287 + $0x20] sm:$0xff]
        %v331 = vld [vmem:[%s287 + $0x28] sm:$0xff]
        %v332 = vld [vmem:[%s287 + $0x30] sm:$0xff]
        %v333 = vld [vmem:[%s287 + $0x38] sm:$0xff]
        %v334 = vld [vmem:[%s5] sm:$0x3]
        %v335 = vld [vmem:[%s6] sm:$0x3]
        %v336 = vld [vmem:[%s2] sm:$0xff]
        %v337 = vld [vmem:[%s2 + $0x8] sm:$0xff]
        %v338 = vld [vmem:[%s2 + $0x10] sm:$0xff]
        %v339 = vld [vmem:[%s2 + $0x18] sm:$0xff]
        %v340 = vld [vmem:[%s4] sm:$0xff]
        %v341 = vld [vmem:[%s4 + $0x8] sm:$0xff]
        %v342 = vld [vmem:[%s4 + $0x10] sm:$0xff]
        %v343 = vld [vmem:[%s4 + $0x18] sm:$0xff]
        %344 = vst [vmem:[#allocation2] sm:$0xff] 0.0
        %345 = vst [vmem:[#allocation2 + $0x8] sm:$0xff] 0.0
        %346 = vst [vmem:[#allocation2 + $0x10] sm:$0xff] 0.0
        %vm347 = vcmask 138240
        %348 = vst.msk [vmem:[#allocation2 + $0x18] sm:$0xff] %vm347, 0.0
        %349 = vst [vmem:[#allocation2 + $0x20] sm:$0xff] 0.0
        %350 = vst [vmem:[#allocation2 + $0x28] sm:$0xff] 0.0
        %351 = vst [vmem:[#allocation2 + $0x30] sm:$0xff] 0.0
        %352 = vst.msk [vmem:[#allocation2 + $0x38] sm:$0xff] %vm347, 0.0
        %353 = vst [vmem:[#allocation2 + $0x40] sm:$0xff] 0.0
        %354 = vst [vmem:[#allocation2 + $0x48] sm:$0xff] 0.0
        %355 = vst [vmem:[#allocation2 + $0x50] sm:$0xff] 0.0
        %356 = vst.msk [vmem:[#allocation2 + $0x58] sm:$0xff] %vm347, 0.0
        %357 = vst [vmem:[#allocation2 + $0x60] sm:$0xff] 0.0
        %358 = vst [vmem:[#allocation2 + $0x68] sm:$0xff] 0.0
        %359 = vst [vmem:[#allocation2 + $0x70] sm:$0xff] 0.0
        %360 = vst.msk [vmem:[#allocation2 + $0x78] sm:$0xff] %vm347, 0.0
        %361 = vst [vmem:[#allocation3] sm:$0xff] 0.0
        %362 = vst [vmem:[#allocation3 + $0x8] sm:$0xff] 0.0
        %363 = vst [vmem:[#allocation3 + $0x10] sm:$0xff] 0.0
        %364 = vst.msk [vmem:[#allocation3 + $0x18] sm:$0xff] %vm347, 0.0
        %365 = vst [vmem:[#allocation3 + $0x20] sm:$0xff] 0.0
        %366 = vst [vmem:[#allocation3 + $0x28] sm:$0xff] 0.0
        %367 = vst [vmem:[#allocation3 + $0x30] sm:$0xff] 0.0
        %368 = vst.msk [vmem:[#allocation3 + $0x38] sm:$0xff] %vm347, 0.0
        %369 = vst [vmem:[#allocation3 + $0x40] sm:$0xff] 0.0
        %370 = vst [vmem:[#allocation3 + $0x48] sm:$0xff] 0.0
        %371 = vst [vmem:[#allocation3 + $0x50] sm:$0xff] 0.0
        %372 = vst.msk [vmem:[#allocation3 + $0x58] sm:$0xff] %vm347, 0.0
        %373 = vst [vmem:[#allocation3 + $0x60] sm:$0xff] 0.0
        %374 = vst [vmem:[#allocation3 + $0x68] sm:$0xff] 0.0
        %375 = vst [vmem:[#allocation3 + $0x70] sm:$0xff] 0.0
        %376 = vst.msk [vmem:[#allocation3 + $0x78] sm:$0xff] %vm347, 0.0
        %377 = vst [vmem:[#allocation2 + $0x8] sm:$0xff] %v326
        %378 = vst [vmem:[#allocation2 + $0x10] sm:$0xff] %v327
        %379 = vst [vmem:[#allocation2 + $0x28] sm:$0xff] %v328
        %380 = vst [vmem:[#allocation2 + $0x30] sm:$0xff] %v329
        %381 = vst [vmem:[#allocation2 + $0x48] sm:$0xff] %v330
        %382 = vst [vmem:[#allocation2 + $0x50] sm:$0xff] %v331
        %383 = vst [vmem:[#allocation2 + $0x68] sm:$0xff] %v332
        %384 = vst [vmem:[#allocation2 + $0x70] sm:$0xff] %v333
        %v385 = vld [vmem:[#allocation2] sm:$0xff]
        %v386 = vld [vmem:[#allocation2 + $0x8] sm:$0xff]
        %v387 = vld [vmem:[#allocation2 + $0x10] sm:$0xff]
        %v388 = vld [vmem:[#allocation2 + $0x20] sm:$0xff]
        %v389 = vld [vmem:[#allocation2 + $0x28] sm:$0xff]
        %v390 = vld [vmem:[#allocation2 + $0x30] sm:$0xff]
        %v391 = vld [vmem:[#allocation2 + $0x40] sm:$0xff]
        %v392 = vld [vmem:[#allocation2 + $0x48] sm:$0xff]
        %v393 = vld [vmem:[#allocation2 + $0x50] sm:$0xff]
        %v394 = vld [vmem:[#allocation2 + $0x60] sm:$0xff]
        %v395 = vld [vmem:[#allocation2 + $0x68] sm:$0xff]
        %v396 = vld [vmem:[#allocation2 + $0x70] sm:$0xff]
        %v398 = vlaneseq
        %v399 = vshrl.u32 %v398, 7
        %v400 = vsub.s32 0, %v399
        %v401 = vrot.slane %v334, %v400
        %v402 = vlaneseq
        %v403 = vshrl.u32 %v402, 7
        %v404 = vsub.s32 1, %v403
        %v405 = vrot.slane %v334, %v404
        %406 = vrot.lane.b32.xlu0 %v401, 111
        %v407 = vpop.permute.xlu0 %406
        %408 = vrot.lane.b32.xlu0 %v405, 111
        %v409 = vpop.permute.xlu0 %408
        %vm410 = vcmask 908288
        %v411 = vsel %vm410, %v407, %v409
        %v415 = vmul.f32 %v385, %v407
        %v416 = vmul.f32 %v386, %v411
        %v417 = vmul.f32 %v387, %v409
        %v418 = vmul.f32 %v388, %v407
        %v419 = vmul.f32 %v389, %v411
        %v420 = vmul.f32 %v390, %v409
        %v421 = vmul.f32 %v391, %v407
        %v422 = vmul.f32 %v392, %v411
        %v423 = vmul.f32 %v393, %v409
        %v424 = vmul.f32 %v394, %v407
        %v425 = vmul.f32 %v395, %v411
        %v426 = vmul.f32 %v396, %v409
        %v427 = vld [vmem:[#allocation7] sm:$0xff]
        %v428 = vld [vmem:[#allocation7 + $0x8] sm:$0xff]
        %v429 = vld [vmem:[#allocation7 + $0x10] sm:$0xff]
        %v430 = vld [vmem:[#allocation7 + $0x18] sm:$0xff]
        %s431 = scalar_lea.vmem [#allocation7], 32
        %v432 = vld [vmem:[%s431] sm:$0xff]
        %v433 = vld [vmem:[%s431 + $0x8] sm:$0xff]
        %v434 = vld [vmem:[%s431 + $0x10] sm:$0xff]
        %v435 = vld [vmem:[%s431 + $0x18] sm:$0xff]
        %448 = vrot.lane.b32.xlu0 %v385, 16
        %v449 = vpop.permute.xlu0 %448
        %450 = vrot.lane.b32.xlu0 %v386, 16
        %v451 = vpop.permute.xlu0 %450
        %452 = vrot.lane.b32.xlu0 %v387, 16
        %v453 = vpop.permute.xlu0 %452
        %454 = vrot.lane.b32.xlu0 %v388, 16
        %v455 = vpop.permute.xlu0 %454
        %456 = vrot.lane.b32.xlu0 %v389, 16
        %v457 = vpop.permute.xlu0 %456
        %458 = vrot.lane.b32.xlu0 %v390, 16
        %v459 = vpop.permute.xlu0 %458
        %460 = vrot.lane.b32.xlu0 %v391, 16
        %v461 = vpop.permute.xlu0 %460
        %462 = vrot.lane.b32.xlu0 %v392, 16
        %v463 = vpop.permute.xlu0 %462
        %464 = vrot.lane.b32.xlu0 %v393, 16
        %v465 = vpop.permute.xlu0 %464
        %466 = vrot.lane.b32.xlu0 %v394, 16
        %v467 = vpop.permute.xlu0 %466
        %468 = vrot.lane.b32.xlu0 %v395, 16
        %v469 = vpop.permute.xlu0 %468
        %470 = vrot.lane.b32.xlu0 %v396, 16
        %v471 = vpop.permute.xlu0 %470
        %vm472 = vcmask 130048
        %v473 = vsel %vm472, %v449, %v451
        %v474 = vsel %vm472, %v451, %v453
        %v475 = vsel %vm472, %v455, %v457
        %v476 = vsel %vm472, %v457, %v459
        %v477 = vsel %vm472, %v461, %v463
        %v478 = vsel %vm472, %v463, %v465
        %v479 = vsel %vm472, %v467, %v469
        %v480 = vsel %vm472, %v469, %v471
        %vm489 = vcmask 261120
        %v491 = vsel %vm489, %v432, 0
        %v494 = vsel %vm489, %v433, 0
        %v497 = vsel %vm489, %v434, 0
        %v500 = vsel %vm489, %v435, 0
        %502 = vmatprep.subr.mxu0 %v474
        %503 = vmatpush1.msra.mxu0 %v473
        %504 = vmatprep.subr.mxu0 %v476
        %505 = vmatpush1.msra.mxu0 %v475
        %506 = vmatprep.subr.mxu0 %v478
        %507 = vmatpush1.msra.mxu0 %v477
        %508 = vmatprep.subr.mxu0 %v480
        %509 = vmatpush1.msra.mxu0 %v479
        %510 = vmatprep.subr.mxu0 0.0
        %511 = vmatpush1.msra.mxu0 0.0
        %512 = vmatprep.subr.mxu0 0.0
        %513 = vmatpush1.msra.mxu0 0.0
        %514 = vmatprep.subr.mxu0 0.0
        %515 = vmatpush1.msra.mxu0 0.0
        %516 = vmatprep.subr.mxu0 0.0
        %517 = vmatpush1.msra.mxu0 0.0
        %518 = vmatprep.subr.mxu0 0.0
        %519 = vmatpush1.msra.mxu0 0.0
        %520 = vmatprep.subr.mxu0 0.0
        %521 = vmatpush1.msra.mxu0 0.0
        %522 = vmatprep.subr.mxu0 0.0
        %523 = vmatpush1.msra.mxu0 0.0
        %524 = vmatprep.subr.mxu0 0.0
        %525 = vmatpush1.msra.mxu0 0.0
        %526 = vmatprep.subr.mxu0 0.0
        %527 = vmatpush1.msra.mxu0 0.0
        %528 = vmatprep.subr.mxu0 0.0
        %529 = vmatpush1.msra.mxu0 0.0
        %530 = vmatprep.subr.mxu0 0.0
        %531 = vmatpush1.msra.mxu0 0.0
        %532 = vmatprep.subr.mxu0 0.0
        %533 = vmatpush1.msra.mxu0 0.0
        %534 = vmatprep.subr.mxu0 0.0
        %535 = vmatpush1.msra.mxu0 0.0
        %536 = vmatprep.subr.mxu0 0.0
        %537 = vmatpush1.msra.mxu0 0.0
        %538 = vmatprep.subr.mxu0 0.0
        %539 = vmatpush1.msra.mxu0 0.0
        %540 = vmatprep.subr.mxu0 0.0
        %541 = vmatpush1.msra.mxu0 0.0
        %542 = vmatprep.subr.mxu0 0.0
        %543 = vmatpush1.msra.mxu0 0.0
        %544 = vmatprep.subr.mxu0 0.0
        %545 = vmatpush1.msra.mxu0 0.0
        %546 = vmatprep.subr.mxu0 0.0
        %547 = vmatpush1.msra.mxu0 0.0
        %548 = vmatprep.subr.mxu0 0.0
        %549 = vmatpush1.msra.mxu0 0.0
        %550 = vmatprep.subr.mxu0 0.0
        %551 = vmatpush1.msra.mxu0 0.0
        %552 = vmatprep.subr.mxu0 0.0
        %553 = vmatpush1.msra.mxu0 0.0
        %554 = vmatprep.subr.mxu0 0.0
        %555 = vmatpush1.msra.mxu0 0.0
        %556 = vmatprep.subr.mxu0 0.0
        %557 = vmatpush1.msra.mxu0 0.0
        %558 = vmatprep.subr.mxu0 0.0
        %559 = vmatpush1.msra.mxu0 0.0
        %560 = vmatprep.subr.mxu0 0.0
        %561 = vmatpush1.msra.mxu0 0.0
        %562 = vmatprep.subr.mxu0 0.0
        %563 = vmatpush1.msra.mxu0 0.0
        %564 = vmatprep.subr.mxu0 0.0
        %565 = vmatpush1.msra.mxu0 0.0
        %566 = vmatprep.mubr.f32.mxu0 0.0
        %567 = vmatmul.mubr.f32.gmra.mrb[0].mxu0 %v491
        %v568 = vpop.f32.mrb[0].mxu0
        %v569 = vadd.f32 0.0, %v568
        %v570 = vpop.f32.mrb[0].mxu0
        %v571 = vadd.f32 0.0, %v570
        %572 = vmatprep.mubr.f32.mxu0 0.0
        %573 = vmatmul.mubr.f32.gmra.mrb[0].mxu0 %v494
        %v574 = vpop.f32.mrb[0].mxu0
        %v575 = vadd.f32 0.0, %v574
        %v576 = vpop.f32.mrb[0].mxu0
        %v577 = vadd.f32 0.0, %v576
        %578 = vmatprep.mubr.f32.mxu0 0.0
        %579 = vmatmul.mubr.f32.gmra.mrb[0].mxu0 %v497
        %v580 = vpop.f32.mrb[0].mxu0
        %v581 = vadd.f32 0.0, %v580
        %v582 = vpop.f32.mrb[0].mxu0
        %v583 = vadd.f32 0.0, %v582
        %584 = vmatprep.mubr.f32.mxu0 0.0
        %585 = vmatmul.mubr.f32.gmra.mrb[0].mxu0 %v500
        %v586 = vpop.f32.mrb[0].mxu0
        %v587 = vadd.f32 0.0, %v586
        %v588 = vpop.f32.mrb[0].mxu0
        %v589 = vadd.f32 0.0, %v588
        %590 = vdwg.mxu0
        %603 = vrot.lane.b32.xlu0 %v415, 17
        %v604 = vpop.permute.xlu0 %603
        %605 = vrot.lane.b32.xlu0 %v416, 17
        %v606 = vpop.permute.xlu0 %605
        %607 = vrot.lane.b32.xlu0 %v417, 17
        %v608 = vpop.permute.xlu0 %607
        %609 = vrot.lane.b32.xlu0 %v418, 17
        %v610 = vpop.permute.xlu0 %609
        %611 = vrot.lane.b32.xlu0 %v419, 17
        %v612 = vpop.permute.xlu0 %611
        %613 = vrot.lane.b32.xlu0 %v420, 17
        %v614 = vpop.permute.xlu0 %613
        %615 = vrot.lane.b32.xlu0 %v421, 17
        %v616 = vpop.permute.xlu0 %615
        %617 = vrot.lane.b32.xlu0 %v422, 17
        %v618 = vpop.permute.xlu0 %617
        %619 = vrot.lane.b32.xlu0 %v423, 17
        %v620 = vpop.permute.xlu0 %619
        %621 = vrot.lane.b32.xlu0 %v424, 17
        %v622 = vpop.permute.xlu0 %621
        %623 = vrot.lane.b32.xlu0 %v425, 17
        %v624 = vpop.permute.xlu0 %623
        %625 = vrot.lane.b32.xlu0 %v426, 17
        %v626 = vpop.permute.xlu0 %625
        %v627 = vsel %vm347, %v604, %v606
        %v628 = vsel %vm347, %v606, %v608
        %v629 = vsel %vm347, %v610, %v612
        %v630 = vsel %vm347, %v612, %v614
        %v631 = vsel %vm347, %v616, %v618
        %v632 = vsel %vm347, %v618, %v620
        %v633 = vsel %vm347, %v622, %v624
        %v634 = vsel %vm347, %v624, %v626
        %v644 = vsel %vm489, %v427, 0
        %v647 = vsel %vm489, %v428, 0
        %v650 = vsel %vm489, %v429, 0
        %v653 = vsel %vm489, %v430, 0
        %655 = vmatprep.subr.mxu0 %v628
        %656 = vmatpush1.msra.mxu0 %v627
        %657 = vmatprep.subr.mxu0 %v630
        %658 = vmatpush1.msra.mxu0 %v629
        %659 = vmatprep.subr.mxu0 %v632
        %660 = vmatpush1.msra.mxu0 %v631
        %661 = vmatprep.subr.mxu0 %v634
        %662 = vmatpush1.msra.mxu0 %v633
        %663 = vmatprep.subr.mxu0 0.0
        %664 = vmatpush1.msra.mxu0 0.0
        %665 = vmatprep.subr.mxu0 0.0
        %666 = vmatpush1.msra.mxu0 0.0
        %667 = vmatprep.subr.mxu0 0.0
        %668 = vmatpush1.msra.mxu0 0.0
        %669 = vmatprep.subr.mxu0 0.0
        %670 = vmatpush1.msra.mxu0 0.0
        %671 = vmatprep.subr.mxu0 0.0
        %672 = vmatpush1.msra.mxu0 0.0
        %673 = vmatprep.subr.mxu0 0.0
        %674 = vmatpush1.msra.mxu0 0.0
        %675 = vmatprep.subr.mxu0 0.0
        %676 = vmatpush1.msra.mxu0 0.0
        %677 = vmatprep.subr.mxu0 0.0
        %678 = vmatpush1.msra.mxu0 0.0
        %679 = vmatprep.subr.mxu0 0.0
        %680 = vmatpush1.msra.mxu0 0.0
        %681 = vmatprep.subr.mxu0 0.0
        %682 = vmatpush1.msra.mxu0 0.0
        %683 = vmatprep.subr.mxu0 0.0
        %684 = vmatpush1.msra.mxu0 0.0
        %685 = vmatprep.subr.mxu0 0.0
        %686 = vmatpush1.msra.mxu0 0.0
        %687 = vmatprep.subr.mxu0 0.0
        %688 = vmatpush1.msra.mxu0 0.0
        %689 = vmatprep.subr.mxu0 0.0
        %690 = vmatpush1.msra.mxu0 0.0
        %691 = vmatprep.subr.mxu0 0.0
        %692 = vmatpush1.msra.mxu0 0.0
        %693 = vmatprep.subr.mxu0 0.0
        %694 = vmatpush1.msra.mxu0 0.0
        %695 = vmatprep.subr.mxu0 0.0
        %696 = vmatpush1.msra.mxu0 0.0
        %697 = vmatprep.subr.mxu0 0.0
        %698 = vmatpush1.msra.mxu0 0.0
        %699 = vmatprep.subr.mxu0 0.0
        %700 = vmatpush1.msra.mxu0 0.0
        %701 = vmatprep.subr.mxu0 0.0
        %702 = vmatpush1.msra.mxu0 0.0
        %703 = vmatprep.subr.mxu0 0.0
        %704 = vmatpush1.msra.mxu0 0.0
        %705 = vmatprep.subr.mxu0 0.0
        %706 = vmatpush1.msra.mxu0 0.0
        %707 = vmatprep.subr.mxu0 0.0
        %708 = vmatpush1.msra.mxu0 0.0
        %709 = vmatprep.subr.mxu0 0.0
        %710 = vmatpush1.msra.mxu0 0.0
        %711 = vmatprep.subr.mxu0 0.0
        %712 = vmatpush1.msra.mxu0 0.0
        %713 = vmatprep.subr.mxu0 0.0
        %714 = vmatpush1.msra.mxu0 0.0
        %715 = vmatprep.subr.mxu0 0.0
        %716 = vmatpush1.msra.mxu0 0.0
        %717 = vmatprep.subr.mxu0 0.0
        %718 = vmatpush1.msra.mxu0 0.0
        %719 = vmatprep.mubr.f32.mxu0 0.0
        %720 = vmatmul.mubr.f32.gmra.mrb[0].mxu0 %v644
        %v721 = vpop.f32.mrb[0].mxu0
        %v722 = vadd.f32 %v569, %v721
        %v723 = vpop.f32.mrb[0].mxu0
        %v724 = vadd.f32 %v571, %v723
        %725 = vmatprep.mubr.f32.mxu0 0.0
        %726 = vmatmul.mubr.f32.gmra.mrb[0].mxu0 %v647
        %v727 = vpop.f32.mrb[0].mxu0
        %v728 = vadd.f32 %v575, %v727
        %v729 = vpop.f32.mrb[0].mxu0
        %v730 = vadd.f32 %v577, %v729
        %731 = vmatprep.mubr.f32.mxu0 0.0
        %732 = vmatmul.mubr.f32.gmra.mrb[0].mxu0 %v650
        %v733 = vpop.f32.mrb[0].mxu0
        %v734 = vadd.f32 %v581, %v733
        %v735 = vpop.f32.mrb[0].mxu0
        %v736 = vadd.f32 %v583, %v735
        %737 = vmatprep.mubr.f32.mxu0 0.0
        %738 = vmatmul.mubr.f32.gmra.mrb[0].mxu0 %v653
        %v739 = vpop.f32.mrb[0].mxu0
        %v740 = vadd.f32 %v587, %v739
        %v741 = vpop.f32.mrb[0].mxu0
        %v742 = vadd.f32 %v589, %v741
        %743 = vdwg.mxu0
        %v745 = vlaneseq
        %v746 = vshrl.u32 %v745, 7
        %v747 = vsub.s32 0, %v746
        %v748 = vrot.slane %v335, %v747
        %v749 = vlaneseq
        %v750 = vshrl.u32 %v749, 7
        %v751 = vsub.s32 1, %v750
        %v752 = vrot.slane %v335, %v751
        %753 = vrot.lane.b32.xlu0 %v748, 113
        %v754 = vpop.permute.xlu0 %753
        %755 = vrot.lane.b32.xlu0 %v752, 113
        %v756 = vpop.permute.xlu0 %755
        %vm757 = vcmask 924672
        %v758 = vsel %vm757, %v754, %v756
        %v762 = vmul.f32 %v385, %v754
        %v763 = vmul.f32 %v386, %v758
        %v764 = vmul.f32 %v387, %v756
        %v765 = vmul.f32 %v388, %v754
        %v766 = vmul.f32 %v389, %v758
        %v767 = vmul.f32 %v390, %v756
        %v768 = vmul.f32 %v391, %v754
        %v769 = vmul.f32 %v392, %v758
        %v770 = vmul.f32 %v393, %v756
        %v771 = vmul.f32 %v394, %v754
        %v772 = vmul.f32 %v395, %v758
        %v773 = vmul.f32 %v396, %v756
        %s774 = scalar_lea.vmem [#allocation7], 64
        %v775 = vld [vmem:[%s774] sm:$0xff]
        %v776 = vld [vmem:[%s774 + $0x8] sm:$0xff]
        %v777 = vld [vmem:[%s774 + $0x10] sm:$0xff]
        %v778 = vld [vmem:[%s774 + $0x18] sm:$0xff]
        %791 = vrot.lane.b32.xlu0 %v762, 15
        %v792 = vpop.permute.xlu0 %791
        %793 = vrot.lane.b32.xlu0 %v763, 15
        %v794 = vpop.permute.xlu0 %793
        %795 = vrot.lane.b32.xlu0 %v764, 15
        %v796 = vpop.permute.xlu0 %795
        %797 = vrot.lane.b32.xlu0 %v765, 15
        %v798 = vpop.permute.xlu0 %797
        %799 = vrot.lane.b32.xlu0 %v766, 15
        %v800 = vpop.permute.xlu0 %799
        %801 = vrot.lane.b32.xlu0 %v767, 15
        %v802 = vpop.permute.xlu0 %801
        %803 = vrot.lane.b32.xlu0 %v768, 15
        %v804 = vpop.permute.xlu0 %803
        %805 = vrot.lane.b32.xlu0 %v769, 15
        %v806 = vpop.permute.xlu0 %805
        %807 = vrot.lane.b32.xlu0 %v770, 15
        %v808 = vpop.permute.xlu0 %807
        %809 = vrot.lane.b32.xlu0 %v771, 15
        %v810 = vpop.permute.xlu0 %809
        %811 = vrot.lane.b32.xlu0 %v772, 15
        %v812 = vpop.permute.xlu0 %811
        %813 = vrot.lane.b32.xlu0 %v773, 15
        %v814 = vpop.permute.xlu0 %813
        %vm815 = vcmask 121856
        %v816 = vsel %vm815, %v792, %v794
        %v817 = vsel %vm815, %v794, %v796
        %v818 = vsel %vm815, %v798, %v800
        %v819 = vsel %vm815, %v800, %v802
        %v820 = vsel %vm815, %v804, %v806
        %v821 = vsel %vm815, %v806, %v808
        %v822 = vsel %vm815, %v810, %v812
        %v823 = vsel %vm815, %v812, %v814
        %v833 = vsel %vm489, %v775, 0
        %v836 = vsel %vm489, %v776, 0
        %v839 = vsel %vm489, %v777, 0
        %v842 = vsel %vm489, %v778, 0
        %844 = vmatprep.subr.mxu0 %v817
        %845 = vmatpush1.msra.mxu0 %v816
        %846 = vmatprep.subr.mxu0 %v819
        %847 = vmatpush1.msra.mxu0 %v818
        %848 = vmatprep.subr.mxu0 %v821
        %849 = vmatpush1.msra.mxu0 %v820
        %850 = vmatprep.subr.mxu0 %v823
        %851 = vmatpush1.msra.mxu0 %v822
        %852 = vmatprep.subr.mxu0 0.0
        %853 = vmatpush1.msra.mxu0 0.0
        %854 = vmatprep.subr.mxu0 0.0
        %855 = vmatpush1.msra.mxu0 0.0
        %856 = vmatprep.subr.mxu0 0.0
        %857 = vmatpush1.msra.mxu0 0.0
        %858 = vmatprep.subr.mxu0 0.0
        %859 = vmatpush1.msra.mxu0 0.0
        %860 = vmatprep.subr.mxu0 0.0
        %861 = vmatpush1.msra.mxu0 0.0
        %862 = vmatprep.subr.mxu0 0.0
        %863 = vmatpush1.msra.mxu0 0.0
        %864 = vmatprep.subr.mxu0 0.0
        %865 = vmatpush1.msra.mxu0 0.0
        %866 = vmatprep.subr.mxu0 0.0
        %867 = vmatpush1.msra.mxu0 0.0
        %868 = vmatprep.subr.mxu0 0.0
        %869 = vmatpush1.msra.mxu0 0.0
        %870 = vmatprep.subr.mxu0 0.0
        %871 = vmatpush1.msra.mxu0 0.0
        %872 = vmatprep.subr.mxu0 0.0
        %873 = vmatpush1.msra.mxu0 0.0
        %874 = vmatprep.subr.mxu0 0.0
        %875 = vmatpush1.msra.mxu0 0.0
        %876 = vmatprep.subr.mxu0 0.0
        %877 = vmatpush1.msra.mxu0 0.0
        %878 = vmatprep.subr.mxu0 0.0
        %879 = vmatpush1.msra.mxu0 0.0
        %880 = vmatprep.subr.mxu0 0.0
        %881 = vmatpush1.msra.mxu0 0.0
        %882 = vmatprep.subr.mxu0 0.0
        %883 = vmatpush1.msra.mxu0 0.0
        %884 = vmatprep.subr.mxu0 0.0
        %885 = vmatpush1.msra.mxu0 0.0
        %886 = vmatprep.subr.mxu0 0.0
        %887 = vmatpush1.msra.mxu0 0.0
        %888 = vmatprep.subr.mxu0 0.0
        %889 = vmatpush1.msra.mxu0 0.0
        %890 = vmatprep.subr.mxu0 0.0
        %891 = vmatpush1.msra.mxu0 0.0
        %892 = vmatprep.subr.mxu0 0.0
        %893 = vmatpush1.msra.mxu0 0.0
        %894 = vmatprep.subr.mxu0 0.0
        %895 = vmatpush1.msra.mxu0 0.0
        %896 = vmatprep.subr.mxu0 0.0
        %897 = vmatpush1.msra.mxu0 0.0
        %898 = vmatprep.subr.mxu0 0.0
        %899 = vmatpush1.msra.mxu0 0.0
        %900 = vmatprep.subr.mxu0 0.0
        %901 = vmatpush1.msra.mxu0 0.0
        %902 = vmatprep.subr.mxu0 0.0
        %903 = vmatpush1.msra.mxu0 0.0
        %904 = vmatprep.subr.mxu0 0.0
        %905 = vmatpush1.msra.mxu0 0.0
        %906 = vmatprep.subr.mxu0 0.0
        %907 = vmatpush1.msra.mxu0 0.0
        %908 = vmatprep.mubr.f32.mxu0 0.0
        %909 = vmatmul.mubr.f32.gmra.mrb[0].mxu0 %v833
        %v910 = vpop.f32.mrb[0].mxu0
        %v911 = vadd.f32 0.0, %v910
        %v912 = vpop.f32.mrb[0].mxu0
        %v913 = vadd.f32 0.0, %v912
        %914 = vmatprep.mubr.f32.mxu0 0.0
        %915 = vmatmul.mubr.f32.gmra.mrb[0].mxu0 %v836
        %v916 = vpop.f32.mrb[0].mxu0
        %v917 = vadd.f32 0.0, %v916
        %v918 = vpop.f32.mrb[0].mxu0
        %v919 = vadd.f32 0.0, %v918
        %920 = vmatprep.mubr.f32.mxu0 0.0
        %921 = vmatmul.mubr.f32.gmra.mrb[0].mxu0 %v839
        %v922 = vpop.f32.mrb[0].mxu0
        %v923 = vadd.f32 0.0, %v922
        %v924 = vpop.f32.mrb[0].mxu0
        %v925 = vadd.f32 0.0, %v924
        %926 = vmatprep.mubr.f32.mxu0 0.0
        %927 = vmatmul.mubr.f32.gmra.mrb[0].mxu0 %v842
        %v928 = vpop.f32.mrb[0].mxu0
        %v929 = vadd.f32 0.0, %v928
        %v930 = vpop.f32.mrb[0].mxu0
        %v931 = vadd.f32 0.0, %v930
        %932 = vdwg.mxu0
        %v933 = vadd.f32 %v722, %v911
        %v934 = vadd.f32 %v724, %v913
        %v935 = vadd.f32 %v728, %v917
        %v936 = vadd.f32 %v730, %v919
        %v937 = vadd.f32 %v734, %v923
        %v938 = vadd.f32 %v736, %v925
        %v939 = vadd.f32 %v740, %v929
        %v940 = vadd.f32 %v742, %v931
        %941 = vrot.lane.b32.xlu0 %v401, 127
        %v942 = vpop.permute.xlu0 %941
        %943 = vrot.lane.b32.xlu0 %v405, 127
        %v944 = vpop.permute.xlu0 %943
        %vm945 = vcmask 1039360
        %v946 = vsel %vm945, %v942, %v944
        %v950 = vmul.f32 %v385, %v942
        %v951 = vmul.f32 %v386, %v946
        %v952 = vmul.f32 %v387, %v944
        %v953 = vmul.f32 %v388, %v942
        %v954 = vmul.f32 %v389, %v946
        %v955 = vmul.f32 %v390, %v944
        %v956 = vmul.f32 %v391, %v942
        %v957 = vmul.f32 %v392, %v946
        %v958 = vmul.f32 %v393, %v944
        %v959 = vmul.f32 %v394, %v942
        %v960 = vmul.f32 %v395, %v946
        %v961 = vmul.f32 %v396, %v944
        %s962 = scalar_lea.vmem [#allocation7], 96
        %v963 = vld [vmem:[%s962] sm:$0xff]
        %v964 = vld [vmem:[%s962 + $0x8] sm:$0xff]
        %v965 = vld [vmem:[%s962 + $0x10] sm:$0xff]
        %v966 = vld [vmem:[%s962 + $0x18] sm:$0xff]
        %979 = vrot.lane.b32.xlu0 %v950, 1
        %v980 = vpop.permute.xlu0 %979
        %981 = vrot.lane.b32.xlu0 %v951, 1
        %v982 = vpop.permute.xlu0 %981
        %983 = vrot.lane.b32.xlu0 %v952, 1
        %v984 = vpop.permute.xlu0 %983
        %985 = vrot.lane.b32.xlu0 %v953, 1
        %v986 = vpop.permute.xlu0 %985
        %987 = vrot.lane.b32.xlu0 %v954, 1
        %v988 = vpop.permute.xlu0 %987
        %989 = vrot.lane.b32.xlu0 %v955, 1
        %v990 = vpop.permute.xlu0 %989
        %991 = vrot.lane.b32.xlu0 %v956, 1
        %v992 = vpop.permute.xlu0 %991
        %993 = vrot.lane.b32.xlu0 %v957, 1
        %v994 = vpop.permute.xlu0 %993
        %995 = vrot.lane.b32.xlu0 %v958, 1
        %v996 = vpop.permute.xlu0 %995
        %997 = vrot.lane.b32.xlu0 %v959, 1
        %v998 = vpop.permute.xlu0 %997
        %999 = vrot.lane.b32.xlu0 %v960, 1
        %v1000 = vpop.permute.xlu0 %999
        %1001 = vrot.lane.b32.xlu0 %v961, 1
        %v1002 = vpop.permute.xlu0 %1001
        %vm1003 = vcmask 7168
        %v1004 = vsel %vm1003, %v980, %v982
        %v1005 = vsel %vm1003, %v982, %v984
        %v1006 = vsel %vm1003, %v986, %v988
        %v1007 = vsel %vm1003, %v988, %v990
        %v1008 = vsel %vm1003, %v992, %v994
        %v1009 = vsel %vm1003, %v994, %v996
        %v1010 = vsel %vm1003, %v998, %v1000
        %v1011 = vsel %vm1003, %v1000, %v1002
        %v1021 = vsel %vm489, %v963, 0
        %v1024 = vsel %vm489, %v964, 0
        %v1027 = vsel %vm489, %v965, 0
        %v1030 = vsel %vm489, %v966, 0
        %1032 = vmatprep.subr.mxu0 %v1005
        %1033 = vmatpush1.msra.mxu0 %v1004
        %1034 = vmatprep.subr.mxu0 %v1007
        %1035 = vmatpush1.msra.mxu0 %v1006
        %1036 = vmatprep.subr.mxu0 %v1009
        %1037 = vmatpush1.msra.mxu0 %v1008
        %1038 = vmatprep.subr.mxu0 %v1011
        %1039 = vmatpush1.msra.mxu0 %v1010
        %1040 = vmatprep.subr.mxu0 0.0
        %1041 = vmatpush1.msra.mxu0 0.0
        %1042 = vmatprep.subr.mxu0 0.0
        %1043 = vmatpush1.msra.mxu0 0.0
        %1044 = vmatprep.subr.mxu0 0.0
        %1045 = vmatpush1.msra.mxu0 0.0
        %1046 = vmatprep.subr.mxu0 0.0
        %1047 = vmatpush1.msra.mxu0 0.0
        %1048 = vmatprep.subr.mxu0 0.0
        %1049 = vmatpush1.msra.mxu0 0.0
        %1050 = vmatprep.subr.mxu0 0.0
        %1051 = vmatpush1.msra.mxu0 0.0
        %1052 = vmatprep.subr.mxu0 0.0
        %1053 = vmatpush1.msra.mxu0 0.0
        %1054 = vmatprep.subr.mxu0 0.0
        %1055 = vmatpush1.msra.mxu0 0.0
        %1056 = vmatprep.subr.mxu0 0.0
        %1057 = vmatpush1.msra.mxu0 0.0
        %1058 = vmatprep.subr.mxu0 0.0
        %1059 = vmatpush1.msra.mxu0 0.0
        %1060 = vmatprep.subr.mxu0 0.0
        %1061 = vmatpush1.msra.mxu0 0.0
        %1062 = vmatprep.subr.mxu0 0.0
        %1063 = vmatpush1.msra.mxu0 0.0
        %1064 = vmatprep.subr.mxu0 0.0
        %1065 = vmatpush1.msra.mxu0 0.0
        %1066 = vmatprep.subr.mxu0 0.0
        %1067 = vmatpush1.msra.mxu0 0.0
        %1068 = vmatprep.subr.mxu0 0.0
        %1069 = vmatpush1.msra.mxu0 0.0
        %1070 = vmatprep.subr.mxu0 0.0
        %1071 = vmatpush1.msra.mxu0 0.0
        %1072 = vmatprep.subr.mxu0 0.0
        %1073 = vmatpush1.msra.mxu0 0.0
        %1074 = vmatprep.subr.mxu0 0.0
        %1075 = vmatpush1.msra.mxu0 0.0
        %1076 = vmatprep.subr.mxu0 0.0
        %1077 = vmatpush1.msra.mxu0 0.0
        %1078 = vmatprep.subr.mxu0 0.0
        %1079 = vmatpush1.msra.mxu0 0.0
        %1080 = vmatprep.subr.mxu0 0.0
        %1081 = vmatpush1.msra.mxu0 0.0
        %1082 = vmatprep.subr.mxu0 0.0
        %1083 = vmatpush1.msra.mxu0 0.0
        %1084 = vmatprep.subr.mxu0 0.0
        %1085 = vmatpush1.msra.mxu0 0.0
        %1086 = vmatprep.subr.mxu0 0.0
        %1087 = vmatpush1.msra.mxu0 0.0
        %1088 = vmatprep.subr.mxu0 0.0
        %1089 = vmatpush1.msra.mxu0 0.0
        %1090 = vmatprep.subr.mxu0 0.0
        %1091 = vmatpush1.msra.mxu0 0.0
        %1092 = vmatprep.subr.mxu0 0.0
        %1093 = vmatpush1.msra.mxu0 0.0
        %1094 = vmatprep.subr.mxu0 0.0
        %1095 = vmatpush1.msra.mxu0 0.0
        %1096 = vmatprep.mubr.f32.mxu0 0.0
        %1097 = vmatmul.mubr.f32.gmra.mrb[0].mxu0 %v1021
        %v1098 = vpop.f32.mrb[0].mxu0
        %v1099 = vadd.f32 0.0, %v1098
        %v1100 = vpop.f32.mrb[0].mxu0
        %v1101 = vadd.f32 0.0, %v1100
        %1102 = vmatprep.mubr.f32.mxu0 0.0
        %1103 = vmatmul.mubr.f32.gmra.mrb[0].mxu0 %v1024
        %v1104 = vpop.f32.mrb[0].mxu0
        %v1105 = vadd.f32 0.0, %v1104
        %v1106 = vpop.f32.mrb[0].mxu0
        %v1107 = vadd.f32 0.0, %v1106
        %1108 = vmatprep.mubr.f32.mxu0 0.0
        %1109 = vmatmul.mubr.f32.gmra.mrb[0].mxu0 %v1027
        %v1110 = vpop.f32.mrb[0].mxu0
        %v1111 = vadd.f32 0.0, %v1110
        %v1112 = vpop.f32.mrb[0].mxu0
        %v1113 = vadd.f32 0.0, %v1112
        %1114 = vmatprep.mubr.f32.mxu0 0.0
        %1115 = vmatmul.mubr.f32.gmra.mrb[0].mxu0 %v1030
        %v1116 = vpop.f32.mrb[0].mxu0
        %v1117 = vadd.f32 0.0, %v1116
        %v1118 = vpop.f32.mrb[0].mxu0
        %v1119 = vadd.f32 0.0, %v1118
        %1120 = vdwg.mxu0
        %v1121 = vadd.f32 %v933, %v1099
        %v1122 = vadd.f32 %v934, %v1101
        %v1123 = vadd.f32 %v935, %v1105
        %v1124 = vadd.f32 %v936, %v1107
        %v1125 = vadd.f32 %v937, %v1111
        %v1126 = vadd.f32 %v938, %v1113
        %v1127 = vadd.f32 %v939, %v1117
        %v1128 = vadd.f32 %v940, %v1119
        %s1129 = scalar_lea.vmem [#allocation7], 128
        %v1130 = vld [vmem:[%s1129] sm:$0xff]
        %v1131 = vld [vmem:[%s1129 + $0x8] sm:$0xff]
        %v1132 = vld [vmem:[%s1129 + $0x10] sm:$0xff]
        %v1133 = vld [vmem:[%s1129 + $0x18] sm:$0xff]
        %v1135 = vsel %vm489, %v1130, 0
        %v1138 = vsel %vm489, %v1131, 0
        %v1141 = vsel %vm489, %v1132, 0
        %v1144 = vsel %vm489, %v1133, 0
        %1146 = vmatprep.subr.mxu0 %v387
        %1147 = vmatpush1.msra.mxu0 %v386
        %1148 = vmatprep.subr.mxu0 %v390
        %1149 = vmatpush1.msra.mxu0 %v389
        %1150 = vmatprep.subr.mxu0 %v393
        %1151 = vmatpush1.msra.mxu0 %v392
        %1152 = vmatprep.subr.mxu0 %v396
        %1153 = vmatpush1.msra.mxu0 %v395
        %1154 = vmatprep.subr.mxu0 0.0
        %1155 = vmatpush1.msra.mxu0 0.0
        %1156 = vmatprep.subr.mxu0 0.0
        %1157 = vmatpush1.msra.mxu0 0.0
        %1158 = vmatprep.subr.mxu0 0.0
        %1159 = vmatpush1.msra.mxu0 0.0
        %1160 = vmatprep.subr.mxu0 0.0
        %1161 = vmatpush1.msra.mxu0 0.0
        %1162 = vmatprep.subr.mxu0 0.0
        %1163 = vmatpush1.msra.mxu0 0.0
        %1164 = vmatprep.subr.mxu0 0.0
        %1165 = vmatpush1.msra.mxu0 0.0
        %1166 = vmatprep.subr.mxu0 0.0
        %1167 = vmatpush1.msra.mxu0 0.0
        %1168 = vmatprep.subr.mxu0 0.0
        %1169 = vmatpush1.msra.mxu0 0.0
        %1170 = vmatprep.subr.mxu0 0.0
        %1171 = vmatpush1.msra.mxu0 0.0
        %1172 = vmatprep.subr.mxu0 0.0
        %1173 = vmatpush1.msra.mxu0 0.0
        %1174 = vmatprep.subr.mxu0 0.0
        %1175 = vmatpush1.msra.mxu0 0.0
        %1176 = vmatprep.subr.mxu0 0.0
        %1177 = vmatpush1.msra.mxu0 0.0
        %1178 = vmatprep.subr.mxu0 0.0
        %1179 = vmatpush1.msra.mxu0 0.0
        %1180 = vmatprep.subr.mxu0 0.0
        %1181 = vmatpush1.msra.mxu0 0.0
        %1182 = vmatprep.subr.mxu0 0.0
        %1183 = vmatpush1.msra.mxu0 0.0
        %1184 = vmatprep.subr.mxu0 0.0
        %1185 = vmatpush1.msra.mxu0 0.0
        %1186 = vmatprep.subr.mxu0 0.0
        %1187 = vmatpush1.msra.mxu0 0.0
        %1188 = vmatprep.subr.mxu0 0.0
        %1189 = vmatpush1.msra.mxu0 0.0
        %1190 = vmatprep.subr.mxu0 0.0
        %1191 = vmatpush1.msra.mxu0 0.0
        %1192 = vmatprep.subr.mxu0 0.0
        %1193 = vmatpush1.msra.mxu0 0.0
        %1194 = vmatprep.subr.mxu0 0.0
        %1195 = vmatpush1.msra.mxu0 0.0
        %1196 = vmatprep.subr.mxu0 0.0
        %1197 = vmatpush1.msra.mxu0 0.0
        %1198 = vmatprep.subr.mxu0 0.0
        %1199 = vmatpush1.msra.mxu0 0.0
        %1200 = vmatprep.subr.mxu0 0.0
        %1201 = vmatpush1.msra.mxu0 0.0
        %1202 = vmatprep.subr.mxu0 0.0
        %1203 = vmatpush1.msra.mxu0 0.0
        %1204 = vmatprep.subr.mxu0 0.0
        %1205 = vmatpush1.msra.mxu0 0.0
        %1206 = vmatprep.subr.mxu0 0.0
        %1207 = vmatpush1.msra.mxu0 0.0
        %1208 = vmatprep.subr.mxu0 0.0
        %1209 = vmatpush1.msra.mxu0 0.0
        %1210 = vmatprep.mubr.f32.mxu0 0.0
        %1211 = vmatmul.mubr.f32.gmra.mrb[0].mxu0 %v1135
        %v1212 = vpop.f32.mrb[0].mxu0
        %v1213 = vadd.f32 0.0, %v1212
        %v1214 = vpop.f32.mrb[0].mxu0
        %v1215 = vadd.f32 0.0, %v1214
        %1216 = vmatprep.mubr.f32.mxu0 0.0
        %1217 = vmatmul.mubr.f32.gmra.mrb[0].mxu0 %v1138
        %v1218 = vpop.f32.mrb[0].mxu0
        %v1219 = vadd.f32 0.0, %v1218
        %v1220 = vpop.f32.mrb[0].mxu0
        %v1221 = vadd.f32 0.0, %v1220
        %1222 = vmatprep.mubr.f32.mxu0 0.0
        %1223 = vmatmul.mubr.f32.gmra.mrb[0].mxu0 %v1141
        %v1224 = vpop.f32.mrb[0].mxu0
        %v1225 = vadd.f32 0.0, %v1224
        %v1226 = vpop.f32.mrb[0].mxu0
        %v1227 = vadd.f32 0.0, %v1226
        %1228 = vmatprep.mubr.f32.mxu0 0.0
        %1229 = vmatmul.mubr.f32.gmra.mrb[0].mxu0 %v1144
        %v1230 = vpop.f32.mrb[0].mxu0
        %v1231 = vadd.f32 0.0, %v1230
        %v1232 = vpop.f32.mrb[0].mxu0
        %v1233 = vadd.f32 0.0, %v1232
        %1234 = vdwg.mxu0
        %v1235 = vadd.f32 %v1121, %v1213
        %v1236 = vadd.f32 %v1122, %v1215
        %v1237 = vadd.f32 %v1123, %v1219
        %v1238 = vadd.f32 %v1124, %v1221
        %v1239 = vadd.f32 %v1125, %v1225
        %v1240 = vadd.f32 %v1126, %v1227
        %v1241 = vadd.f32 %v1127, %v1231
        %v1242 = vadd.f32 %v1128, %v1233
        %v1243 = vld [vmem:[#allocation2 + $0x8] sm:$0xff]
        %v1244 = vld [vmem:[#allocation2 + $0x10] sm:$0xff]
        %v1245 = vld [vmem:[#allocation2 + $0x18] sm:$0xff]
        %v1246 = vld [vmem:[#allocation2 + $0x28] sm:$0xff]
        %v1247 = vld [vmem:[#allocation2 + $0x30] sm:$0xff]
        %v1248 = vld [vmem:[#allocation2 + $0x38] sm:$0xff]
        %v1249 = vld [vmem:[#allocation2 + $0x48] sm:$0xff]
        %v1250 = vld [vmem:[#allocation2 + $0x50] sm:$0xff]
        %v1251 = vld [vmem:[#allocation2 + $0x58] sm:$0xff]
        %v1252 = vld [vmem:[#allocation2 + $0x68] sm:$0xff]
        %v1253 = vld [vmem:[#allocation2 + $0x70] sm:$0xff]
        %v1254 = vld [vmem:[#allocation2 + $0x78] sm:$0xff]
        %1255 = vrot.lane.b32.xlu0 %v748, 1
        %v1256 = vpop.permute.xlu0 %1255
        %1257 = vrot.lane.b32.xlu0 %v752, 1
        %v1258 = vpop.permute.xlu0 %1257
        %v1259 = vsel %vm1003, %v1256, %v1258
        %v1263 = vmul.f32 %v1243, %v1256
        %v1264 = vmul.f32 %v1244, %v1259
        %v1265 = vmul.f32 %v1245, %v1258
        %v1266 = vmul.f32 %v1246, %v1256
        %v1267 = vmul.f32 %v1247, %v1259
        %v1268 = vmul.f32 %v1248, %v1258
        %v1269 = vmul.f32 %v1249, %v1256
        %v1270 = vmul.f32 %v1250, %v1259
        %v1271 = vmul.f32 %v1251, %v1258
        %v1272 = vmul.f32 %v1252, %v1256
        %v1273 = vmul.f32 %v1253, %v1259
        %v1274 = vmul.f32 %v1254, %v1258
        %s1275 = scalar_lea.vmem [#allocation7], 160
        %v1276 = vld [vmem:[%s1275] sm:$0xff]
        %v1277 = vld [vmem:[%s1275 + $0x8] sm:$0xff]
        %v1278 = vld [vmem:[%s1275 + $0x10] sm:$0xff]
        %v1279 = vld [vmem:[%s1275 + $0x18] sm:$0xff]
        %1292 = vrot.lane.b32.xlu0 %v1263, 127
        %v1293 = vpop.permute.xlu0 %1292
        %1294 = vrot.lane.b32.xlu0 %v1264, 127
        %v1295 = vpop.permute.xlu0 %1294
        %1296 = vrot.lane.b32.xlu0 %v1265, 127
        %v1297 = vpop.permute.xlu0 %1296
        %1298 = vrot.lane.b32.xlu0 %v1266, 127
        %v1299 = vpop.permute.xlu0 %1298
        %1300 = vrot.lane.b32.xlu0 %v1267, 127
        %v1301 = vpop.permute.xlu0 %1300
        %1302 = vrot.lane.b32.xlu0 %v1268, 127
        %v1303 = vpop.permute.xlu0 %1302
        %1304 = vrot.lane.b32.xlu0 %v1269, 127
        %v1305 = vpop.permute.xlu0 %1304
        %1306 = vrot.lane.b32.xlu0 %v1270, 127
        %v1307 = vpop.permute.xlu0 %1306
        %1308 = vrot.lane.b32.xlu0 %v1271, 127
        %v1309 = vpop.permute.xlu0 %1308
        %1310 = vrot.lane.b32.xlu0 %v1272, 127
        %v1311 = vpop.permute.xlu0 %1310
        %1312 = vrot.lane.b32.xlu0 %v1273, 127
        %v1313 = vpop.permute.xlu0 %1312
        %1314 = vrot.lane.b32.xlu0 %v1274, 127
        %v1315 = vpop.permute.xlu0 %1314
        %v1316 = vsel %vm945, %v1293, %v1295
        %v1317 = vsel %vm945, %v1295, %v1297
        %v1318 = vsel %vm945, %v1299, %v1301
        %v1319 = vsel %vm945, %v1301, %v1303
        %v1320 = vsel %vm945, %v1305, %v1307
        %v1321 = vsel %vm945, %v1307, %v1309
        %v1322 = vsel %vm945, %v1311, %v1313
        %v1323 = vsel %vm945, %v1313, %v1315
        %v1333 = vsel %vm489, %v1276, 0
        %v1336 = vsel %vm489, %v1277, 0
        %v1339 = vsel %vm489, %v1278, 0
        %v1342 = vsel %vm489, %v1279, 0
        %1344 = vmatprep.subr.mxu0 %v1317
        %1345 = vmatpush1.msra.mxu0 %v1316
        %1346 = vmatprep.subr.mxu0 %v1319
        %1347 = vmatpush1.msra.mxu0 %v1318
        %1348 = vmatprep.subr.mxu0 %v1321
        %1349 = vmatpush1.msra.mxu0 %v1320
        %1350 = vmatprep.subr.mxu0 %v1323
        %1351 = vmatpush1.msra.mxu0 %v1322
        %1352 = vmatprep.subr.mxu0 0.0
        %1353 = vmatpush1.msra.mxu0 0.0
        %1354 = vmatprep.subr.mxu0 0.0
        %1355 = vmatpush1.msra.mxu0 0.0
        %1356 = vmatprep.subr.mxu0 0.0
        %1357 = vmatpush1.msra.mxu0 0.0
        %1358 = vmatprep.subr.mxu0 0.0
        %1359 = vmatpush1.msra.mxu0 0.0
        %1360 = vmatprep.subr.mxu0 0.0
        %1361 = vmatpush1.msra.mxu0 0.0
        %1362 = vmatprep.subr.mxu0 0.0
        %1363 = vmatpush1.msra.mxu0 0.0
        %1364 = vmatprep.subr.mxu0 0.0
        %1365 = vmatpush1.msra.mxu0 0.0
        %1366 = vmatprep.subr.mxu0 0.0
        %1367 = vmatpush1.msra.mxu0 0.0
        %1368 = vmatprep.subr.mxu0 0.0
        %1369 = vmatpush1.msra.mxu0 0.0
        %1370 = vmatprep.subr.mxu0 0.0
        %1371 = vmatpush1.msra.mxu0 0.0
        %1372 = vmatprep.subr.mxu0 0.0
        %1373 = vmatpush1.msra.mxu0 0.0
        %1374 = vmatprep.subr.mxu0 0.0
        %1375 = vmatpush1.msra.mxu0 0.0
        %1376 = vmatprep.subr.mxu0 0.0
        %1377 = vmatpush1.msra.mxu0 0.0
        %1378 = vmatprep.subr.mxu0 0.0
        %1379 = vmatpush1.msra.mxu0 0.0
        %1380 = vmatprep.subr.mxu0 0.0
        %1381 = vmatpush1.msra.mxu0 0.0
        %1382 = vmatprep.subr.mxu0 0.0
        %1383 = vmatpush1.msra.mxu0 0.0
        %1384 = vmatprep.subr.mxu0 0.0
        %1385 = vmatpush1.msra.mxu0 0.0
        %1386 = vmatprep.subr.mxu0 0.0
        %1387 = vmatpush1.msra.mxu0 0.0
        %1388 = vmatprep.subr.mxu0 0.0
        %1389 = vmatpush1.msra.mxu0 0.0
        %1390 = vmatprep.subr.mxu0 0.0
        %1391 = vmatpush1.msra.mxu0 0.0
        %1392 = vmatprep.subr.mxu0 0.0
        %1393 = vmatpush1.msra.mxu0 0.0
        %1394 = vmatprep.subr.mxu0 0.0
        %1395 = vmatpush1.msra.mxu0 0.0
        %1396 = vmatprep.subr.mxu0 0.0
        %1397 = vmatpush1.msra.mxu0 0.0
        %1398 = vmatprep.subr.mxu0 0.0
        %1399 = vmatpush1.msra.mxu0 0.0
        %1400 = vmatprep.subr.mxu0 0.0
        %1401 = vmatpush1.msra.mxu0 0.0
        %1402 = vmatprep.subr.mxu0 0.0
        %1403 = vmatpush1.msra.mxu0 0.0
        %1404 = vmatprep.subr.mxu0 0.0
        %1405 = vmatpush1.msra.mxu0 0.0
        %1406 = vmatprep.subr.mxu0 0.0
        %1407 = vmatpush1.msra.mxu0 0.0
        %1408 = vmatprep.mubr.f32.mxu0 0.0
        %1409 = vmatmul.mubr.f32.gmra.mrb[0].mxu0 %v1333
        %v1410 = vpop.f32.mrb[0].mxu0
        %v1411 = vadd.f32 0.0, %v1410
        %v1412 = vpop.f32.mrb[0].mxu0
        %v1413 = vadd.f32 0.0, %v1412
        %1414 = vmatprep.mubr.f32.mxu0 0.0
        %1415 = vmatmul.mubr.f32.gmra.mrb[0].mxu0 %v1336
        %v1416 = vpop.f32.mrb[0].mxu0
        %v1417 = vadd.f32 0.0, %v1416
        %v1418 = vpop.f32.mrb[0].mxu0
        %v1419 = vadd.f32 0.0, %v1418
        %1420 = vmatprep.mubr.f32.mxu0 0.0
        %1421 = vmatmul.mubr.f32.gmra.mrb[0].mxu0 %v1339
        %v1422 = vpop.f32.mrb[0].mxu0
        %v1423 = vadd.f32 0.0, %v1422
        %v1424 = vpop.f32.mrb[0].mxu0
        %v1425 = vadd.f32 0.0, %v1424
        %1426 = vmatprep.mubr.f32.mxu0 0.0
        %1427 = vmatmul.mubr.f32.gmra.mrb[0].mxu0 %v1342
        %v1428 = vpop.f32.mrb[0].mxu0
        %v1429 = vadd.f32 0.0, %v1428
        %v1430 = vpop.f32.mrb[0].mxu0
        %v1431 = vadd.f32 0.0, %v1430
        %1432 = vdwg.mxu0
        %v1433 = vadd.f32 %v1235, %v1411
        %v1434 = vadd.f32 %v1236, %v1413
        %v1435 = vadd.f32 %v1237, %v1417
        %v1436 = vadd.f32 %v1238, %v1419
        %v1437 = vadd.f32 %v1239, %v1423
        %v1438 = vadd.f32 %v1240, %v1425
        %v1439 = vadd.f32 %v1241, %v1429
        %v1440 = vadd.f32 %v1242, %v1431
        %1441 = vrot.lane.b32.xlu0 %v401, 15
        %v1442 = vpop.permute.xlu0 %1441
        %1443 = vrot.lane.b32.xlu0 %v405, 15
        %v1444 = vpop.permute.xlu0 %1443
        %v1445 = vsel %vm815, %v1442, %v1444
        %v1449 = vmul.f32 %v1243, %v1442
        %v1450 = vmul.f32 %v1244, %v1445
        %v1451 = vmul.f32 %v1245, %v1444
        %v1452 = vmul.f32 %v1246, %v1442
        %v1453 = vmul.f32 %v1247, %v1445
        %v1454 = vmul.f32 %v1248, %v1444
        %v1455 = vmul.f32 %v1249, %v1442
        %v1456 = vmul.f32 %v1250, %v1445
        %v1457 = vmul.f32 %v1251, %v1444
        %v1458 = vmul.f32 %v1252, %v1442
        %v1459 = vmul.f32 %v1253, %v1445
        %v1460 = vmul.f32 %v1254, %v1444
        %s1461 = scalar_lea.vmem [#allocation7], 192
        %v1462 = vld [vmem:[%s1461] sm:$0xff]
        %v1463 = vld [vmem:[%s1461 + $0x8] sm:$0xff]
        %v1464 = vld [vmem:[%s1461 + $0x10] sm:$0xff]
        %v1465 = vld [vmem:[%s1461 + $0x18] sm:$0xff]
        %1478 = vrot.lane.b32.xlu0 %v1449, 113
        %v1479 = vpop.permute.xlu0 %1478
        %1480 = vrot.lane.b32.xlu0 %v1450, 113
        %v1481 = vpop.permute.xlu0 %1480
        %1482 = vrot.lane.b32.xlu0 %v1451, 113
        %v1483 = vpop.permute.xlu0 %1482
        %1484 = vrot.lane.b32.xlu0 %v1452, 113
        %v1485 = vpop.permute.xlu0 %1484
        %1486 = vrot.lane.b32.xlu0 %v1453, 113
        %v1487 = vpop.permute.xlu0 %1486
        %1488 = vrot.lane.b32.xlu0 %v1454, 113
        %v1489 = vpop.permute.xlu0 %1488
        %1490 = vrot.lane.b32.xlu0 %v1455, 113
        %v1491 = vpop.permute.xlu0 %1490
        %1492 = vrot.lane.b32.xlu0 %v1456, 113
        %v1493 = vpop.permute.xlu0 %1492
        %1494 = vrot.lane.b32.xlu0 %v1457, 113
        %v1495 = vpop.permute.xlu0 %1494
        %1496 = vrot.lane.b32.xlu0 %v1458, 113
        %v1497 = vpop.permute.xlu0 %1496
        %1498 = vrot.lane.b32.xlu0 %v1459, 113
        %v1499 = vpop.permute.xlu0 %1498
        %1500 = vrot.lane.b32.xlu0 %v1460, 113
        %v1501 = vpop.permute.xlu0 %1500
        %v1502 = vsel %vm757, %v1479, %v1481
        %v1503 = vsel %vm757, %v1481, %v1483
        %v1504 = vsel %vm757, %v1485, %v1487
        %v1505 = vsel %vm757, %v1487, %v1489
        %v1506 = vsel %vm757, %v1491, %v1493
        %v1507 = vsel %vm757, %v1493, %v1495
        %v1508 = vsel %vm757, %v1497, %v1499
        %v1509 = vsel %vm757, %v1499, %v1501
        %v1519 = vsel %vm489, %v1462, 0
        %v1522 = vsel %vm489, %v1463, 0
        %v1525 = vsel %vm489, %v1464, 0
        %v1528 = vsel %vm489, %v1465, 0
        %1530 = vmatprep.subr.mxu0 %v1503
        %1531 = vmatpush1.msra.mxu0 %v1502
        %1532 = vmatprep.subr.mxu0 %v1505
        %1533 = vmatpush1.msra.mxu0 %v1504
        %1534 = vmatprep.subr.mxu0 %v1507
        %1535 = vmatpush1.msra.mxu0 %v1506
        %1536 = vmatprep.subr.mxu0 %v1509
        %1537 = vmatpush1.msra.mxu0 %v1508
        %1538 = vmatprep.subr.mxu0 0.0
        %1539 = vmatpush1.msra.mxu0 0.0
        %1540 = vmatprep.subr.mxu0 0.0
        %1541 = vmatpush1.msra.mxu0 0.0
        %1542 = vmatprep.subr.mxu0 0.0
        %1543 = vmatpush1.msra.mxu0 0.0
        %1544 = vmatprep.subr.mxu0 0.0
        %1545 = vmatpush1.msra.mxu0 0.0
        %1546 = vmatprep.subr.mxu0 0.0
        %1547 = vmatpush1.msra.mxu0 0.0
        %1548 = vmatprep.subr.mxu0 0.0
        %1549 = vmatpush1.msra.mxu0 0.0
        %1550 = vmatprep.subr.mxu0 0.0
        %1551 = vmatpush1.msra.mxu0 0.0
        %1552 = vmatprep.subr.mxu0 0.0
        %1553 = vmatpush1.msra.mxu0 0.0
        %1554 = vmatprep.subr.mxu0 0.0
        %1555 = vmatpush1.msra.mxu0 0.0
        %1556 = vmatprep.subr.mxu0 0.0
        %1557 = vmatpush1.msra.mxu0 0.0
        %1558 = vmatprep.subr.mxu0 0.0
        %1559 = vmatpush1.msra.mxu0 0.0
        %1560 = vmatprep.subr.mxu0 0.0
        %1561 = vmatpush1.msra.mxu0 0.0
        %1562 = vmatprep.subr.mxu0 0.0
        %1563 = vmatpush1.msra.mxu0 0.0
        %1564 = vmatprep.subr.mxu0 0.0
        %1565 = vmatpush1.msra.mxu0 0.0
        %1566 = vmatprep.subr.mxu0 0.0
        %1567 = vmatpush1.msra.mxu0 0.0
        %1568 = vmatprep.subr.mxu0 0.0
        %1569 = vmatpush1.msra.mxu0 0.0
        %1570 = vmatprep.subr.mxu0 0.0
        %1571 = vmatpush1.msra.mxu0 0.0
        %1572 = vmatprep.subr.mxu0 0.0
        %1573 = vmatpush1.msra.mxu0 0.0
        %1574 = vmatprep.subr.mxu0 0.0
        %1575 = vmatpush1.msra.mxu0 0.0
        %1576 = vmatprep.subr.mxu0 0.0
        %1577 = vmatpush1.msra.mxu0 0.0
        %1578 = vmatprep.subr.mxu0 0.0
        %1579 = vmatpush1.msra.mxu0 0.0
        %1580 = vmatprep.subr.mxu0 0.0
        %1581 = vmatpush1.msra.mxu0 0.0
        %1582 = vmatprep.subr.mxu0 0.0
        %1583 = vmatpush1.msra.mxu0 0.0
        %1584 = vmatprep.subr.mxu0 0.0
        %1585 = vmatpush1.msra.mxu0 0.0
        %1586 = vmatprep.subr.mxu0 0.0
        %1587 = vmatpush1.msra.mxu0 0.0
        %1588 = vmatprep.subr.mxu0 0.0
        %1589 = vmatpush1.msra.mxu0 0.0
        %1590 = vmatprep.subr.mxu0 0.0
        %1591 = vmatpush1.msra.mxu0 0.0
        %1592 = vmatprep.subr.mxu0 0.0
        %1593 = vmatpush1.msra.mxu0 0.0
        %1594 = vmatprep.mubr.f32.mxu0 0.0
        %1595 = vmatmul.mubr.f32.gmra.mrb[0].mxu0 %v1519
        %v1596 = vpop.f32.mrb[0].mxu0
        %v1597 = vadd.f32 0.0, %v1596
        %v1598 = vpop.f32.mrb[0].mxu0
        %v1599 = vadd.f32 0.0, %v1598
        %1600 = vmatprep.mubr.f32.mxu0 0.0
        %1601 = vmatmul.mubr.f32.gmra.mrb[0].mxu0 %v1522
        %v1602 = vpop.f32.mrb[0].mxu0
        %v1603 = vadd.f32 0.0, %v1602
        %v1604 = vpop.f32.mrb[0].mxu0
        %v1605 = vadd.f32 0.0, %v1604
        %1606 = vmatprep.mubr.f32.mxu0 0.0
        %1607 = vmatmul.mubr.f32.gmra.mrb[0].mxu0 %v1525
        %v1608 = vpop.f32.mrb[0].mxu0
        %v1609 = vadd.f32 0.0, %v1608
        %v1610 = vpop.f32.mrb[0].mxu0
        %v1611 = vadd.f32 0.0, %v1610
        %1612 = vmatprep.mubr.f32.mxu0 0.0
        %1613 = vmatmul.mubr.f32.gmra.mrb[0].mxu0 %v1528
        %v1614 = vpop.f32.mrb[0].mxu0
        %v1615 = vadd.f32 0.0, %v1614
        %v1616 = vpop.f32.mrb[0].mxu0
        %v1617 = vadd.f32 0.0, %v1616
        %1618 = vdwg.mxu0
        %v1619 = vadd.f32 %v1433, %v1597
        %v1620 = vadd.f32 %v1434, %v1599
        %v1621 = vadd.f32 %v1435, %v1603
        %v1622 = vadd.f32 %v1436, %v1605
        %v1623 = vadd.f32 %v1437, %v1609
        %v1624 = vadd.f32 %v1438, %v1611
        %v1625 = vadd.f32 %v1439, %v1615
        %v1626 = vadd.f32 %v1440, %v1617
        %s1627 = scalar_lea.vmem [#allocation7], 224
        %v1628 = vld [vmem:[%s1627] sm:$0xff]
        %v1629 = vld [vmem:[%s1627 + $0x8] sm:$0xff]
        %v1630 = vld [vmem:[%s1627 + $0x10] sm:$0xff]
        %v1631 = vld [vmem:[%s1627 + $0x18] sm:$0xff]
        %1644 = vrot.lane.b32.xlu0 %v1243, 112
        %v1645 = vpop.permute.xlu0 %1644
        %1646 = vrot.lane.b32.xlu0 %v1244, 112
        %v1647 = vpop.permute.xlu0 %1646
        %1648 = vrot.lane.b32.xlu0 %v1245, 112
        %v1649 = vpop.permute.xlu0 %1648
        %1650 = vrot.lane.b32.xlu0 %v1246, 112
        %v1651 = vpop.permute.xlu0 %1650
        %1652 = vrot.lane.b32.xlu0 %v1247, 112
        %v1653 = vpop.permute.xlu0 %1652
        %1654 = vrot.lane.b32.xlu0 %v1248, 112
        %v1655 = vpop.permute.xlu0 %1654
        %1656 = vrot.lane.b32.xlu0 %v1249, 112
        %v1657 = vpop.permute.xlu0 %1656
        %1658 = vrot.lane.b32.xlu0 %v1250, 112
        %v1659 = vpop.permute.xlu0 %1658
        %1660 = vrot.lane.b32.xlu0 %v1251, 112
        %v1661 = vpop.permute.xlu0 %1660
        %1662 = vrot.lane.b32.xlu0 %v1252, 112
        %v1663 = vpop.permute.xlu0 %1662
        %1664 = vrot.lane.b32.xlu0 %v1253, 112
        %v1665 = vpop.permute.xlu0 %1664
        %1666 = vrot.lane.b32.xlu0 %v1254, 112
        %v1667 = vpop.permute.xlu0 %1666
        %vm1668 = vcmask 916480
        %v1669 = vsel %vm1668, %v1645, %v1647
        %v1670 = vsel %vm1668, %v1647, %v1649
        %v1671 = vsel %vm1668, %v1651, %v1653
        %v1672 = vsel %vm1668, %v1653, %v1655
        %v1673 = vsel %vm1668, %v1657, %v1659
        %v1674 = vsel %vm1668, %v1659, %v1661
        %v1675 = vsel %vm1668, %v1663, %v1665
        %v1676 = vsel %vm1668, %v1665, %v1667
        %v1686 = vsel %vm489, %v1628, 0
        %v1689 = vsel %vm489, %v1629, 0
        %v1692 = vsel %vm489, %v1630, 0
        %v1695 = vsel %vm489, %v1631, 0
        %1697 = vmatprep.subr.mxu0 %v1670
        %1698 = vmatpush1.msra.mxu0 %v1669
        %1699 = vmatprep.subr.mxu0 %v1672
        %1700 = vmatpush1.msra.mxu0 %v1671
        %1701 = vmatprep.subr.mxu0 %v1674
        %1702 = vmatpush1.msra.mxu0 %v1673
        %1703 = vmatprep.subr.mxu0 %v1676
        %1704 = vmatpush1.msra.mxu0 %v1675
        %1705 = vmatprep.subr.mxu0 0.0
        %1706 = vmatpush1.msra.mxu0 0.0
        %1707 = vmatprep.subr.mxu0 0.0
        %1708 = vmatpush1.msra.mxu0 0.0
        %1709 = vmatprep.subr.mxu0 0.0
        %1710 = vmatpush1.msra.mxu0 0.0
        %1711 = vmatprep.subr.mxu0 0.0
        %1712 = vmatpush1.msra.mxu0 0.0
        %1713 = vmatprep.subr.mxu0 0.0
        %1714 = vmatpush1.msra.mxu0 0.0
        %1715 = vmatprep.subr.mxu0 0.0
        %1716 = vmatpush1.msra.mxu0 0.0
        %1717 = vmatprep.subr.mxu0 0.0
        %1718 = vmatpush1.msra.mxu0 0.0
        %1719 = vmatprep.subr.mxu0 0.0
        %1720 = vmatpush1.msra.mxu0 0.0
        %1721 = vmatprep.subr.mxu0 0.0
        %1722 = vmatpush1.msra.mxu0 0.0
        %1723 = vmatprep.subr.mxu0 0.0
        %1724 = vmatpush1.msra.mxu0 0.0
        %1725 = vmatprep.subr.mxu0 0.0
        %1726 = vmatpush1.msra.mxu0 0.0
        %1727 = vmatprep.subr.mxu0 0.0
        %1728 = vmatpush1.msra.mxu0 0.0
        %1729 = vmatprep.subr.mxu0 0.0
        %1730 = vmatpush1.msra.mxu0 0.0
        %1731 = vmatprep.subr.mxu0 0.0
        %1732 = vmatpush1.msra.mxu0 0.0
        %1733 = vmatprep.subr.mxu0 0.0
        %1734 = vmatpush1.msra.mxu0 0.0
        %1735 = vmatprep.subr.mxu0 0.0
        %1736 = vmatpush1.msra.mxu0 0.0
        %1737 = vmatprep.subr.mxu0 0.0
        %1738 = vmatpush1.msra.mxu0 0.0
        %1739 = vmatprep.subr.mxu0 0.0
        %1740 = vmatpush1.msra.mxu0 0.0
        %1741 = vmatprep.subr.mxu0 0.0
        %1742 = vmatpush1.msra.mxu0 0.0
        %1743 = vmatprep.subr.mxu0 0.0
        %1744 = vmatpush1.msra.mxu0 0.0
        %1745 = vmatprep.subr.mxu0 0.0
        %1746 = vmatpush1.msra.mxu0 0.0
        %1747 = vmatprep.subr.mxu0 0.0
        %1748 = vmatpush1.msra.mxu0 0.0
        %1749 = vmatprep.subr.mxu0 0.0
        %1750 = vmatpush1.msra.mxu0 0.0
        %1751 = vmatprep.subr.mxu0 0.0
        %1752 = vmatpush1.msra.mxu0 0.0
        %1753 = vmatprep.subr.mxu0 0.0
        %1754 = vmatpush1.msra.mxu0 0.0
        %1755 = vmatprep.subr.mxu0 0.0
        %1756 = vmatpush1.msra.mxu0 0.0
        %1757 = vmatprep.subr.mxu0 0.0
        %1758 = vmatpush1.msra.mxu0 0.0
        %1759 = vmatprep.subr.mxu0 0.0
        %1760 = vmatpush1.msra.mxu0 0.0
        %1761 = vmatprep.mubr.f32.mxu0 0.0
        %1762 = vmatmul.mubr.f32.gmra.mrb[0].mxu0 %v1686
        %v1763 = vpop.f32.mrb[0].mxu0
        %v1764 = vadd.f32 0.0, %v1763
        %v1765 = vpop.f32.mrb[0].mxu0
        %v1766 = vadd.f32 0.0, %v1765
        %1767 = vmatprep.mubr.f32.mxu0 0.0
        %1768 = vmatmul.mubr.f32.gmra.mrb[0].mxu0 %v1689
        %v1769 = vpop.f32.mrb[0].mxu0
        %v1770 = vadd.f32 0.0, %v1769
        %v1771 = vpop.f32.mrb[0].mxu0
        %v1772 = vadd.f32 0.0, %v1771
        %1773 = vmatprep.mubr.f32.mxu0 0.0
        %1774 = vmatmul.mubr.f32.gmra.mrb[0].mxu0 %v1692
        %v1775 = vpop.f32.mrb[0].mxu0
        %v1776 = vadd.f32 0.0, %v1775
        %v1777 = vpop.f32.mrb[0].mxu0
        %v1778 = vadd.f32 0.0, %v1777
        %1779 = vmatprep.mubr.f32.mxu0 0.0
        %1780 = vmatmul.mubr.f32.gmra.mrb[0].mxu0 %v1695
        %v1781 = vpop.f32.mrb[0].mxu0
        %v1782 = vadd.f32 0.0, %v1781
        %v1783 = vpop.f32.mrb[0].mxu0
        %v1784 = vadd.f32 0.0, %v1783
        %1785 = vdwg.mxu0
        %v1786 = vadd.f32 %v1619, %v1764
        %v1787 = vadd.f32 %v1620, %v1766
        %v1788 = vadd.f32 %v1621, %v1770
        %v1789 = vadd.f32 %v1622, %v1772
        %v1790 = vadd.f32 %v1623, %v1776
        %v1791 = vadd.f32 %v1624, %v1778
        %v1792 = vadd.f32 %v1625, %v1782
        %v1793 = vadd.f32 %v1626, %v1784
        %1794 = vrot.lane.b32.xlu0 %v748, 17
        %v1795 = vpop.permute.xlu0 %1794
        %1796 = vrot.lane.b32.xlu0 %v752, 17
        %v1797 = vpop.permute.xlu0 %1796
        %v1798 = vsel %vm347, %v1795, %v1797
        %v1802 = vmul.f32 %v1243, %v1795
        %v1803 = vmul.f32 %v1244, %v1798
        %v1804 = vmul.f32 %v1245, %v1797
        %v1805 = vmul.f32 %v1246, %v1795
        %v1806 = vmul.f32 %v1247, %v1798
        %v1807 = vmul.f32 %v1248, %v1797
        %v1808 = vmul.f32 %v1249, %v1795
        %v1809 = vmul.f32 %v1250, %v1798
        %v1810 = vmul.f32 %v1251, %v1797
        %v1811 = vmul.f32 %v1252, %v1795
        %v1812 = vmul.f32 %v1253, %v1798
        %v1813 = vmul.f32 %v1254, %v1797
        %s1814 = scalar_lea.vmem [#allocation7], 256
        %v1815 = vld [vmem:[%s1814] sm:$0xff]
        %v1816 = vld [vmem:[%s1814 + $0x8] sm:$0xff]
        %v1817 = vld [vmem:[%s1814 + $0x10] sm:$0xff]
        %v1818 = vld [vmem:[%s1814 + $0x18] sm:$0xff]
        %1831 = vrot.lane.b32.xlu0 %v1802, 111
        %v1832 = vpop.permute.xlu0 %1831
        %1833 = vrot.lane.b32.xlu0 %v1803, 111
        %v1834 = vpop.permute.xlu0 %1833
        %1835 = vrot.lane.b32.xlu0 %v1804, 111
        %v1836 = vpop.permute.xlu0 %1835
        %1837 = vrot.lane.b32.xlu0 %v1805, 111
        %v1838 = vpop.permute.xlu0 %1837
        %1839 = vrot.lane.b32.xlu0 %v1806, 111
        %v1840 = vpop.permute.xlu0 %1839
        %1841 = vrot.lane.b32.xlu0 %v1807, 111
        %v1842 = vpop.permute.xlu0 %1841
        %1843 = vrot.lane.b32.xlu0 %v1808, 111
        %v1844 = vpop.permute.xlu0 %1843
        %1845 = vrot.lane.b32.xlu0 %v1809, 111
        %v1846 = vpop.permute.xlu0 %1845
        %1847 = vrot.lane.b32.xlu0 %v1810, 111
        %v1848 = vpop.permute.xlu0 %1847
        %1849 = vrot.lane.b32.xlu0 %v1811, 111
        %v1850 = vpop.permute.xlu0 %1849
        %1851 = vrot.lane.b32.xlu0 %v1812, 111
        %v1852 = vpop.permute.xlu0 %1851
        %1853 = vrot.lane.b32.xlu0 %v1813, 111
        %v1854 = vpop.permute.xlu0 %1853
        %v1855 = vsel %vm410, %v1832, %v1834
        %v1856 = vsel %vm410, %v1834, %v1836
        %v1857 = vsel %vm410, %v1838, %v1840
        %v1858 = vsel %vm410, %v1840, %v1842
        %v1859 = vsel %vm410, %v1844, %v1846
        %v1860 = vsel %vm410, %v1846, %v1848
        %v1861 = vsel %vm410, %v1850, %v1852
        %v1862 = vsel %vm410, %v1852, %v1854
        %v1872 = vsel %vm489, %v1815, 0
        %v1875 = vsel %vm489, %v1816, 0
        %v1878 = vsel %vm489, %v1817, 0
        %v1881 = vsel %vm489, %v1818, 0
        %1883 = vmatprep.subr.mxu0 %v1856
        %1884 = vmatpush1.msra.mxu0 %v1855
        %1885 = vmatprep.subr.mxu0 %v1858
        %1886 = vmatpush1.msra.mxu0 %v1857
        %1887 = vmatprep.subr.mxu0 %v1860
        %1888 = vmatpush1.msra.mxu0 %v1859
        %1889 = vmatprep.subr.mxu0 %v1862
        %1890 = vmatpush1.msra.mxu0 %v1861
        %1891 = vmatprep.subr.mxu0 0.0
        %1892 = vmatpush1.msra.mxu0 0.0
        %1893 = vmatprep.subr.mxu0 0.0
        %1894 = vmatpush1.msra.mxu0 0.0
        %1895 = vmatprep.subr.mxu0 0.0
        %1896 = vmatpush1.msra.mxu0 0.0
        %1897 = vmatprep.subr.mxu0 0.0
        %1898 = vmatpush1.msra.mxu0 0.0
        %1899 = vmatprep.subr.mxu0 0.0
        %1900 = vmatpush1.msra.mxu0 0.0
        %1901 = vmatprep.subr.mxu0 0.0
        %1902 = vmatpush1.msra.mxu0 0.0
        %1903 = vmatprep.subr.mxu0 0.0
        %1904 = vmatpush1.msra.mxu0 0.0
        %1905 = vmatprep.subr.mxu0 0.0
        %1906 = vmatpush1.msra.mxu0 0.0
        %1907 = vmatprep.subr.mxu0 0.0
        %1908 = vmatpush1.msra.mxu0 0.0
        %1909 = vmatprep.subr.mxu0 0.0
        %1910 = vmatpush1.msra.mxu0 0.0
        %1911 = vmatprep.subr.mxu0 0.0
        %1912 = vmatpush1.msra.mxu0 0.0
        %1913 = vmatprep.subr.mxu0 0.0
        %1914 = vmatpush1.msra.mxu0 0.0
        %1915 = vmatprep.subr.mxu0 0.0
        %1916 = vmatpush1.msra.mxu0 0.0
        %1917 = vmatprep.subr.mxu0 0.0
        %1918 = vmatpush1.msra.mxu0 0.0
        %1919 = vmatprep.subr.mxu0 0.0
        %1920 = vmatpush1.msra.mxu0 0.0
        %1921 = vmatprep.subr.mxu0 0.0
        %1922 = vmatpush1.msra.mxu0 0.0
        %1923 = vmatprep.subr.mxu0 0.0
        %1924 = vmatpush1.msra.mxu0 0.0
        %1925 = vmatprep.subr.mxu0 0.0
        %1926 = vmatpush1.msra.mxu0 0.0
        %1927 = vmatprep.subr.mxu0 0.0
        %1928 = vmatpush1.msra.mxu0 0.0
        %1929 = vmatprep.subr.mxu0 0.0
        %1930 = vmatpush1.msra.mxu0 0.0
        %1931 = vmatprep.subr.mxu0 0.0
        %1932 = vmatpush1.msra.mxu0 0.0
        %1933 = vmatprep.subr.mxu0 0.0
        %1934 = vmatpush1.msra.mxu0 0.0
        %1935 = vmatprep.subr.mxu0 0.0
        %1936 = vmatpush1.msra.mxu0 0.0
        %1937 = vmatprep.subr.mxu0 0.0
        %1938 = vmatpush1.msra.mxu0 0.0
        %1939 = vmatprep.subr.mxu0 0.0
        %1940 = vmatpush1.msra.mxu0 0.0
        %1941 = vmatprep.subr.mxu0 0.0
        %1942 = vmatpush1.msra.mxu0 0.0
        %1943 = vmatprep.subr.mxu0 0.0
        %1944 = vmatpush1.msra.mxu0 0.0
        %1945 = vmatprep.subr.mxu0 0.0
        %1946 = vmatpush1.msra.mxu0 0.0
        %1947 = vmatprep.mubr.f32.mxu0 0.0
        %1948 = vmatmul.mubr.f32.gmra.mrb[0].mxu0 %v1872
        %v1949 = vpop.f32.mrb[0].mxu0
        %v1950 = vadd.f32 0.0, %v1949
        %v1951 = vpop.f32.mrb[0].mxu0
        %v1952 = vadd.f32 0.0, %v1951
        %1953 = vmatprep.mubr.f32.mxu0 0.0
        %1954 = vmatmul.mubr.f32.gmra.mrb[0].mxu0 %v1875
        %v1955 = vpop.f32.mrb[0].mxu0
        %v1956 = vadd.f32 0.0, %v1955
        %v1957 = vpop.f32.mrb[0].mxu0
        %v1958 = vadd.f32 0.0, %v1957
        %1959 = vmatprep.mubr.f32.mxu0 0.0
        %1960 = vmatmul.mubr.f32.gmra.mrb[0].mxu0 %v1878
        %v1961 = vpop.f32.mrb[0].mxu0
        %v1962 = vadd.f32 0.0, %v1961
        %v1963 = vpop.f32.mrb[0].mxu0
        %v1964 = vadd.f32 0.0, %v1963
        %1965 = vmatprep.mubr.f32.mxu0 0.0
        %1966 = vmatmul.mubr.f32.gmra.mrb[0].mxu0 %v1881
        %v1967 = vpop.f32.mrb[0].mxu0
        %v1968 = vadd.f32 0.0, %v1967
        %v1969 = vpop.f32.mrb[0].mxu0
        %v1970 = vadd.f32 0.0, %v1969
        %1971 = vdwg.mxu0
        %v1972 = vadd.f32 %v1786, %v1950
        %v1973 = vadd.f32 %v1787, %v1952
        %v1974 = vadd.f32 %v1788, %v1956
        %v1975 = vadd.f32 %v1789, %v1958
        %v1976 = vadd.f32 %v1790, %v1962
        %v1977 = vadd.f32 %v1791, %v1964
        %v1978 = vadd.f32 %v1792, %v1968
        %v1979 = vadd.f32 %v1793, %v1970
        %1981 = vset.pattern.permute.xlu0 0
        %1982 = vperm.xlu0 %1981, %v336
        %v1983 = vpop.permute.xlu0 %1982
        %1986 = vset.pattern.permute.xlu0 0
        %1987 = vperm.xlu0 %1986, %v337
        %v1988 = vpop.permute.xlu0 %1987
        %1991 = vset.pattern.permute.xlu0 0
        %1992 = vperm.xlu0 %1991, %v338
        %v1993 = vpop.permute.xlu0 %1992
        %1996 = vset.pattern.permute.xlu0 0
        %1997 = vperm.xlu0 %1996, %v339
        %v1998 = vpop.permute.xlu0 %1997
        %v2000 = vadd.f32 %v1972, %v1983
        %v2001 = vadd.f32 %v1973, %v1983
        %v2002 = vadd.f32 %v1974, %v1988
        %v2003 = vadd.f32 %v1975, %v1988
        %v2004 = vadd.f32 %v1976, %v1993
        %v2005 = vadd.f32 %v1977, %v1993
        %v2006 = vadd.f32 %v1978, %v1998
        %v2007 = vadd.f32 %v1979, %v1998
        %v2008 = vmax.f32 %v2000, 0.0
        %v2009 = vmax.f32 %v2001, 0.0
        %v2010 = vmax.f32 %v2002, 0.0
        %v2011 = vmax.f32 %v2003, 0.0
        %v2012 = vmax.f32 %v2004, 0.0
        %v2013 = vmax.f32 %v2005, 0.0
        %v2014 = vmax.f32 %v2006, 0.0
        %v2015 = vmax.f32 %v2007, 0.0
        %2016 = vst [vmem:[#allocation3 + $0x8] sm:$0xff] %v2008
        %2017 = vst [vmem:[#allocation3 + $0x10] sm:$0xff] %v2009
        %2018 = vst [vmem:[#allocation3 + $0x28] sm:$0xff] %v2010
        %2019 = vst [vmem:[#allocation3 + $0x30] sm:$0xff] %v2011
        %2020 = vst [vmem:[#allocation3 + $0x48] sm:$0xff] %v2012
        %2021 = vst [vmem:[#allocation3 + $0x50] sm:$0xff] %v2013
        %2022 = vst [vmem:[#allocation3 + $0x68] sm:$0xff] %v2014
        %2023 = vst [vmem:[#allocation3 + $0x70] sm:$0xff] %v2015
        %v2024 = vld [vmem:[#allocation3] sm:$0xff]
        %v2025 = vld [vmem:[#allocation3 + $0x8] sm:$0xff]
        %v2026 = vld [vmem:[#allocation3 + $0x10] sm:$0xff]
        %v2027 = vld [vmem:[#allocation3 + $0x20] sm:$0xff]
        %v2028 = vld [vmem:[#allocation3 + $0x28] sm:$0xff]
        %v2029 = vld [vmem:[#allocation3 + $0x30] sm:$0xff]
        %v2030 = vld [vmem:[#allocation3 + $0x40] sm:$0xff]
        %v2031 = vld [vmem:[#allocation3 + $0x48] sm:$0xff]
        %v2032 = vld [vmem:[#allocation3 + $0x50] sm:$0xff]
        %v2033 = vld [vmem:[#allocation3 + $0x60] sm:$0xff]
        %v2034 = vld [vmem:[#allocation3 + $0x68] sm:$0xff]
        %v2035 = vld [vmem:[#allocation3 + $0x70] sm:$0xff]
        %v2036 = vmul.f32 %v2024, %v407
        %v2037 = vmul.f32 %v2025, %v411
        %v2038 = vmul.f32 %v2026, %v409
        %v2039 = vmul.f32 %v2027, %v407
        %v2040 = vmul.f32 %v2028, %v411
        %v2041 = vmul.f32 %v2029, %v409
        %v2042 = vmul.f32 %v2030, %v407
        %v2043 = vmul.f32 %v2031, %v411
        %v2044 = vmul.f32 %v2032, %v409
        %v2045 = vmul.f32 %v2033, %v407
        %v2046 = vmul.f32 %v2034, %v411
        %v2047 = vmul.f32 %v2035, %v409
        %v2048 = vld [vmem:[#allocation9] sm:$0xff]
        %v2049 = vld [vmem:[#allocation9 + $0x8] sm:$0xff]
        %v2050 = vld [vmem:[#allocation9 + $0x10] sm:$0xff]
        %v2051 = vld [vmem:[#allocation9 + $0x18] sm:$0xff]
        %s2052 = scalar_lea.vmem [#allocation9], 32
        %v2053 = vld [vmem:[%s2052] sm:$0xff]
        %v2054 = vld [vmem:[%s2052 + $0x8] sm:$0xff]
        %v2055 = vld [vmem:[%s2052 + $0x10] sm:$0xff]
        %v2056 = vld [vmem:[%s2052 + $0x18] sm:$0xff]
        %2069 = vrot.lane.b32.xlu0 %v2024, 16
        %v2070 = vpop.permute.xlu0 %2069
        %2071 = vrot.lane.b32.xlu0 %v2025, 16
        %v2072 = vpop.permute.xlu0 %2071
        %2073 = vrot.lane.b32.xlu0 %v2026, 16
        %v2074 = vpop.permute.xlu0 %2073
        %2075 = vrot.lane.b32.xlu0 %v2027, 16
        %v2076 = vpop.permute.xlu0 %2075
        %2077 = vrot.lane.b32.xlu0 %v2028, 16
        %v2078 = vpop.permute.xlu0 %2077
        %2079 = vrot.lane.b32.xlu0 %v2029, 16
        %v2080 = vpop.permute.xlu0 %2079
        %2081 = vrot.lane.b32.xlu0 %v2030, 16
        %v2082 = vpop.permute.xlu0 %2081
        %2083 = vrot.lane.b32.xlu0 %v2031, 16
        %v2084 = vpop.permute.xlu0 %2083
        %2085 = vrot.lane.b32.xlu0 %v2032, 16
        %v2086 = vpop.permute.xlu0 %2085
        %2087 = vrot.lane.b32.xlu0 %v2033, 16
        %v2088 = vpop.permute.xlu0 %2087
        %2089 = vrot.lane.b32.xlu0 %v2034, 16
        %v2090 = vpop.permute.xlu0 %2089
        %2091 = vrot.lane.b32.xlu0 %v2035, 16
        %v2092 = vpop.permute.xlu0 %2091
        %v2093 = vsel %vm472, %v2070, %v2072
        %v2094 = vsel %vm472, %v2072, %v2074
        %v2095 = vsel %vm472, %v2076, %v2078
        %v2096 = vsel %vm472, %v2078, %v2080
        %v2097 = vsel %vm472, %v2082, %v2084
        %v2098 = vsel %vm472, %v2084, %v2086
        %v2099 = vsel %vm472, %v2088, %v2090
        %v2100 = vsel %vm472, %v2090, %v2092
        %v2110 = vsel %vm489, %v2053, 0
        %v2113 = vsel %vm489, %v2054, 0
        %v2116 = vsel %vm489, %v2055, 0
        %v2119 = vsel %vm489, %v2056, 0
        %2121 = vmatprep.subr.mxu0 %v2094
        %2122 = vmatpush1.msra.mxu0 %v2093
        %2123 = vmatprep.subr.mxu0 %v2096
        %2124 = vmatpush1.msra.mxu0 %v2095
        %2125 = vmatprep.subr.mxu0 %v2098
        %2126 = vmatpush1.msra.mxu0 %v2097
        %2127 = vmatprep.subr.mxu0 %v2100
        %2128 = vmatpush1.msra.mxu0 %v2099
        %2129 = vmatprep.subr.mxu0 0.0
        %2130 = vmatpush1.msra.mxu0 0.0
        %2131 = vmatprep.subr.mxu0 0.0
        %2132 = vmatpush1.msra.mxu0 0.0
        %2133 = vmatprep.subr.mxu0 0.0
        %2134 = vmatpush1.msra.mxu0 0.0
        %2135 = vmatprep.subr.mxu0 0.0
        %2136 = vmatpush1.msra.mxu0 0.0
        %2137 = vmatprep.subr.mxu0 0.0
        %2138 = vmatpush1.msra.mxu0 0.0
        %2139 = vmatprep.subr.mxu0 0.0
        %2140 = vmatpush1.msra.mxu0 0.0
        %2141 = vmatprep.subr.mxu0 0.0
        %2142 = vmatpush1.msra.mxu0 0.0
        %2143 = vmatprep.subr.mxu0 0.0
        %2144 = vmatpush1.msra.mxu0 0.0
        %2145 = vmatprep.subr.mxu0 0.0
        %2146 = vmatpush1.msra.mxu0 0.0
        %2147 = vmatprep.subr.mxu0 0.0
        %2148 = vmatpush1.msra.mxu0 0.0
        %2149 = vmatprep.subr.mxu0 0.0
        %2150 = vmatpush1.msra.mxu0 0.0
        %2151 = vmatprep.subr.mxu0 0.0
        %2152 = vmatpush1.msra.mxu0 0.0
        %2153 = vmatprep.subr.mxu0 0.0
        %2154 = vmatpush1.msra.mxu0 0.0
        %2155 = vmatprep.subr.mxu0 0.0
        %2156 = vmatpush1.msra.mxu0 0.0
        %2157 = vmatprep.subr.mxu0 0.0
        %2158 = vmatpush1.msra.mxu0 0.0
        %2159 = vmatprep.subr.mxu0 0.0
        %2160 = vmatpush1.msra.mxu0 0.0
        %2161 = vmatprep.subr.mxu0 0.0
        %2162 = vmatpush1.msra.mxu0 0.0
        %2163 = vmatprep.subr.mxu0 0.0
        %2164 = vmatpush1.msra.mxu0 0.0
        %2165 = vmatprep.subr.mxu0 0.0
        %2166 = vmatpush1.msra.mxu0 0.0
        %2167 = vmatprep.subr.mxu0 0.0
        %2168 = vmatpush1.msra.mxu0 0.0
        %2169 = vmatprep.subr.mxu0 0.0
        %2170 = vmatpush1.msra.mxu0 0.0
        %2171 = vmatprep.subr.mxu0 0.0
        %2172 = vmatpush1.msra.mxu0 0.0
        %2173 = vmatprep.subr.mxu0 0.0
        %2174 = vmatpush1.msra.mxu0 0.0
        %2175 = vmatprep.subr.mxu0 0.0
        %2176 = vmatpush1.msra.mxu0 0.0
        %2177 = vmatprep.subr.mxu0 0.0
        %2178 = vmatpush1.msra.mxu0 0.0
        %2179 = vmatprep.subr.mxu0 0.0
        %2180 = vmatpush1.msra.mxu0 0.0
        %2181 = vmatprep.subr.mxu0 0.0
        %2182 = vmatpush1.msra.mxu0 0.0
        %2183 = vmatprep.subr.mxu0 0.0
        %2184 = vmatpush1.msra.mxu0 0.0
        %2185 = vmatprep.mubr.f32.mxu0 0.0
        %2186 = vmatmul.mubr.f32.gmra.mrb[0].mxu0 %v2110
        %v2187 = vpop.f32.mrb[0].mxu0
        %v2188 = vadd.f32 0.0, %v2187
        %v2189 = vpop.f32.mrb[0].mxu0
        %v2190 = vadd.f32 0.0, %v2189
        %2191 = vmatprep.mubr.f32.mxu0 0.0
        %2192 = vmatmul.mubr.f32.gmra.mrb[0].mxu0 %v2113
        %v2193 = vpop.f32.mrb[0].mxu0
        %v2194 = vadd.f32 0.0, %v2193
        %v2195 = vpop.f32.mrb[0].mxu0
        %v2196 = vadd.f32 0.0, %v2195
        %2197 = vmatprep.mubr.f32.mxu0 0.0
        %2198 = vmatmul.mubr.f32.gmra.mrb[0].mxu0 %v2116
        %v2199 = vpop.f32.mrb[0].mxu0
        %v2200 = vadd.f32 0.0, %v2199
        %v2201 = vpop.f32.mrb[0].mxu0
        %v2202 = vadd.f32 0.0, %v2201
        %2203 = vmatprep.mubr.f32.mxu0 0.0
        %2204 = vmatmul.mubr.f32.gmra.mrb[0].mxu0 %v2119
        %v2205 = vpop.f32.mrb[0].mxu0
        %v2206 = vadd.f32 0.0, %v2205
        %v2207 = vpop.f32.mrb[0].mxu0
        %v2208 = vadd.f32 0.0, %v2207
        %2209 = vdwg.mxu0
        %2222 = vrot.lane.b32.xlu0 %v2036, 17
        %v2223 = vpop.permute.xlu0 %2222
        %2224 = vrot.lane.b32.xlu0 %v2037, 17
        %v2225 = vpop.permute.xlu0 %2224
        %2226 = vrot.lane.b32.xlu0 %v2038, 17
        %v2227 = vpop.permute.xlu0 %2226
        %2228 = vrot.lane.b32.xlu0 %v2039, 17
        %v2229 = vpop.permute.xlu0 %2228
        %2230 = vrot.lane.b32.xlu0 %v2040, 17
        %v2231 = vpop.permute.xlu0 %2230
        %2232 = vrot.lane.b32.xlu0 %v2041, 17
        %v2233 = vpop.permute.xlu0 %2232
        %2234 = vrot.lane.b32.xlu0 %v2042, 17
        %v2235 = vpop.permute.xlu0 %2234
        %2236 = vrot.lane.b32.xlu0 %v2043, 17
        %v2237 = vpop.permute.xlu0 %2236
        %2238 = vrot.lane.b32.xlu0 %v2044, 17
        %v2239 = vpop.permute.xlu0 %2238
        %2240 = vrot.lane.b32.xlu0 %v2045, 17
        %v2241 = vpop.permute.xlu0 %2240
        %2242 = vrot.lane.b32.xlu0 %v2046, 17
        %v2243 = vpop.permute.xlu0 %2242
        %2244 = vrot.lane.b32.xlu0 %v2047, 17
        %v2245 = vpop.permute.xlu0 %2244
        %v2246 = vsel %vm347, %v2223, %v2225
        %v2247 = vsel %vm347, %v2225, %v2227
        %v2248 = vsel %vm347, %v2229, %v2231
        %v2249 = vsel %vm347, %v2231, %v2233
        %v2250 = vsel %vm347, %v2235, %v2237
        %v2251 = vsel %vm347, %v2237, %v2239
        %v2252 = vsel %vm347, %v2241, %v2243
        %v2253 = vsel %vm347, %v2243, %v2245
        %v2263 = vsel %vm489, %v2048, 0
        %v2266 = vsel %vm489, %v2049, 0
        %v2269 = vsel %vm489, %v2050, 0
        %v2272 = vsel %vm489, %v2051, 0
        %2274 = vmatprep.subr.mxu0 %v2247
        %2275 = vmatpush1.msra.mxu0 %v2246
        %2276 = vmatprep.subr.mxu0 %v2249
        %2277 = vmatpush1.msra.mxu0 %v2248
        %2278 = vmatprep.subr.mxu0 %v2251
        %2279 = vmatpush1.msra.mxu0 %v2250
        %2280 = vmatprep.subr.mxu0 %v2253
        %2281 = vmatpush1.msra.mxu0 %v2252
        %2282 = vmatprep.subr.mxu0 0.0
        %2283 = vmatpush1.msra.mxu0 0.0
        %2284 = vmatprep.subr.mxu0 0.0
        %2285 = vmatpush1.msra.mxu0 0.0
        %2286 = vmatprep.subr.mxu0 0.0
        %2287 = vmatpush1.msra.mxu0 0.0
        %2288 = vmatprep.subr.mxu0 0.0
        %2289 = vmatpush1.msra.mxu0 0.0
        %2290 = vmatprep.subr.mxu0 0.0
        %2291 = vmatpush1.msra.mxu0 0.0
        %2292 = vmatprep.subr.mxu0 0.0
        %2293 = vmatpush1.msra.mxu0 0.0
        %2294 = vmatprep.subr.mxu0 0.0
        %2295 = vmatpush1.msra.mxu0 0.0
        %2296 = vmatprep.subr.mxu0 0.0
        %2297 = vmatpush1.msra.mxu0 0.0
        %2298 = vmatprep.subr.mxu0 0.0
        %2299 = vmatpush1.msra.mxu0 0.0
        %2300 = vmatprep.subr.mxu0 0.0
        %2301 = vmatpush1.msra.mxu0 0.0
        %2302 = vmatprep.subr.mxu0 0.0
        %2303 = vmatpush1.msra.mxu0 0.0
        %2304 = vmatprep.subr.mxu0 0.0
        %2305 = vmatpush1.msra.mxu0 0.0
        %2306 = vmatprep.subr.mxu0 0.0
        %2307 = vmatpush1.msra.mxu0 0.0
        %2308 = vmatprep.subr.mxu0 0.0
        %2309 = vmatpush1.msra.mxu0 0.0
        %2310 = vmatprep.subr.mxu0 0.0
        %2311 = vmatpush1.msra.mxu0 0.0
        %2312 = vmatprep.subr.mxu0 0.0
        %2313 = vmatpush1.msra.mxu0 0.0
        %2314 = vmatprep.subr.mxu0 0.0
        %2315 = vmatpush1.msra.mxu0 0.0
        %2316 = vmatprep.subr.mxu0 0.0
        %2317 = vmatpush1.msra.mxu0 0.0
        %2318 = vmatprep.subr.mxu0 0.0
        %2319 = vmatpush1.msra.mxu0 0.0
        %2320 = vmatprep.subr.mxu0 0.0
        %2321 = vmatpush1.msra.mxu0 0.0
        %2322 = vmatprep.subr.mxu0 0.0
        %2323 = vmatpush1.msra.mxu0 0.0
        %2324 = vmatprep.subr.mxu0 0.0
        %2325 = vmatpush1.msra.mxu0 0.0
        %2326 = vmatprep.subr.mxu0 0.0
        %2327 = vmatpush1.msra.mxu0 0.0
        %2328 = vmatprep.subr.mxu0 0.0
        %2329 = vmatpush1.msra.mxu0 0.0
        %2330 = vmatprep.subr.mxu0 0.0
        %2331 = vmatpush1.msra.mxu0 0.0
        %2332 = vmatprep.subr.mxu0 0.0
        %2333 = vmatpush1.msra.mxu0 0.0
        %2334 = vmatprep.subr.mxu0 0.0
        %2335 = vmatpush1.msra.mxu0 0.0
        %2336 = vmatprep.subr.mxu0 0.0
        %2337 = vmatpush1.msra.mxu0 0.0
        %2338 = vmatprep.mubr.f32.mxu0 0.0
        %2339 = vmatmul.mubr.f32.gmra.mrb[0].mxu0 %v2263
        %v2340 = vpop.f32.mrb[0].mxu0
        %v2341 = vadd.f32 %v2188, %v2340
        %v2342 = vpop.f32.mrb[0].mxu0
        %v2343 = vadd.f32 %v2190, %v2342
        %2344 = vmatprep.mubr.f32.mxu0 0.0
        %2345 = vmatmul.mubr.f32.gmra.mrb[0].mxu0 %v2266
        %v2346 = vpop.f32.mrb[0].mxu0
        %v2347 = vadd.f32 %v2194, %v2346
        %v2348 = vpop.f32.mrb[0].mxu0
        %v2349 = vadd.f32 %v2196, %v2348
        %2350 = vmatprep.mubr.f32.mxu0 0.0
        %2351 = vmatmul.mubr.f32.gmra.mrb[0].mxu0 %v2269
        %v2352 = vpop.f32.mrb[0].mxu0
        %v2353 = vadd.f32 %v2200, %v2352
        %v2354 = vpop.f32.mrb[0].mxu0
        %v2355 = vadd.f32 %v2202, %v2354
        %2356 = vmatprep.mubr.f32.mxu0 0.0
        %2357 = vmatmul.mubr.f32.gmra.mrb[0].mxu0 %v2272
        %v2358 = vpop.f32.mrb[0].mxu0
        %v2359 = vadd.f32 %v2206, %v2358
        %v2360 = vpop.f32.mrb[0].mxu0
        %v2361 = vadd.f32 %v2208, %v2360
        %2362 = vdwg.mxu0
        %v2363 = vmul.f32 %v2024, %v754
        %v2364 = vmul.f32 %v2025, %v758
        %v2365 = vmul.f32 %v2026, %v756
        %v2366 = vmul.f32 %v2027, %v754
        %v2367 = vmul.f32 %v2028, %v758
        %v2368 = vmul.f32 %v2029, %v756
        %v2369 = vmul.f32 %v2030, %v754
        %v2370 = vmul.f32 %v2031, %v758
        %v2371 = vmul.f32 %v2032, %v756
        %v2372 = vmul.f32 %v2033, %v754
        %v2373 = vmul.f32 %v2034, %v758
        %v2374 = vmul.f32 %v2035, %v756
        %s2375 = scalar_lea.vmem [#allocation9], 64
        %v2376 = vld [vmem:[%s2375] sm:$0xff]
        %v2377 = vld [vmem:[%s2375 + $0x8] sm:$0xff]
        %v2378 = vld [vmem:[%s2375 + $0x10] sm:$0xff]
        %v2379 = vld [vmem:[%s2375 + $0x18] sm:$0xff]
        %2392 = vrot.lane.b32.xlu0 %v2363, 15
        %v2393 = vpop.permute.xlu0 %2392
        %2394 = vrot.lane.b32.xlu0 %v2364, 15
        %v2395 = vpop.permute.xlu0 %2394
        %2396 = vrot.lane.b32.xlu0 %v2365, 15
        %v2397 = vpop.permute.xlu0 %2396
        %2398 = vrot.lane.b32.xlu0 %v2366, 15
        %v2399 = vpop.permute.xlu0 %2398
        %2400 = vrot.lane.b32.xlu0 %v2367, 15
        %v2401 = vpop.permute.xlu0 %2400
        %2402 = vrot.lane.b32.xlu0 %v2368, 15
        %v2403 = vpop.permute.xlu0 %2402
        %2404 = vrot.lane.b32.xlu0 %v2369, 15
        %v2405 = vpop.permute.xlu0 %2404
        %2406 = vrot.lane.b32.xlu0 %v2370, 15
        %v2407 = vpop.permute.xlu0 %2406
        %2408 = vrot.lane.b32.xlu0 %v2371, 15
        %v2409 = vpop.permute.xlu0 %2408
        %2410 = vrot.lane.b32.xlu0 %v2372, 15
        %v2411 = vpop.permute.xlu0 %2410
        %2412 = vrot.lane.b32.xlu0 %v2373, 15
        %v2413 = vpop.permute.xlu0 %2412
        %2414 = vrot.lane.b32.xlu0 %v2374, 15
        %v2415 = vpop.permute.xlu0 %2414
        %v2416 = vsel %vm815, %v2393, %v2395
        %v2417 = vsel %vm815, %v2395, %v2397
        %v2418 = vsel %vm815, %v2399, %v2401
        %v2419 = vsel %vm815, %v2401, %v2403
        %v2420 = vsel %vm815, %v2405, %v2407
        %v2421 = vsel %vm815, %v2407, %v2409
        %v2422 = vsel %vm815, %v2411, %v2413
        %v2423 = vsel %vm815, %v2413, %v2415
        %v2433 = vsel %vm489, %v2376, 0
        %v2436 = vsel %vm489, %v2377, 0
        %v2439 = vsel %vm489, %v2378, 0
        %v2442 = vsel %vm489, %v2379, 0
        %2444 = vmatprep.subr.mxu0 %v2417
        %2445 = vmatpush1.msra.mxu0 %v2416
        %2446 = vmatprep.subr.mxu0 %v2419
        %2447 = vmatpush1.msra.mxu0 %v2418
        %2448 = vmatprep.subr.mxu0 %v2421
        %2449 = vmatpush1.msra.mxu0 %v2420
        %2450 = vmatprep.subr.mxu0 %v2423
        %2451 = vmatpush1.msra.mxu0 %v2422
        %2452 = vmatprep.subr.mxu0 0.0
        %2453 = vmatpush1.msra.mxu0 0.0
        %2454 = vmatprep.subr.mxu0 0.0
        %2455 = vmatpush1.msra.mxu0 0.0
        %2456 = vmatprep.subr.mxu0 0.0
        %2457 = vmatpush1.msra.mxu0 0.0
        %2458 = vmatprep.subr.mxu0 0.0
        %2459 = vmatpush1.msra.mxu0 0.0
        %2460 = vmatprep.subr.mxu0 0.0
        %2461 = vmatpush1.msra.mxu0 0.0
        %2462 = vmatprep.subr.mxu0 0.0
        %2463 = vmatpush1.msra.mxu0 0.0
        %2464 = vmatprep.subr.mxu0 0.0
        %2465 = vmatpush1.msra.mxu0 0.0
        %2466 = vmatprep.subr.mxu0 0.0
        %2467 = vmatpush1.msra.mxu0 0.0
        %2468 = vmatprep.subr.mxu0 0.0
        %2469 = vmatpush1.msra.mxu0 0.0
        %2470 = vmatprep.subr.mxu0 0.0
        %2471 = vmatpush1.msra.mxu0 0.0
        %2472 = vmatprep.subr.mxu0 0.0
        %2473 = vmatpush1.msra.mxu0 0.0
        %2474 = vmatprep.subr.mxu0 0.0
        %2475 = vmatpush1.msra.mxu0 0.0
        %2476 = vmatprep.subr.mxu0 0.0
        %2477 = vmatpush1.msra.mxu0 0.0
        %2478 = vmatprep.subr.mxu0 0.0
        %2479 = vmatpush1.msra.mxu0 0.0
        %2480 = vmatprep.subr.mxu0 0.0
        %2481 = vmatpush1.msra.mxu0 0.0
        %2482 = vmatprep.subr.mxu0 0.0
        %2483 = vmatpush1.msra.mxu0 0.0
        %2484 = vmatprep.subr.mxu0 0.0
        %2485 = vmatpush1.msra.mxu0 0.0
        %2486 = vmatprep.subr.mxu0 0.0
        %2487 = vmatpush1.msra.mxu0 0.0
        %2488 = vmatprep.subr.mxu0 0.0
        %2489 = vmatpush1.msra.mxu0 0.0
        %2490 = vmatprep.subr.mxu0 0.0
        %2491 = vmatpush1.msra.mxu0 0.0
        %2492 = vmatprep.subr.mxu0 0.0
        %2493 = vmatpush1.msra.mxu0 0.0
        %2494 = vmatprep.subr.mxu0 0.0
        %2495 = vmatpush1.msra.mxu0 0.0
        %2496 = vmatprep.subr.mxu0 0.0
        %2497 = vmatpush1.msra.mxu0 0.0
        %2498 = vmatprep.subr.mxu0 0.0
        %2499 = vmatpush1.msra.mxu0 0.0
        %2500 = vmatprep.subr.mxu0 0.0
        %2501 = vmatpush1.msra.mxu0 0.0
        %2502 = vmatprep.subr.mxu0 0.0
        %2503 = vmatpush1.msra.mxu0 0.0
        %2504 = vmatprep.subr.mxu0 0.0
        %2505 = vmatpush1.msra.mxu0 0.0
        %2506 = vmatprep.subr.mxu0 0.0
        %2507 = vmatpush1.msra.mxu0 0.0
        %2508 = vmatprep.mubr.f32.mxu0 0.0
        %2509 = vmatmul.mubr.f32.gmra.mrb[0].mxu0 %v2433
        %v2510 = vpop.f32.mrb[0].mxu0
        %v2511 = vadd.f32 0.0, %v2510
        %v2512 = vpop.f32.mrb[0].mxu0
        %v2513 = vadd.f32 0.0, %v2512
        %2514 = vmatprep.mubr.f32.mxu0 0.0
        %2515 = vmatmul.mubr.f32.gmra.mrb[0].mxu0 %v2436
        %v2516 = vpop.f32.mrb[0].mxu0
        %v2517 = vadd.f32 0.0, %v2516
        %v2518 = vpop.f32.mrb[0].mxu0
        %v2519 = vadd.f32 0.0, %v2518
        %2520 = vmatprep.mubr.f32.mxu0 0.0
        %2521 = vmatmul.mubr.f32.gmra.mrb[0].mxu0 %v2439
        %v2522 = vpop.f32.mrb[0].mxu0
        %v2523 = vadd.f32 0.0, %v2522
        %v2524 = vpop.f32.mrb[0].mxu0
        %v2525 = vadd.f32 0.0, %v2524
        %2526 = vmatprep.mubr.f32.mxu0 0.0
        %2527 = vmatmul.mubr.f32.gmra.mrb[0].mxu0 %v2442
        %v2528 = vpop.f32.mrb[0].mxu0
        %v2529 = vadd.f32 0.0, %v2528
        %v2530 = vpop.f32.mrb[0].mxu0
        %v2531 = vadd.f32 0.0, %v2530
        %2532 = vdwg.mxu0
        %v2533 = vadd.f32 %v2341, %v2511
        %v2534 = vadd.f32 %v2343, %v2513
        %v2535 = vadd.f32 %v2347, %v2517
        %v2536 = vadd.f32 %v2349, %v2519
        %v2537 = vadd.f32 %v2353, %v2523
        %v2538 = vadd.f32 %v2355, %v2525
        %v2539 = vadd.f32 %v2359, %v2529
        %v2540 = vadd.f32 %v2361, %v2531
        %v2541 = vmul.f32 %v2024, %v942
        %v2542 = vmul.f32 %v2025, %v946
        %v2543 = vmul.f32 %v2026, %v944
        %v2544 = vmul.f32 %v2027, %v942
        %v2545 = vmul.f32 %v2028, %v946
        %v2546 = vmul.f32 %v2029, %v944
        %v2547 = vmul.f32 %v2030, %v942
        %v2548 = vmul.f32 %v2031, %v946
        %v2549 = vmul.f32 %v2032, %v944
        %v2550 = vmul.f32 %v2033, %v942
        %v2551 = vmul.f32 %v2034, %v946
        %v2552 = vmul.f32 %v2035, %v944
        %s2553 = scalar_lea.vmem [#allocation9], 96
        %v2554 = vld [vmem:[%s2553] sm:$0xff]
        %v2555 = vld [vmem:[%s2553 + $0x8] sm:$0xff]
        %v2556 = vld [vmem:[%s2553 + $0x10] sm:$0xff]
        %v2557 = vld [vmem:[%s2553 + $0x18] sm:$0xff]
        %2570 = vrot.lane.b32.xlu0 %v2541, 1
        %v2571 = vpop.permute.xlu0 %2570
        %2572 = vrot.lane.b32.xlu0 %v2542, 1
        %v2573 = vpop.permute.xlu0 %2572
        %2574 = vrot.lane.b32.xlu0 %v2543, 1
        %v2575 = vpop.permute.xlu0 %2574
        %2576 = vrot.lane.b32.xlu0 %v2544, 1
        %v2577 = vpop.permute.xlu0 %2576
        %2578 = vrot.lane.b32.xlu0 %v2545, 1
        %v2579 = vpop.permute.xlu0 %2578
        %2580 = vrot.lane.b32.xlu0 %v2546, 1
        %v2581 = vpop.permute.xlu0 %2580
        %2582 = vrot.lane.b32.xlu0 %v2547, 1
        %v2583 = vpop.permute.xlu0 %2582
        %2584 = vrot.lane.b32.xlu0 %v2548, 1
        %v2585 = vpop.permute.xlu0 %2584
        %2586 = vrot.lane.b32.xlu0 %v2549, 1
        %v2587 = vpop.permute.xlu0 %2586
        %2588 = vrot.lane.b32.xlu0 %v2550, 1
        %v2589 = vpop.permute.xlu0 %2588
        %2590 = vrot.lane.b32.xlu0 %v2551, 1
        %v2591 = vpop.permute.xlu0 %2590
        %2592 = vrot.lane.b32.xlu0 %v2552, 1
        %v2593 = vpop.permute.xlu0 %2592
        %v2594 = vsel %vm1003, %v2571, %v2573
        %v2595 = vsel %vm1003, %v2573, %v2575
        %v2596 = vsel %vm1003, %v2577, %v2579
        %v2597 = vsel %vm1003, %v2579, %v2581
        %v2598 = vsel %vm1003, %v2583, %v2585
        %v2599 = vsel %vm1003, %v2585, %v2587
        %v2600 = vsel %vm1003, %v2589, %v2591
        %v2601 = vsel %vm1003, %v2591, %v2593
        %v2611 = vsel %vm489, %v2554, 0
        %v2614 = vsel %vm489, %v2555, 0
        %v2617 = vsel %vm489, %v2556, 0
        %v2620 = vsel %vm489, %v2557, 0
        %2622 = vmatprep.subr.mxu0 %v2595
        %2623 = vmatpush1.msra.mxu0 %v2594
        %2624 = vmatprep.subr.mxu0 %v2597
        %2625 = vmatpush1.msra.mxu0 %v2596
        %2626 = vmatprep.subr.mxu0 %v2599
        %2627 = vmatpush1.msra.mxu0 %v2598
        %2628 = vmatprep.subr.mxu0 %v2601
        %2629 = vmatpush1.msra.mxu0 %v2600
        %2630 = vmatprep.subr.mxu0 0.0
        %2631 = vmatpush1.msra.mxu0 0.0
        %2632 = vmatprep.subr.mxu0 0.0
        %2633 = vmatpush1.msra.mxu0 0.0
        %2634 = vmatprep.subr.mxu0 0.0
        %2635 = vmatpush1.msra.mxu0 0.0
        %2636 = vmatprep.subr.mxu0 0.0
        %2637 = vmatpush1.msra.mxu0 0.0
        %2638 = vmatprep.subr.mxu0 0.0
        %2639 = vmatpush1.msra.mxu0 0.0
        %2640 = vmatprep.subr.mxu0 0.0
        %2641 = vmatpush1.msra.mxu0 0.0
        %2642 = vmatprep.subr.mxu0 0.0
        %2643 = vmatpush1.msra.mxu0 0.0
        %2644 = vmatprep.subr.mxu0 0.0
        %2645 = vmatpush1.msra.mxu0 0.0
        %2646 = vmatprep.subr.mxu0 0.0
        %2647 = vmatpush1.msra.mxu0 0.0
        %2648 = vmatprep.subr.mxu0 0.0
        %2649 = vmatpush1.msra.mxu0 0.0
        %2650 = vmatprep.subr.mxu0 0.0
        %2651 = vmatpush1.msra.mxu0 0.0
        %2652 = vmatprep.subr.mxu0 0.0
        %2653 = vmatpush1.msra.mxu0 0.0
        %2654 = vmatprep.subr.mxu0 0.0
        %2655 = vmatpush1.msra.mxu0 0.0
        %2656 = vmatprep.subr.mxu0 0.0
        %2657 = vmatpush1.msra.mxu0 0.0
        %2658 = vmatprep.subr.mxu0 0.0
        %2659 = vmatpush1.msra.mxu0 0.0
        %2660 = vmatprep.subr.mxu0 0.0
        %2661 = vmatpush1.msra.mxu0 0.0
        %2662 = vmatprep.subr.mxu0 0.0
        %2663 = vmatpush1.msra.mxu0 0.0
        %2664 = vmatprep.subr.mxu0 0.0
        %2665 = vmatpush1.msra.mxu0 0.0
        %2666 = vmatprep.subr.mxu0 0.0
        %2667 = vmatpush1.msra.mxu0 0.0
        %2668 = vmatprep.subr.mxu0 0.0
        %2669 = vmatpush1.msra.mxu0 0.0
        %2670 = vmatprep.subr.mxu0 0.0
        %2671 = vmatpush1.msra.mxu0 0.0
        %2672 = vmatprep.subr.mxu0 0.0
        %2673 = vmatpush1.msra.mxu0 0.0
        %2674 = vmatprep.subr.mxu0 0.0
        %2675 = vmatpush1.msra.mxu0 0.0
        %2676 = vmatprep.subr.mxu0 0.0
        %2677 = vmatpush1.msra.mxu0 0.0
        %2678 = vmatprep.subr.mxu0 0.0
        %2679 = vmatpush1.msra.mxu0 0.0
        %2680 = vmatprep.subr.mxu0 0.0
        %2681 = vmatpush1.msra.mxu0 0.0
        %2682 = vmatprep.subr.mxu0 0.0
        %2683 = vmatpush1.msra.mxu0 0.0
        %2684 = vmatprep.subr.mxu0 0.0
        %2685 = vmatpush1.msra.mxu0 0.0
        %2686 = vmatprep.mubr.f32.mxu0 0.0
        %2687 = vmatmul.mubr.f32.gmra.mrb[0].mxu0 %v2611
        %v2688 = vpop.f32.mrb[0].mxu0
        %v2689 = vadd.f32 0.0, %v2688
        %v2690 = vpop.f32.mrb[0].mxu0
        %v2691 = vadd.f32 0.0, %v2690
        %2692 = vmatprep.mubr.f32.mxu0 0.0
        %2693 = vmatmul.mubr.f32.gmra.mrb[0].mxu0 %v2614
        %v2694 = vpop.f32.mrb[0].mxu0
        %v2695 = vadd.f32 0.0, %v2694
        %v2696 = vpop.f32.mrb[0].mxu0
        %v2697 = vadd.f32 0.0, %v2696
        %2698 = vmatprep.mubr.f32.mxu0 0.0
        %2699 = vmatmul.mubr.f32.gmra.mrb[0].mxu0 %v2617
        %v2700 = vpop.f32.mrb[0].mxu0
        %v2701 = vadd.f32 0.0, %v2700
        %v2702 = vpop.f32.mrb[0].mxu0
        %v2703 = vadd.f32 0.0, %v2702
        %2704 = vmatprep.mubr.f32.mxu0 0.0
        %2705 = vmatmul.mubr.f32.gmra.mrb[0].mxu0 %v2620
        %v2706 = vpop.f32.mrb[0].mxu0
        %v2707 = vadd.f32 0.0, %v2706
        %v2708 = vpop.f32.mrb[0].mxu0
        %v2709 = vadd.f32 0.0, %v2708
        %2710 = vdwg.mxu0
        %v2711 = vadd.f32 %v2533, %v2689
        %v2712 = vadd.f32 %v2534, %v2691
        %v2713 = vadd.f32 %v2535, %v2695
        %v2714 = vadd.f32 %v2536, %v2697
        %v2715 = vadd.f32 %v2537, %v2701
        %v2716 = vadd.f32 %v2538, %v2703
        %v2717 = vadd.f32 %v2539, %v2707
        %v2718 = vadd.f32 %v2540, %v2709
        %s2719 = scalar_lea.vmem [#allocation9], 128
        %v2720 = vld [vmem:[%s2719] sm:$0xff]
        %v2721 = vld [vmem:[%s2719 + $0x8] sm:$0xff]
        %v2722 = vld [vmem:[%s2719 + $0x10] sm:$0xff]
        %v2723 = vld [vmem:[%s2719 + $0x18] sm:$0xff]
        %v2725 = vsel %vm489, %v2720, 0
        %v2728 = vsel %vm489, %v2721, 0
        %v2731 = vsel %vm489, %v2722, 0
        %v2734 = vsel %vm489, %v2723, 0
        %2736 = vmatprep.subr.mxu0 %v2026
        %2737 = vmatpush1.msra.mxu0 %v2025
        %2738 = vmatprep.subr.mxu0 %v2029
        %2739 = vmatpush1.msra.mxu0 %v2028
        %2740 = vmatprep.subr.mxu0 %v2032
        %2741 = vmatpush1.msra.mxu0 %v2031
        %2742 = vmatprep.subr.mxu0 %v2035
        %2743 = vmatpush1.msra.mxu0 %v2034
        %2744 = vmatprep.subr.mxu0 0.0
        %2745 = vmatpush1.msra.mxu0 0.0
        %2746 = vmatprep.subr.mxu0 0.0
        %2747 = vmatpush1.msra.mxu0 0.0
        %2748 = vmatprep.subr.mxu0 0.0
        %2749 = vmatpush1.msra.mxu0 0.0
        %2750 = vmatprep.subr.mxu0 0.0
        %2751 = vmatpush1.msra.mxu0 0.0
        %2752 = vmatprep.subr.mxu0 0.0
        %2753 = vmatpush1.msra.mxu0 0.0
        %2754 = vmatprep.subr.mxu0 0.0
        %2755 = vmatpush1.msra.mxu0 0.0
        %2756 = vmatprep.subr.mxu0 0.0
        %2757 = vmatpush1.msra.mxu0 0.0
        %2758 = vmatprep.subr.mxu0 0.0
        %2759 = vmatpush1.msra.mxu0 0.0
        %2760 = vmatprep.subr.mxu0 0.0
        %2761 = vmatpush1.msra.mxu0 0.0
        %2762 = vmatprep.subr.mxu0 0.0
        %2763 = vmatpush1.msra.mxu0 0.0
        %2764 = vmatprep.subr.mxu0 0.0
        %2765 = vmatpush1.msra.mxu0 0.0
        %2766 = vmatprep.subr.mxu0 0.0
        %2767 = vmatpush1.msra.mxu0 0.0
        %2768 = vmatprep.subr.mxu0 0.0
        %2769 = vmatpush1.msra.mxu0 0.0
        %2770 = vmatprep.subr.mxu0 0.0
        %2771 = vmatpush1.msra.mxu0 0.0
        %2772 = vmatprep.subr.mxu0 0.0
        %2773 = vmatpush1.msra.mxu0 0.0
        %2774 = vmatprep.subr.mxu0 0.0
        %2775 = vmatpush1.msra.mxu0 0.0
        %2776 = vmatprep.subr.mxu0 0.0
        %2777 = vmatpush1.msra.mxu0 0.0
        %2778 = vmatprep.subr.mxu0 0.0
        %2779 = vmatpush1.msra.mxu0 0.0
        %2780 = vmatprep.subr.mxu0 0.0
        %2781 = vmatpush1.msra.mxu0 0.0
        %2782 = vmatprep.subr.mxu0 0.0
        %2783 = vmatpush1.msra.mxu0 0.0
        %2784 = vmatprep.subr.mxu0 0.0
        %2785 = vmatpush1.msra.mxu0 0.0
        %2786 = vmatprep.subr.mxu0 0.0
        %2787 = vmatpush1.msra.mxu0 0.0
        %2788 = vmatprep.subr.mxu0 0.0
        %2789 = vmatpush1.msra.mxu0 0.0
        %2790 = vmatprep.subr.mxu0 0.0
        %2791 = vmatpush1.msra.mxu0 0.0
        %2792 = vmatprep.subr.mxu0 0.0
        %2793 = vmatpush1.msra.mxu0 0.0
        %2794 = vmatprep.subr.mxu0 0.0
        %2795 = vmatpush1.msra.mxu0 0.0
        %2796 = vmatprep.subr.mxu0 0.0
        %2797 = vmatpush1.msra.mxu0 0.0
        %2798 = vmatprep.subr.mxu0 0.0
        %2799 = vmatpush1.msra.mxu0 0.0
        %2800 = vmatprep.mubr.f32.mxu0 0.0
        %2801 = vmatmul.mubr.f32.gmra.mrb[0].mxu0 %v2725
        %v2802 = vpop.f32.mrb[0].mxu0
        %v2803 = vadd.f32 0.0, %v2802
        %v2804 = vpop.f32.mrb[0].mxu0
        %v2805 = vadd.f32 0.0, %v2804
        %2806 = vmatprep.mubr.f32.mxu0 0.0
        %2807 = vmatmul.mubr.f32.gmra.mrb[0].mxu0 %v2728
        %v2808 = vpop.f32.mrb[0].mxu0
        %v2809 = vadd.f32 0.0, %v2808
        %v2810 = vpop.f32.mrb[0].mxu0
        %v2811 = vadd.f32 0.0, %v2810
        %2812 = vmatprep.mubr.f32.mxu0 0.0
        %2813 = vmatmul.mubr.f32.gmra.mrb[0].mxu0 %v2731
        %v2814 = vpop.f32.mrb[0].mxu0
        %v2815 = vadd.f32 0.0, %v2814
        %v2816 = vpop.f32.mrb[0].mxu0
        %v2817 = vadd.f32 0.0, %v2816
        %2818 = vmatprep.mubr.f32.mxu0 0.0
        %2819 = vmatmul.mubr.f32.gmra.mrb[0].mxu0 %v2734
        %v2820 = vpop.f32.mrb[0].mxu0
        %v2821 = vadd.f32 0.0, %v2820
        %v2822 = vpop.f32.mrb[0].mxu0
        %v2823 = vadd.f32 0.0, %v2822
        %2824 = vdwg.mxu0
        %v2825 = vadd.f32 %v2711, %v2803
        %v2826 = vadd.f32 %v2712, %v2805
        %v2827 = vadd.f32 %v2713, %v2809
        %v2828 = vadd.f32 %v2714, %v2811
        %v2829 = vadd.f32 %v2715, %v2815
        %v2830 = vadd.f32 %v2716, %v2817
        %v2831 = vadd.f32 %v2717, %v2821
        %v2832 = vadd.f32 %v2718, %v2823
        %v2833 = vld [vmem:[#allocation3 + $0x8] sm:$0xff]
        %v2834 = vld [vmem:[#allocation3 + $0x10] sm:$0xff]
        %v2835 = vld [vmem:[#allocation3 + $0x18] sm:$0xff]
        %v2836 = vld [vmem:[#allocation3 + $0x28] sm:$0xff]
        %v2837 = vld [vmem:[#allocation3 + $0x30] sm:$0xff]
        %v2838 = vld [vmem:[#allocation3 + $0x38] sm:$0xff]
        %v2839 = vld [vmem:[#allocation3 + $0x48] sm:$0xff]
        %v2840 = vld [vmem:[#allocation3 + $0x50] sm:$0xff]
        %v2841 = vld [vmem:[#allocation3 + $0x58] sm:$0xff]
        %v2842 = vld [vmem:[#allocation3 + $0x68] sm:$0xff]
        %v2843 = vld [vmem:[#allocation3 + $0x70] sm:$0xff]
        %v2844 = vld [vmem:[#allocation3 + $0x78] sm:$0xff]
        %v2845 = vmul.f32 %v2833, %v1256
        %v2846 = vmul.f32 %v2834, %v1259
        %v2847 = vmul.f32 %v2835, %v1258
        %v2848 = vmul.f32 %v2836, %v1256
        %v2849 = vmul.f32 %v2837, %v1259
        %v2850 = vmul.f32 %v2838, %v1258
        %v2851 = vmul.f32 %v2839, %v1256
        %v2852 = vmul.f32 %v2840, %v1259
        %v2853 = vmul.f32 %v2841, %v1258
        %v2854 = vmul.f32 %v2842, %v1256
        %v2855 = vmul.f32 %v2843, %v1259
        %v2856 = vmul.f32 %v2844, %v1258
        %s2857 = scalar_lea.vmem [#allocation9], 160
        %v2858 = vld [vmem:[%s2857] sm:$0xff]
        %v2859 = vld [vmem:[%s2857 + $0x8] sm:$0xff]
        %v2860 = vld [vmem:[%s2857 + $0x10] sm:$0xff]
        %v2861 = vld [vmem:[%s2857 + $0x18] sm:$0xff]
        %2874 = vrot.lane.b32.xlu0 %v2845, 127
        %v2875 = vpop.permute.xlu0 %2874
        %2876 = vrot.lane.b32.xlu0 %v2846, 127
        %v2877 = vpop.permute.xlu0 %2876
        %2878 = vrot.lane.b32.xlu0 %v2847, 127
        %v2879 = vpop.permute.xlu0 %2878
        %2880 = vrot.lane.b32.xlu0 %v2848, 127
        %v2881 = vpop.permute.xlu0 %2880
        %2882 = vrot.lane.b32.xlu0 %v2849, 127
        %v2883 = vpop.permute.xlu0 %2882
        %2884 = vrot.lane.b32.xlu0 %v2850, 127
        %v2885 = vpop.permute.xlu0 %2884
        %2886 = vrot.lane.b32.xlu0 %v2851, 127
        %v2887 = vpop.permute.xlu0 %2886
        %2888 = vrot.lane.b32.xlu0 %v2852, 127
        %v2889 = vpop.permute.xlu0 %2888
        %2890 = vrot.lane.b32.xlu0 %v2853, 127
        %v2891 = vpop.permute.xlu0 %2890
        %2892 = vrot.lane.b32.xlu0 %v2854, 127
        %v2893 = vpop.permute.xlu0 %2892
        %2894 = vrot.lane.b32.xlu0 %v2855, 127
        %v2895 = vpop.permute.xlu0 %2894
        %2896 = vrot.lane.b32.xlu0 %v2856, 127
        %v2897 = vpop.permute.xlu0 %2896
        %v2898 = vsel %vm945, %v2875, %v2877
        %v2899 = vsel %vm945, %v2877, %v2879
        %v2900 = vsel %vm945, %v2881, %v2883
        %v2901 = vsel %vm945, %v2883, %v2885
        %v2902 = vsel %vm945, %v2887, %v2889
        %v2903 = vsel %vm945, %v2889, %v2891
        %v2904 = vsel %vm945, %v2893, %v2895
        %v2905 = vsel %vm945, %v2895, %v2897
        %v2915 = vsel %vm489, %v2858, 0
        %v2918 = vsel %vm489, %v2859, 0
        %v2921 = vsel %vm489, %v2860, 0
        %v2924 = vsel %vm489, %v2861, 0
        %2926 = vmatprep.subr.mxu0 %v2899
        %2927 = vmatpush1.msra.mxu0 %v2898
        %2928 = vmatprep.subr.mxu0 %v2901
        %2929 = vmatpush1.msra.mxu0 %v2900
        %2930 = vmatprep.subr.mxu0 %v2903
        %2931 = vmatpush1.msra.mxu0 %v2902
        %2932 = vmatprep.subr.mxu0 %v2905
        %2933 = vmatpush1.msra.mxu0 %v2904
        %2934 = vmatprep.subr.mxu0 0.0
        %2935 = vmatpush1.msra.mxu0 0.0
        %2936 = vmatprep.subr.mxu0 0.0
        %2937 = vmatpush1.msra.mxu0 0.0
        %2938 = vmatprep.subr.mxu0 0.0
        %2939 = vmatpush1.msra.mxu0 0.0
        %2940 = vmatprep.subr.mxu0 0.0
        %2941 = vmatpush1.msra.mxu0 0.0
        %2942 = vmatprep.subr.mxu0 0.0
        %2943 = vmatpush1.msra.mxu0 0.0
        %2944 = vmatprep.subr.mxu0 0.0
        %2945 = vmatpush1.msra.mxu0 0.0
        %2946 = vmatprep.subr.mxu0 0.0
        %2947 = vmatpush1.msra.mxu0 0.0
        %2948 = vmatprep.subr.mxu0 0.0
        %2949 = vmatpush1.msra.mxu0 0.0
        %2950 = vmatprep.subr.mxu0 0.0
        %2951 = vmatpush1.msra.mxu0 0.0
        %2952 = vmatprep.subr.mxu0 0.0
        %2953 = vmatpush1.msra.mxu0 0.0
        %2954 = vmatprep.subr.mxu0 0.0
        %2955 = vmatpush1.msra.mxu0 0.0
        %2956 = vmatprep.subr.mxu0 0.0
        %2957 = vmatpush1.msra.mxu0 0.0
        %2958 = vmatprep.subr.mxu0 0.0
        %2959 = vmatpush1.msra.mxu0 0.0
        %2960 = vmatprep.subr.mxu0 0.0
        %2961 = vmatpush1.msra.mxu0 0.0
        %2962 = vmatprep.subr.mxu0 0.0
        %2963 = vmatpush1.msra.mxu0 0.0
        %2964 = vmatprep.subr.mxu0 0.0
        %2965 = vmatpush1.msra.mxu0 0.0
        %2966 = vmatprep.subr.mxu0 0.0
        %2967 = vmatpush1.msra.mxu0 0.0
        %2968 = vmatprep.subr.mxu0 0.0
        %2969 = vmatpush1.msra.mxu0 0.0
        %2970 = vmatprep.subr.mxu0 0.0
        %2971 = vmatpush1.msra.mxu0 0.0
        %2972 = vmatprep.subr.mxu0 0.0
        %2973 = vmatpush1.msra.mxu0 0.0
        %2974 = vmatprep.subr.mxu0 0.0
        %2975 = vmatpush1.msra.mxu0 0.0
        %2976 = vmatprep.subr.mxu0 0.0
        %2977 = vmatpush1.msra.mxu0 0.0
        %2978 = vmatprep.subr.mxu0 0.0
        %2979 = vmatpush1.msra.mxu0 0.0
        %2980 = vmatprep.subr.mxu0 0.0
        %2981 = vmatpush1.msra.mxu0 0.0
        %2982 = vmatprep.subr.mxu0 0.0
        %2983 = vmatpush1.msra.mxu0 0.0
        %2984 = vmatprep.subr.mxu0 0.0
        %2985 = vmatpush1.msra.mxu0 0.0
        %2986 = vmatprep.subr.mxu0 0.0
        %2987 = vmatpush1.msra.mxu0 0.0
        %2988 = vmatprep.subr.mxu0 0.0
        %2989 = vmatpush1.msra.mxu0 0.0
        %2990 = vmatprep.mubr.f32.mxu0 0.0
        %2991 = vmatmul.mubr.f32.gmra.mrb[0].mxu0 %v2915
        %v2992 = vpop.f32.mrb[0].mxu0
        %v2993 = vadd.f32 0.0, %v2992
        %v2994 = vpop.f32.mrb[0].mxu0
        %v2995 = vadd.f32 0.0, %v2994
        %2996 = vmatprep.mubr.f32.mxu0 0.0
        %2997 = vmatmul.mubr.f32.gmra.mrb[0].mxu0 %v2918
        %v2998 = vpop.f32.mrb[0].mxu0
        %v2999 = vadd.f32 0.0, %v2998
        %v3000 = vpop.f32.mrb[0].mxu0
        %v3001 = vadd.f32 0.0, %v3000
        %3002 = vmatprep.mubr.f32.mxu0 0.0
        %3003 = vmatmul.mubr.f32.gmra.mrb[0].mxu0 %v2921
        %v3004 = vpop.f32.mrb[0].mxu0
        %v3005 = vadd.f32 0.0, %v3004
        %v3006 = vpop.f32.mrb[0].mxu0
        %v3007 = vadd.f32 0.0, %v3006
        %3008 = vmatprep.mubr.f32.mxu0 0.0
        %3009 = vmatmul.mubr.f32.gmra.mrb[0].mxu0 %v2924
        %v3010 = vpop.f32.mrb[0].mxu0
        %v3011 = vadd.f32 0.0, %v3010
        %v3012 = vpop.f32.mrb[0].mxu0
        %v3013 = vadd.f32 0.0, %v3012
        %3014 = vdwg.mxu0
        %v3015 = vadd.f32 %v2825, %v2993
        %v3016 = vadd.f32 %v2826, %v2995
        %v3017 = vadd.f32 %v2827, %v2999
        %v3018 = vadd.f32 %v2828, %v3001
        %v3019 = vadd.f32 %v2829, %v3005
        %v3020 = vadd.f32 %v2830, %v3007
        %v3021 = vadd.f32 %v2831, %v3011
        %v3022 = vadd.f32 %v2832, %v3013
        %v3023 = vmul.f32 %v2833, %v1442
        %v3024 = vmul.f32 %v2834, %v1445
        %v3025 = vmul.f32 %v2835, %v1444
        %v3026 = vmul.f32 %v2836, %v1442
        %v3027 = vmul.f32 %v2837, %v1445
        %v3028 = vmul.f32 %v2838, %v1444
        %v3029 = vmul.f32 %v2839, %v1442
        %v3030 = vmul.f32 %v2840, %v1445
        %v3031 = vmul.f32 %v2841, %v1444
        %v3032 = vmul.f32 %v2842, %v1442
        %v3033 = vmul.f32 %v2843, %v1445
        %v3034 = vmul.f32 %v2844, %v1444
        %s3035 = scalar_lea.vmem [#allocation9], 192
        %v3036 = vld [vmem:[%s3035] sm:$0xff]
        %v3037 = vld [vmem:[%s3035 + $0x8] sm:$0xff]
        %v3038 = vld [vmem:[%s3035 + $0x10] sm:$0xff]
        %v3039 = vld [vmem:[%s3035 + $0x18] sm:$0xff]
        %3052 = vrot.lane.b32.xlu0 %v3023, 113
        %v3053 = vpop.permute.xlu0 %3052
        %3054 = vrot.lane.b32.xlu0 %v3024, 113
        %v3055 = vpop.permute.xlu0 %3054
        %3056 = vrot.lane.b32.xlu0 %v3025, 113
        %v3057 = vpop.permute.xlu0 %3056
        %3058 = vrot.lane.b32.xlu0 %v3026, 113
        %v3059 = vpop.permute.xlu0 %3058
        %3060 = vrot.lane.b32.xlu0 %v3027, 113
        %v3061 = vpop.permute.xlu0 %3060
        %3062 = vrot.lane.b32.xlu0 %v3028, 113
        %v3063 = vpop.permute.xlu0 %3062
        %3064 = vrot.lane.b32.xlu0 %v3029, 113
        %v3065 = vpop.permute.xlu0 %3064
        %3066 = vrot.lane.b32.xlu0 %v3030, 113
        %v3067 = vpop.permute.xlu0 %3066
        %3068 = vrot.lane.b32.xlu0 %v3031, 113
        %v3069 = vpop.permute.xlu0 %3068
        %3070 = vrot.lane.b32.xlu0 %v3032, 113
        %v3071 = vpop.permute.xlu0 %3070
        %3072 = vrot.lane.b32.xlu0 %v3033, 113
        %v3073 = vpop.permute.xlu0 %3072
        %3074 = vrot.lane.b32.xlu0 %v3034, 113
        %v3075 = vpop.permute.xlu0 %3074
        %v3076 = vsel %vm757, %v3053, %v3055
        %v3077 = vsel %vm757, %v3055, %v3057
        %v3078 = vsel %vm757, %v3059, %v3061
        %v3079 = vsel %vm757, %v3061, %v3063
        %v3080 = vsel %vm757, %v3065, %v3067
        %v3081 = vsel %vm757, %v3067, %v3069
        %v3082 = vsel %vm757, %v3071, %v3073
        %v3083 = vsel %vm757, %v3073, %v3075
        %v3093 = vsel %vm489, %v3036, 0
        %v3096 = vsel %vm489, %v3037, 0
        %v3099 = vsel %vm489, %v3038, 0
        %v3102 = vsel %vm489, %v3039, 0
        %3104 = vmatprep.subr.mxu0 %v3077
        %3105 = vmatpush1.msra.mxu0 %v3076
        %3106 = vmatprep.subr.mxu0 %v3079
        %3107 = vmatpush1.msra.mxu0 %v3078
        %3108 = vmatprep.subr.mxu0 %v3081
        %3109 = vmatpush1.msra.mxu0 %v3080
        %3110 = vmatprep.subr.mxu0 %v3083
        %3111 = vmatpush1.msra.mxu0 %v3082
        %3112 = vmatprep.subr.mxu0 0.0
        %3113 = vmatpush1.msra.mxu0 0.0
        %3114 = vmatprep.subr.mxu0 0.0
        %3115 = vmatpush1.msra.mxu0 0.0
        %3116 = vmatprep.subr.mxu0 0.0
        %3117 = vmatpush1.msra.mxu0 0.0
        %3118 = vmatprep.subr.mxu0 0.0
        %3119 = vmatpush1.msra.mxu0 0.0
        %3120 = vmatprep.subr.mxu0 0.0
        %3121 = vmatpush1.msra.mxu0 0.0
        %3122 = vmatprep.subr.mxu0 0.0
        %3123 = vmatpush1.msra.mxu0 0.0
        %3124 = vmatprep.subr.mxu0 0.0
        %3125 = vmatpush1.msra.mxu0 0.0
        %3126 = vmatprep.subr.mxu0 0.0
        %3127 = vmatpush1.msra.mxu0 0.0
        %3128 = vmatprep.subr.mxu0 0.0
        %3129 = vmatpush1.msra.mxu0 0.0
        %3130 = vmatprep.subr.mxu0 0.0
        %3131 = vmatpush1.msra.mxu0 0.0
        %3132 = vmatprep.subr.mxu0 0.0
        %3133 = vmatpush1.msra.mxu0 0.0
        %3134 = vmatprep.subr.mxu0 0.0
        %3135 = vmatpush1.msra.mxu0 0.0
        %3136 = vmatprep.subr.mxu0 0.0
        %3137 = vmatpush1.msra.mxu0 0.0
        %3138 = vmatprep.subr.mxu0 0.0
        %3139 = vmatpush1.msra.mxu0 0.0
        %3140 = vmatprep.subr.mxu0 0.0
        %3141 = vmatpush1.msra.mxu0 0.0
        %3142 = vmatprep.subr.mxu0 0.0
        %3143 = vmatpush1.msra.mxu0 0.0
        %3144 = vmatprep.subr.mxu0 0.0
        %3145 = vmatpush1.msra.mxu0 0.0
        %3146 = vmatprep.subr.mxu0 0.0
        %3147 = vmatpush1.msra.mxu0 0.0
        %3148 = vmatprep.subr.mxu0 0.0
        %3149 = vmatpush1.msra.mxu0 0.0
        %3150 = vmatprep.subr.mxu0 0.0
        %3151 = vmatpush1.msra.mxu0 0.0
        %3152 = vmatprep.subr.mxu0 0.0
        %3153 = vmatpush1.msra.mxu0 0.0
        %3154 = vmatprep.subr.mxu0 0.0
        %3155 = vmatpush1.msra.mxu0 0.0
        %3156 = vmatprep.subr.mxu0 0.0
        %3157 = vmatpush1.msra.mxu0 0.0
        %3158 = vmatprep.subr.mxu0 0.0
        %3159 = vmatpush1.msra.mxu0 0.0
        %3160 = vmatprep.subr.mxu0 0.0
        %3161 = vmatpush1.msra.mxu0 0.0
        %3162 = vmatprep.subr.mxu0 0.0
        %3163 = vmatpush1.msra.mxu0 0.0
        %3164 = vmatprep.subr.mxu0 0.0
        %3165 = vmatpush1.msra.mxu0 0.0
        %3166 = vmatprep.subr.mxu0 0.0
        %3167 = vmatpush1.msra.mxu0 0.0
        %3168 = vmatprep.mubr.f32.mxu0 0.0
        %3169 = vmatmul.mubr.f32.gmra.mrb[0].mxu0 %v3093
        %v3170 = vpop.f32.mrb[0].mxu0
        %v3171 = vadd.f32 0.0, %v3170
        %v3172 = vpop.f32.mrb[0].mxu0
        %v3173 = vadd.f32 0.0, %v3172
        %3174 = vmatprep.mubr.f32.mxu0 0.0
        %3175 = vmatmul.mubr.f32.gmra.mrb[0].mxu0 %v3096
        %v3176 = vpop.f32.mrb[0].mxu0
        %v3177 = vadd.f32 0.0, %v3176
        %v3178 = vpop.f32.mrb[0].mxu0
        %v3179 = vadd.f32 0.0, %v3178
        %3180 = vmatprep.mubr.f32.mxu0 0.0
        %3181 = vmatmul.mubr.f32.gmra.mrb[0].mxu0 %v3099
        %v3182 = vpop.f32.mrb[0].mxu0
        %v3183 = vadd.f32 0.0, %v3182
        %v3184 = vpop.f32.mrb[0].mxu0
        %v3185 = vadd.f32 0.0, %v3184
        %3186 = vmatprep.mubr.f32.mxu0 0.0
        %3187 = vmatmul.mubr.f32.gmra.mrb[0].mxu0 %v3102
        %v3188 = vpop.f32.mrb[0].mxu0
        %v3189 = vadd.f32 0.0, %v3188
        %v3190 = vpop.f32.mrb[0].mxu0
        %v3191 = vadd.f32 0.0, %v3190
        %3192 = vdwg.mxu0
        %v3193 = vadd.f32 %v3015, %v3171
        %v3194 = vadd.f32 %v3016, %v3173
        %v3195 = vadd.f32 %v3017, %v3177
        %v3196 = vadd.f32 %v3018, %v3179
        %v3197 = vadd.f32 %v3019, %v3183
        %v3198 = vadd.f32 %v3020, %v3185
        %v3199 = vadd.f32 %v3021, %v3189
        %v3200 = vadd.f32 %v3022, %v3191
        %s3201 = scalar_lea.vmem [#allocation9], 224
        %v3202 = vld [vmem:[%s3201] sm:$0xff]
        %v3203 = vld [vmem:[%s3201 + $0x8] sm:$0xff]
        %v3204 = vld [vmem:[%s3201 + $0x10] sm:$0xff]
        %v3205 = vld [vmem:[%s3201 + $0x18] sm:$0xff]
        %3218 = vrot.lane.b32.xlu0 %v2833, 112
        %v3219 = vpop.permute.xlu0 %3218
        %3220 = vrot.lane.b32.xlu0 %v2834, 112
        %v3221 = vpop.permute.xlu0 %3220
        %3222 = vrot.lane.b32.xlu0 %v2835, 112
        %v3223 = vpop.permute.xlu0 %3222
        %3224 = vrot.lane.b32.xlu0 %v2836, 112
        %v3225 = vpop.permute.xlu0 %3224
        %3226 = vrot.lane.b32.xlu0 %v2837, 112
        %v3227 = vpop.permute.xlu0 %3226
        %3228 = vrot.lane.b32.xlu0 %v2838, 112
        %v3229 = vpop.permute.xlu0 %3228
        %3230 = vrot.lane.b32.xlu0 %v2839, 112
        %v3231 = vpop.permute.xlu0 %3230
        %3232 = vrot.lane.b32.xlu0 %v2840, 112
        %v3233 = vpop.permute.xlu0 %3232
        %3234 = vrot.lane.b32.xlu0 %v2841, 112
        %v3235 = vpop.permute.xlu0 %3234
        %3236 = vrot.lane.b32.xlu0 %v2842, 112
        %v3237 = vpop.permute.xlu0 %3236
        %3238 = vrot.lane.b32.xlu0 %v2843, 112
        %v3239 = vpop.permute.xlu0 %3238
        %3240 = vrot.lane.b32.xlu0 %v2844, 112
        %v3241 = vpop.permute.xlu0 %3240
        %v3242 = vsel %vm1668, %v3219, %v3221
        %v3243 = vsel %vm1668, %v3221, %v3223
        %v3244 = vsel %vm1668, %v3225, %v3227
        %v3245 = vsel %vm1668, %v3227, %v3229
        %v3246 = vsel %vm1668, %v3231, %v3233
        %v3247 = vsel %vm1668, %v3233, %v3235
        %v3248 = vsel %vm1668, %v3237, %v3239
        %v3249 = vsel %vm1668, %v3239, %v3241
        %v3259 = vsel %vm489, %v3202, 0
        %v3262 = vsel %vm489, %v3203, 0
        %v3265 = vsel %vm489, %v3204, 0
        %v3268 = vsel %vm489, %v3205, 0
        %3270 = vmatprep.subr.mxu0 %v3243
        %3271 = vmatpush1.msra.mxu0 %v3242
        %3272 = vmatprep.subr.mxu0 %v3245
        %3273 = vmatpush1.msra.mxu0 %v3244
        %3274 = vmatprep.subr.mxu0 %v3247
        %3275 = vmatpush1.msra.mxu0 %v3246
        %3276 = vmatprep.subr.mxu0 %v3249
        %3277 = vmatpush1.msra.mxu0 %v3248
        %3278 = vmatprep.subr.mxu0 0.0
        %3279 = vmatpush1.msra.mxu0 0.0
        %3280 = vmatprep.subr.mxu0 0.0
        %3281 = vmatpush1.msra.mxu0 0.0
        %3282 = vmatprep.subr.mxu0 0.0
        %3283 = vmatpush1.msra.mxu0 0.0
        %3284 = vmatprep.subr.mxu0 0.0
        %3285 = vmatpush1.msra.mxu0 0.0
        %3286 = vmatprep.subr.mxu0 0.0
        %3287 = vmatpush1.msra.mxu0 0.0
        %3288 = vmatprep.subr.mxu0 0.0
        %3289 = vmatpush1.msra.mxu0 0.0
        %3290 = vmatprep.subr.mxu0 0.0
        %3291 = vmatpush1.msra.mxu0 0.0
        %3292 = vmatprep.subr.mxu0 0.0
        %3293 = vmatpush1.msra.mxu0 0.0
        %3294 = vmatprep.subr.mxu0 0.0
        %3295 = vmatpush1.msra.mxu0 0.0
        %3296 = vmatprep.subr.mxu0 0.0
        %3297 = vmatpush1.msra.mxu0 0.0
        %3298 = vmatprep.subr.mxu0 0.0
        %3299 = vmatpush1.msra.mxu0 0.0
        %3300 = vmatprep.subr.mxu0 0.0
        %3301 = vmatpush1.msra.mxu0 0.0
        %3302 = vmatprep.subr.mxu0 0.0
        %3303 = vmatpush1.msra.mxu0 0.0
        %3304 = vmatprep.subr.mxu0 0.0
        %3305 = vmatpush1.msra.mxu0 0.0
        %3306 = vmatprep.subr.mxu0 0.0
        %3307 = vmatpush1.msra.mxu0 0.0
        %3308 = vmatprep.subr.mxu0 0.0
        %3309 = vmatpush1.msra.mxu0 0.0
        %3310 = vmatprep.subr.mxu0 0.0
        %3311 = vmatpush1.msra.mxu0 0.0
        %3312 = vmatprep.subr.mxu0 0.0
        %3313 = vmatpush1.msra.mxu0 0.0
        %3314 = vmatprep.subr.mxu0 0.0
        %3315 = vmatpush1.msra.mxu0 0.0
        %3316 = vmatprep.subr.mxu0 0.0
        %3317 = vmatpush1.msra.mxu0 0.0
        %3318 = vmatprep.subr.mxu0 0.0
        %3319 = vmatpush1.msra.mxu0 0.0
        %3320 = vmatprep.subr.mxu0 0.0
        %3321 = vmatpush1.msra.mxu0 0.0
        %3322 = vmatprep.subr.mxu0 0.0
        %3323 = vmatpush1.msra.mxu0 0.0
        %3324 = vmatprep.subr.mxu0 0.0
        %3325 = vmatpush1.msra.mxu0 0.0
        %3326 = vmatprep.subr.mxu0 0.0
        %3327 = vmatpush1.msra.mxu0 0.0
        %3328 = vmatprep.subr.mxu0 0.0
        %3329 = vmatpush1.msra.mxu0 0.0
        %3330 = vmatprep.subr.mxu0 0.0
        %3331 = vmatpush1.msra.mxu0 0.0
        %3332 = vmatprep.subr.mxu0 0.0
        %3333 = vmatpush1.msra.mxu0 0.0
        %3334 = vmatprep.mubr.f32.mxu0 0.0
        %3335 = vmatmul.mubr.f32.gmra.mrb[0].mxu0 %v3259
        %v3336 = vpop.f32.mrb[0].mxu0
        %v3337 = vadd.f32 0.0, %v3336
        %v3338 = vpop.f32.mrb[0].mxu0
        %v3339 = vadd.f32 0.0, %v3338
        %3340 = vmatprep.mubr.f32.mxu0 0.0
        %3341 = vmatmul.mubr.f32.gmra.mrb[0].mxu0 %v3262
        %v3342 = vpop.f32.mrb[0].mxu0
        %v3343 = vadd.f32 0.0, %v3342
        %v3344 = vpop.f32.mrb[0].mxu0
        %v3345 = vadd.f32 0.0, %v3344
        %3346 = vmatprep.mubr.f32.mxu0 0.0
        %3347 = vmatmul.mubr.f32.gmra.mrb[0].mxu0 %v3265
        %v3348 = vpop.f32.mrb[0].mxu0
        %v3349 = vadd.f32 0.0, %v3348
        %v3350 = vpop.f32.mrb[0].mxu0
        %v3351 = vadd.f32 0.0, %v3350
        %3352 = vmatprep.mubr.f32.mxu0 0.0
        %3353 = vmatmul.mubr.f32.gmra.mrb[0].mxu0 %v3268
        %v3354 = vpop.f32.mrb[0].mxu0
        %v3355 = vadd.f32 0.0, %v3354
        %v3356 = vpop.f32.mrb[0].mxu0
        %v3357 = vadd.f32 0.0, %v3356
        %3358 = vdwg.mxu0
        %v3359 = vadd.f32 %v3193, %v3337
        %v3360 = vadd.f32 %v3194, %v3339
        %v3361 = vadd.f32 %v3195, %v3343
        %v3362 = vadd.f32 %v3196, %v3345
        %v3363 = vadd.f32 %v3197, %v3349
        %v3364 = vadd.f32 %v3198, %v3351
        %v3365 = vadd.f32 %v3199, %v3355
        %v3366 = vadd.f32 %v3200, %v3357
        %v3367 = vmul.f32 %v2833, %v1795
        %v3368 = vmul.f32 %v2834, %v1798
        %v3369 = vmul.f32 %v2835, %v1797
        %v3370 = vmul.f32 %v2836, %v1795
        %v3371 = vmul.f32 %v2837, %v1798
        %v3372 = vmul.f32 %v2838, %v1797
        %v3373 = vmul.f32 %v2839, %v1795
        %v3374 = vmul.f32 %v2840, %v1798
        %v3375 = vmul.f32 %v2841, %v1797
        %v3376 = vmul.f32 %v2842, %v1795
        %v3377 = vmul.f32 %v2843, %v1798
        %v3378 = vmul.f32 %v2844, %v1797
        %s3379 = scalar_lea.vmem [#allocation9], 256
        %v3380 = vld [vmem:[%s3379] sm:$0xff]
        %v3381 = vld [vmem:[%s3379 + $0x8] sm:$0xff]
        %v3382 = vld [vmem:[%s3379 + $0x10] sm:$0xff]
        %v3383 = vld [vmem:[%s3379 + $0x18] sm:$0xff]
        %3396 = vrot.lane.b32.xlu0 %v3367, 111
        %v3397 = vpop.permute.xlu0 %3396
        %3398 = vrot.lane.b32.xlu0 %v3368, 111
        %v3399 = vpop.permute.xlu0 %3398
        %3400 = vrot.lane.b32.xlu0 %v3369, 111
        %v3401 = vpop.permute.xlu0 %3400
        %3402 = vrot.lane.b32.xlu0 %v3370, 111
        %v3403 = vpop.permute.xlu0 %3402
        %3404 = vrot.lane.b32.xlu0 %v3371, 111
        %v3405 = vpop.permute.xlu0 %3404
        %3406 = vrot.lane.b32.xlu0 %v3372, 111
        %v3407 = vpop.permute.xlu0 %3406
        %3408 = vrot.lane.b32.xlu0 %v3373, 111
        %v3409 = vpop.permute.xlu0 %3408
        %3410 = vrot.lane.b32.xlu0 %v3374, 111
        %v3411 = vpop.permute.xlu0 %3410
        %3412 = vrot.lane.b32.xlu0 %v3375, 111
        %v3413 = vpop.permute.xlu0 %3412
        %3414 = vrot.lane.b32.xlu0 %v3376, 111
        %v3415 = vpop.permute.xlu0 %3414
        %3416 = vrot.lane.b32.xlu0 %v3377, 111
        %v3417 = vpop.permute.xlu0 %3416
        %3418 = vrot.lane.b32.xlu0 %v3378, 111
        %v3419 = vpop.permute.xlu0 %3418
        %v3420 = vsel %vm410, %v3397, %v3399
        %v3421 = vsel %vm410, %v3399, %v3401
        %v3422 = vsel %vm410, %v3403, %v3405
        %v3423 = vsel %vm410, %v3405, %v3407
        %v3424 = vsel %vm410, %v3409, %v3411
        %v3425 = vsel %vm410, %v3411, %v3413
        %v3426 = vsel %vm410, %v3415, %v3417
        %v3427 = vsel %vm410, %v3417, %v3419
        %v3437 = vsel %vm489, %v3380, 0
        %v3440 = vsel %vm489, %v3381, 0
        %v3443 = vsel %vm489, %v3382, 0
        %v3446 = vsel %vm489, %v3383, 0
        %3448 = vmatprep.subr.mxu0 %v3421
        %3449 = vmatpush1.msra.mxu0 %v3420
        %3450 = vmatprep.subr.mxu0 %v3423
        %3451 = vmatpush1.msra.mxu0 %v3422
        %3452 = vmatprep.subr.mxu0 %v3425
        %3453 = vmatpush1.msra.mxu0 %v3424
        %3454 = vmatprep.subr.mxu0 %v3427
        %3455 = vmatpush1.msra.mxu0 %v3426
        %3456 = vmatprep.subr.mxu0 0.0
        %3457 = vmatpush1.msra.mxu0 0.0
        %3458 = vmatprep.subr.mxu0 0.0
        %3459 = vmatpush1.msra.mxu0 0.0
        %3460 = vmatprep.subr.mxu0 0.0
        %3461 = vmatpush1.msra.mxu0 0.0
        %3462 = vmatprep.subr.mxu0 0.0
        %3463 = vmatpush1.msra.mxu0 0.0
        %3464 = vmatprep.subr.mxu0 0.0
        %3465 = vmatpush1.msra.mxu0 0.0
        %3466 = vmatprep.subr.mxu0 0.0
        %3467 = vmatpush1.msra.mxu0 0.0
        %3468 = vmatprep.subr.mxu0 0.0
        %3469 = vmatpush1.msra.mxu0 0.0
        %3470 = vmatprep.subr.mxu0 0.0
        %3471 = vmatpush1.msra.mxu0 0.0
        %3472 = vmatprep.subr.mxu0 0.0
        %3473 = vmatpush1.msra.mxu0 0.0
        %3474 = vmatprep.subr.mxu0 0.0
        %3475 = vmatpush1.msra.mxu0 0.0
        %3476 = vmatprep.subr.mxu0 0.0
        %3477 = vmatpush1.msra.mxu0 0.0
        %3478 = vmatprep.subr.mxu0 0.0
        %3479 = vmatpush1.msra.mxu0 0.0
        %3480 = vmatprep.subr.mxu0 0.0
        %3481 = vmatpush1.msra.mxu0 0.0
        %3482 = vmatprep.subr.mxu0 0.0
        %3483 = vmatpush1.msra.mxu0 0.0
        %3484 = vmatprep.subr.mxu0 0.0
        %3485 = vmatpush1.msra.mxu0 0.0
        %3486 = vmatprep.subr.mxu0 0.0
        %3487 = vmatpush1.msra.mxu0 0.0
        %3488 = vmatprep.subr.mxu0 0.0
        %3489 = vmatpush1.msra.mxu0 0.0
        %3490 = vmatprep.subr.mxu0 0.0
        %3491 = vmatpush1.msra.mxu0 0.0
        %3492 = vmatprep.subr.mxu0 0.0
        %3493 = vmatpush1.msra.mxu0 0.0
        %3494 = vmatprep.subr.mxu0 0.0
        %3495 = vmatpush1.msra.mxu0 0.0
        %3496 = vmatprep.subr.mxu0 0.0
        %3497 = vmatpush1.msra.mxu0 0.0
        %3498 = vmatprep.subr.mxu0 0.0
        %3499 = vmatpush1.msra.mxu0 0.0
        %3500 = vmatprep.subr.mxu0 0.0
        %3501 = vmatpush1.msra.mxu0 0.0
        %3502 = vmatprep.subr.mxu0 0.0
        %3503 = vmatpush1.msra.mxu0 0.0
        %3504 = vmatprep.subr.mxu0 0.0
        %3505 = vmatpush1.msra.mxu0 0.0
        %3506 = vmatprep.subr.mxu0 0.0
        %3507 = vmatpush1.msra.mxu0 0.0
        %3508 = vmatprep.subr.mxu0 0.0
        %3509 = vmatpush1.msra.mxu0 0.0
        %3510 = vmatprep.subr.mxu0 0.0
        %3511 = vmatpush1.msra.mxu0 0.0
        %3512 = vmatprep.mubr.f32.mxu0 0.0
        %3513 = vmatmul.mubr.f32.gmra.mrb[0].mxu0 %v3437
        %v3514 = vpop.f32.mrb[0].mxu0
        %v3515 = vadd.f32 0.0, %v3514
        %v3516 = vpop.f32.mrb[0].mxu0
        %v3517 = vadd.f32 0.0, %v3516
        %3518 = vmatprep.mubr.f32.mxu0 0.0
        %3519 = vmatmul.mubr.f32.gmra.mrb[0].mxu0 %v3440
        %v3520 = vpop.f32.mrb[0].mxu0
        %v3521 = vadd.f32 0.0, %v3520
        %v3522 = vpop.f32.mrb[0].mxu0
        %v3523 = vadd.f32 0.0, %v3522
        %3524 = vmatprep.mubr.f32.mxu0 0.0
        %3525 = vmatmul.mubr.f32.gmra.mrb[0].mxu0 %v3443
        %v3526 = vpop.f32.mrb[0].mxu0
        %v3527 = vadd.f32 0.0, %v3526
        %v3528 = vpop.f32.mrb[0].mxu0
        %v3529 = vadd.f32 0.0, %v3528
        %3530 = vmatprep.mubr.f32.mxu0 0.0
        %3531 = vmatmul.mubr.f32.gmra.mrb[0].mxu0 %v3446
        %v3532 = vpop.f32.mrb[0].mxu0
        %v3533 = vadd.f32 0.0, %v3532
        %v3534 = vpop.f32.mrb[0].mxu0
        %v3535 = vadd.f32 0.0, %v3534
        %3536 = vdwg.mxu0
        %v3537 = vadd.f32 %v3359, %v3515
        %v3538 = vadd.f32 %v3360, %v3517
        %v3539 = vadd.f32 %v3361, %v3521
        %v3540 = vadd.f32 %v3362, %v3523
        %v3541 = vadd.f32 %v3363, %v3527
        %v3542 = vadd.f32 %v3364, %v3529
        %v3543 = vadd.f32 %v3365, %v3533
        %v3544 = vadd.f32 %v3366, %v3535
        %3546 = vset.pattern.permute.xlu0 0
        %3547 = vperm.xlu0 %3546, %v340
        %v3548 = vpop.permute.xlu0 %3547
        %3551 = vset.pattern.permute.xlu0 0
        %3552 = vperm.xlu0 %3551, %v341
        %v3553 = vpop.permute.xlu0 %3552
        %3556 = vset.pattern.permute.xlu0 0
        %3557 = vperm.xlu0 %3556, %v342
        %v3558 = vpop.permute.xlu0 %3557
        %3561 = vset.pattern.permute.xlu0 0
        %3562 = vperm.xlu0 %3561, %v343
        %v3563 = vpop.permute.xlu0 %3562
        %v3565 = vadd.f32 %v3537, %v3548
        %v3566 = vadd.f32 %v3538, %v3548
        %v3567 = vadd.f32 %v3539, %v3553
        %v3568 = vadd.f32 %v3540, %v3553
        %v3569 = vadd.f32 %v3541, %v3558
        %v3570 = vadd.f32 %v3542, %v3558
        %v3571 = vadd.f32 %v3543, %v3563
        %v3572 = vadd.f32 %v3544, %v3563
        %v3573 = vadd.f32 %v3565, %v326
        %v3574 = vadd.f32 %v3566, %v327
        %v3575 = vadd.f32 %v3567, %v328
        %v3576 = vadd.f32 %v3568, %v329
        %v3577 = vadd.f32 %v3569, %v330
        %v3578 = vadd.f32 %v3570, %v331
        %v3579 = vadd.f32 %v3571, %v332
        %v3580 = vadd.f32 %v3572, %v333
        %3581 = vst [vmem:[%s325] sm:$0xff] %v3573
        %3582 = vst [vmem:[%s325 + $0x8] sm:$0xff] %v3574
        %3583 = vst [vmem:[%s325 + $0x10] sm:$0xff] %v3575
        %3584 = vst [vmem:[%s325 + $0x18] sm:$0xff] %v3576
        %3585 = vst [vmem:[%s325 + $0x20] sm:$0xff] %v3577
        %3586 = vst [vmem:[%s325 + $0x28] sm:$0xff] %v3578
        %3587 = vst [vmem:[%s325 + $0x30] sm:$0xff] %v3579
        %3588 = vst [vmem:[%s325 + $0x38] sm:$0xff] %v3580
        %s3589 = sand.u32 %s185, 1
        %s3590 = scalar_lea.sflag [#allocation6], %s3589
        %s3591 = sand.u32 %s185, 1
        %s3592 = smul.addr %s3591, 64
        %s3593 = scalar_lea.vmem [#allocation10], %s3592
        // Predicated region
        $region61: #{tpu_custom_call.1} parent=47 // pred_check
          %p3594 = pneg %p195
        $region62: #{tpu_custom_call.1} parent=47 // pred_check_branch
          %3596 = sbr.rel (%p3594) target = $region64
        $region63: #{tpu_custom_call.1} parent=47 // pred_region
          %s3598 = ssub.s32 1024, 1024
          %3599 = vsyncadd %s3590, %s3598
          %s3600 = smul.addr %s25, 8
          %s3601 = smul.addr %s3600, 128
          %s3602 = scalar_lea.hbm %s7, %s3601
          %s3603 = sshll.u32 %s3593, 4
          %s3604 = int_to_ptr.vmem [resolvable:$true] %s3603
          %3609 = dma.vmem_to_hbm [thread:$0]  %s3604, 1024, %s3602, %s3590, 256, 256, 16
        $region64: #{tpu_custom_call.1} parent=47 // pred_fallthru
          _
      $region48: #{tpu_custom_call.1} parent=5 // pred_fallthru
        _
      %p3610 = scmp.le.s32.totalorder 2, %s20
      // Predicated region
      $region65: #{tpu_custom_call.1} parent=5 // pred_check
        %p3611 = pneg %p3610
      $region66: #{tpu_custom_call.1} parent=5 // pred_check_branch
        %3613 = sbr.rel (%p3611) target = $region68
      $region67: #{tpu_custom_call.1} parent=5 // pred_region
        %s3614 = ssub.s32 %s20, 2
        // Predicated region
        $region69: #{tpu_custom_call.1} parent=67 // pred_check
          %p3615 = pneg %p201
        $region70: #{tpu_custom_call.1} parent=67 // pred_check_branch
          %3617 = sbr.rel (%p3615) target = $region72
        $region71: #{tpu_custom_call.1} parent=67 // pred_region
          %s3618 = sand.u32 %s186, 1
          %s3619 = scalar_lea.sflag [#allocation6], %s3618
          %s3620 = sand.u32 %s186, 1
          %s3621 = smul.addr %s3620, 64
          %s3622 = scalar_lea.vmem [#allocation10], %s3621
          %3623 = dma.done %s3619, 1024
        $region72: #{tpu_custom_call.1} parent=67 // pred_fallthru
          _
      $region68: #{tpu_custom_call.1} parent=5 // pred_fallthru
        _
    $region6: #{tpu_custom_call.1} parent=1 // loop_footer
      %s24 = sadd.s32 1, %s20
    $region7: #{tpu_custom_call.1} parent=1 // loop_footer_branch
      %19 = sbr.rel target = $region3
    $region8: #{tpu_custom_call.1} parent=1 // loop_exit
      _
    %3624 = vsyncpa [#allocation5], 1
    %s3625 = scalar_lea.sflag [#allocation5], 1
    %3626 = vsyncpa %s3625, 1
    %3627 = vsyncpa [#allocation8], 1
    %3628 = vsyncpa [#allocation6], 1
    %s3629 = scalar_lea.sflag [#allocation6], 1
    %3630 = vsyncpa %s3629, 1

</llo_original>
